<compile_context>
chip_gen: v5e
topology: v5e:2x2
jax: 0.10.0
libtpu: 0.0.40
codegen_flags: <defaults>
</compile_context>

<pallas_src>
import functools

import numpy as np
import jax
import jax.numpy as jnp
from jax import lax
from jax.experimental import pallas as pl
from jax.experimental.pallas import tpu as pltpu  # noqa: F401  (TPU backend)

NEG_SLOPE = 0.2
BN_EPS = 1e-5
KSIZE = 4


# ----------------------------- Pallas kernel ------------------------------ #
def _disc_stack_kernel(*refs, leaky):
    """Entire discriminator stack in a single kernel invocation.

    refs = (x_ref, S_1, M_1, b_1, ..., S_L, M_L, b_L, o_ref)
      x_ref : (B*H0, W0*C0)            bf16  input rows (pixel-major, ch-minor)
      S_l   : (4, B*Ho_l, B*Hi_l)      bf16  0/1 row selectors per vertical tap
      M_l   : (4, Wi_l*Ci_l, Wo_l*Co_l) bf16 banded conv matrices per tap
      b_l   : (1, Wo_l*Co_l)           f32   per-column shift (bias / folded BN)
      o_ref : (B*Ho_L, Wo_L*Co_L)      f32   final-layer output rows
    """
    x_ref = refs[0]
    o_ref = refs[-1]
    layer_refs = refs[1:-1]
    n_layers = len(layer_refs) // 3

    y = x_ref[...]                                     # bf16 activation rows
    for l in range(n_layers):                          # unrolled at trace time
        s_ref = layer_refs[3 * l]
        m_ref = layer_refs[3 * l + 1]
        b_ref = layer_refs[3 * l + 2]

        acc = None
        for t in range(KSIZE):                         # 4 vertical taps, unrolled
            # Row selection (H reflect-pad + stride + batch) on the MXU; exact
            # for 0/1 selectors, so the bf16 round-trip is lossless.
            sel = jnp.dot(s_ref[t], y,
                          preferred_element_type=jnp.float32).astype(jnp.bfloat16)
            # Banded matmul: k=4 conv along W (incl. W reflect-pad), channel
            # contraction and folded BN scale in one MXU op; f32 accumulate.
            part = jnp.dot(sel, m_ref[t], preferred_element_type=jnp.float32)
            acc = part if acc is None else acc + part

        z = acc + b_ref[...]                           # f32 affine epilogue
        if leaky[l]:
            z = jnp.where(z > 0, z, NEG_SLOPE * z)
        if l + 1 < n_layers:
            y = z.astype(jnp.bfloat16)                 # bf16 between layers
        else:
            o_ref[...] = z.astype(o_ref.dtype)


# --------------------- host-side constant construction --------------------- #
def _reflect(i, n):
    """Index map of jnp.pad(..., mode='reflect') with pad=1."""
    if i < 0:
        return -i
    if i >= n:
        return 2 * n - 2 - i
    return i


def _build_layer_operands(w_hwio, scale, shift, stride, h_in, w_in, batch):
    """Fold reflect-pad, stride, batch and BN-scale into S / M / shift."""
    k, _, cin, cout = w_hwio.shape
    h_out = (h_in + 2 - k) // stride + 1
    w_out = (w_in + 2 - k) // stride + 1
    w = np.asarray(w_hwio, np.float32) * np.asarray(scale, np.float32)[None, None, None, :]

    # M_tap: (W_in*Cin, W_out*Cout) banded conv-along-W matrix per vertical tap.
    m = np.zeros((k, w_in * cin, w_out * cout), np.float32)
    for di in range(k):
        for jo in range(w_out):
            for dj in range(k):
                js = _reflect(jo * stride + dj - 1, w_in)
                m[di, js * cin:(js + 1) * cin, jo * cout:(jo + 1) * cout] += w[di, dj]

    # S_tap: (B*H_out, B*H_in) 0/1 row selector (H reflect-pad + stride + batch
    # block-diagonal folded in).
    s = np.zeros((k, batch * h_out, batch * h_in), np.float32)
    for di in range(k):
        for b in range(batch):
            for io in range(h_out):
                isrc = _reflect(io * stride + di - 1, h_in)
                s[di, b * h_out + io, b * h_in + isrc] = 1.0

    shift_row = np.tile(np.asarray(shift, np.float32), w_out)[None, :]
    arrays = (jnp.asarray(s, jnp.bfloat16),
              jnp.asarray(m, jnp.bfloat16),
              jnp.asarray(shift_row, jnp.float32))
    return arrays, (h_out, w_out, cout)


def build_disc_operands(params, batch, h, w):
    """Per-layer (S, M, shift) arrays + static metadata for the fused kernel."""
    consts, leaky = [], []
    hi, wi, cout = h, w, None
    for p in params:
        arrs, (hi, wi, cout) = _build_layer_operands(
            p["w"], p["scale"], p["shift"], p["stride"], hi, wi, batch)
        consts.append(arrs)
        leaky.append(bool(p["leaky"]))
    static = dict(leaky=tuple(leaky), out_hw=(hi, wi), out_c=cout)
    return consts, static


# ------------------------------- parameters -------------------------------- #
def make_disc_params(key, inp=3, feature_dim=(8, 16, 32, 64)):
    """Deterministic synthetic parameters. Weights stored HWIO, f32."""
    k = KSIZE
    params = []
    keys = jax.random.split(key, 4 * (len(feature_dim) + 1))
    ki = 0

    def nxt():
        nonlocal ki
        kk = keys[ki]
        ki += 1
        return kk

    # layer 1: CNN(inp*2 -> feat[0]), conv bias, no BN
    cin, cout = inp * 2, feature_dim[0]
    w = 0.05 * jax.random.normal(nxt(), (k, k, cin, cout), jnp.float32)
    b = 0.05 * jax.random.normal(nxt(), (cout,), jnp.float32)
    params.append(dict(w=w, scale=jnp.ones((cout,), jnp.float32), shift=b,
                       stride=2, leaky=True))

    # CNNB blocks: conv(bias=False) + BatchNorm (eval, folded) + LeakyReLU
    cin = feature_dim[0]
    for feat in feature_dim[1:]:
        stride = 1 if feat == feature_dim[-1] else 2
        w = 0.05 * jax.random.normal(nxt(), (k, k, cin, feat), jnp.float32)
        gamma = 1.0 + 0.1 * jax.random.normal(nxt(), (feat,), jnp.float32)
        beta = 0.1 * jax.random.normal(nxt(), (feat,), jnp.float32)
        r_mean = 0.05 * jax.random.normal(nxt(), (feat,), jnp.float32)
        r_var = jnp.ones((feat,), jnp.float32)
        scale = gamma / jnp.sqrt(r_var + BN_EPS)
        shift = beta - r_mean * scale
        params.append(dict(w=w, scale=scale, shift=shift,
                           stride=stride, leaky=True))
        cin = feat

    # final conv: (feat[-1] -> 1), bias, stride 1, no activation
    w = 0.05 * jax.random.normal(nxt(), (k, k, cin, 1), jnp.float32)
    b = 0.05 * jax.random.normal(nxt(), (1,), jnp.float32)
    params.append(dict(w=w, scale=jnp.ones((1,), jnp.float32), shift=b,
                       stride=1, leaky=False))
    return params


# --------------------------------- forward --------------------------------- #
def disc_forward(static, consts, x_nchw, y_nchw):
    """Matches Disc.forward: cat on channel dim, run the fused conv stack."""
    b, _, h, _ = x_nchw.shape
    x = jnp.transpose(x_nchw, (0, 2, 3, 1))           # NCHW -> NHWC
    y = jnp.transpose(y_nchw, (0, 2, 3, 1))
    inp = jnp.concatenate([x, y], axis=-1)            # (B, H, W, 2C)
    rows = inp.reshape(b * h, -1).astype(jnp.bfloat16)  # bf16 before any movement

    flat = [rows]
    for (s, m, sh) in consts:
        flat.extend([s, m, sh])

    ho, wo = static["out_hw"]
    co = static["out_c"]
    out = pl.pallas_call(
        functools.partial(_disc_stack_kernel, leaky=static["leaky"]),
        out_shape=jax.ShapeDtypeStruct((b * ho, wo * co), jnp.float32),
    )(*flat)
    return out.reshape(b, ho, wo, co).transpose(0, 3, 1, 2)   # back to NCHW


# ----------------------- pure-JAX reference (check) ------------------------ #
def disc_reference(params, x_nchw, y_nchw):
    x = jnp.transpose(x_nchw, (0, 2, 3, 1))
    y = jnp.transpose(y_nchw, (0, 2, 3, 1))
    h = jnp.concatenate([x, y], axis=-1)
    for p in params:
        hp = jnp.pad(h, ((0, 0), (1, 1), (1, 1), (0, 0)), mode="reflect")
        out = lax.conv_general_dilated(
            hp, p["w"], window_strides=(p["stride"], p["stride"]),
            padding="VALID", dimension_numbers=("NHWC", "HWIO", "NHWC"),
            precision=lax.Precision.HIGHEST)
        out = out * p["scale"] + p["shift"]
        if p["leaky"]:
            out = jnp.where(out > 0, out, NEG_SLOPE * out)
        h = out
    return jnp.transpose(h, (0, 3, 1, 2))


if __name__ == "__main__":
    key = jax.random.PRNGKey(0)
    kx, ky, kp = jax.random.split(key, 3)

    B, C, H, W = 2, 3, 32, 32   # small shapes; feature_dim scaled down too
    x = jax.random.normal(kx, (B, C, H, W), jnp.float32)
    y = jax.random.normal(ky, (B, C, H, W), jnp.float32)

    params = make_disc_params(kp, inp=C, feature_dim=(8, 16, 32, 64))
    consts, static = build_disc_operands(params, B, H, W)

    fwd = jax.jit(functools.partial(disc_forward, static))
    out = jax.block_until_ready(fwd(consts, x, y))

    ref = jax.block_until_ready(disc_reference(params, x, y))
    assert out.shape == ref.shape, (out.shape, ref.shape)
    # bf16 MXU operands / bf16 inter-layer activations (f32 accumulate + epilogue)
    # vs f32-HIGHEST reference
    assert jnp.allclose(out, ref, rtol=2e-2, atol=2e-2), \
        float(jnp.max(jnp.abs(out - ref)))

    print("KERNEL_OK")
</pallas_src>

<mosaic_0001>
module attributes {stable_mosaic.version = 11 : i64} {
  func.func @_disc_stack_kernel(%arg0: memref<64x192xbf16, #tpu.memory_space<vmem>>, %arg1: memref<4x32x64xbf16, #tpu.memory_space<vmem>>, %arg2: memref<4x192x128xbf16, #tpu.memory_space<vmem>>, %arg3: memref<1x128xf32, #tpu.memory_space<vmem>>, %arg4: memref<4x16x32xbf16, #tpu.memory_space<vmem>>, %arg5: memref<4x128x128xbf16, #tpu.memory_space<vmem>>, %arg6: memref<1x128xf32, #tpu.memory_space<vmem>>, %arg7: memref<4x8x16xbf16, #tpu.memory_space<vmem>>, %arg8: memref<4x128x128xbf16, #tpu.memory_space<vmem>>, %arg9: memref<1x128xf32, #tpu.memory_space<vmem>>, %arg10: memref<4x6x8xbf16, #tpu.memory_space<vmem>>, %arg11: memref<4x128x192xbf16, #tpu.memory_space<vmem>>, %arg12: memref<1x192xf32, #tpu.memory_space<vmem>>, %arg13: memref<4x4x6xbf16, #tpu.memory_space<vmem>>, %arg14: memref<4x192x2xbf16, #tpu.memory_space<vmem>>, %arg15: memref<1x2xf32, #tpu.memory_space<vmem>>, %arg16: memref<4x2xf32, #tpu.memory_space<vmem>>) attributes {dimension_semantics = [], scalar_prefetch = 0 : i64, scratch_operands = 0 : i64, tpu.core_type = #tpu.core_type<tc>} {
    %c0 = arith.constant 0 : index
    %c0_0 = arith.constant 0 : index
    %0 = vector.load %arg0[%c0, %c0_0] : memref<64x192xbf16, #tpu.memory_space<vmem>>, vector<64x192xbf16>
    %c0_1 = arith.constant 0 : index
    %c0_2 = arith.constant 0 : index
    %c0_3 = arith.constant 0 : index
    %1 = vector.load %arg1[%c0_1, %c0_2, %c0_3] : memref<4x32x64xbf16, #tpu.memory_space<vmem>>, vector<1x32x64xbf16>
    %2 = vector.shape_cast %1 : vector<1x32x64xbf16> to vector<32x64xbf16>
    %cst = arith.constant dense<0.000000e+00> : vector<32x192xf32>
    %3 = tpu.matmul %2, %0, %cst {dimension_numbers = #tpu.dot_dimension_numbers<[1], [0], [0], [1], [0, 0, 1, 1], [], []>} : vector<32x64xbf16>, vector<64x192xbf16>, vector<32x192xf32> -> vector<32x192xf32>
    %4 = arith.truncf %3 : vector<32x192xf32> to vector<32x192xbf16>
    %c0_4 = arith.constant 0 : index
    %c0_5 = arith.constant 0 : index
    %c0_6 = arith.constant 0 : index
    %5 = vector.load %arg2[%c0_4, %c0_5, %c0_6] : memref<4x192x128xbf16, #tpu.memory_space<vmem>>, vector<1x192x128xbf16>
    %6 = vector.shape_cast %5 : vector<1x192x128xbf16> to vector<192x128xbf16>
    %cst_7 = arith.constant dense<0.000000e+00> : vector<32x128xf32>
    %7 = tpu.matmul %4, %6, %cst_7 {dimension_numbers = #tpu.dot_dimension_numbers<[1], [0], [0], [1], [0, 0, 1, 1], [], []>} : vector<32x192xbf16>, vector<192x128xbf16>, vector<32x128xf32> -> vector<32x128xf32>
    %c1 = arith.constant 1 : index
    %c0_8 = arith.constant 0 : index
    %c0_9 = arith.constant 0 : index
    %8 = vector.load %arg1[%c1, %c0_8, %c0_9] : memref<4x32x64xbf16, #tpu.memory_space<vmem>>, vector<1x32x64xbf16>
    %9 = vector.shape_cast %8 : vector<1x32x64xbf16> to vector<32x64xbf16>
    %cst_10 = arith.constant dense<0.000000e+00> : vector<32x192xf32>
    %10 = tpu.matmul %9, %0, %cst_10 {dimension_numbers = #tpu.dot_dimension_numbers<[1], [0], [0], [1], [0, 0, 1, 1], [], []>} : vector<32x64xbf16>, vector<64x192xbf16>, vector<32x192xf32> -> vector<32x192xf32>
    %11 = arith.truncf %10 : vector<32x192xf32> to vector<32x192xbf16>
    %c1_11 = arith.constant 1 : index
    %c0_12 = arith.constant 0 : index
    %c0_13 = arith.constant 0 : index
    %12 = vector.load %arg2[%c1_11, %c0_12, %c0_13] : memref<4x192x128xbf16, #tpu.memory_space<vmem>>, vector<1x192x128xbf16>
    %13 = vector.shape_cast %12 : vector<1x192x128xbf16> to vector<192x128xbf16>
    %cst_14 = arith.constant dense<0.000000e+00> : vector<32x128xf32>
    %14 = tpu.matmul %11, %13, %cst_14 {dimension_numbers = #tpu.dot_dimension_numbers<[1], [0], [0], [1], [0, 0, 1, 1], [], []>} : vector<32x192xbf16>, vector<192x128xbf16>, vector<32x128xf32> -> vector<32x128xf32>
    %15 = arith.addf %7, %14 : vector<32x128xf32>
    %c2 = arith.constant 2 : index
    %c0_15 = arith.constant 0 : index
    %c0_16 = arith.constant 0 : index
    %16 = vector.load %arg1[%c2, %c0_15, %c0_16] : memref<4x32x64xbf16, #tpu.memory_space<vmem>>, vector<1x32x64xbf16>
    %17 = vector.shape_cast %16 : vector<1x32x64xbf16> to vector<32x64xbf16>
    %cst_17 = arith.constant dense<0.000000e+00> : vector<32x192xf32>
    %18 = tpu.matmul %17, %0, %cst_17 {dimension_numbers = #tpu.dot_dimension_numbers<[1], [0], [0], [1], [0, 0, 1, 1], [], []>} : vector<32x64xbf16>, vector<64x192xbf16>, vector<32x192xf32> -> vector<32x192xf32>
    %19 = arith.truncf %18 : vector<32x192xf32> to vector<32x192xbf16>
    %c2_18 = arith.constant 2 : index
    %c0_19 = arith.constant 0 : index
    %c0_20 = arith.constant 0 : index
    %20 = vector.load %arg2[%c2_18, %c0_19, %c0_20] : memref<4x192x128xbf16, #tpu.memory_space<vmem>>, vector<1x192x128xbf16>
    %21 = vector.shape_cast %20 : vector<1x192x128xbf16> to vector<192x128xbf16>
    %cst_21 = arith.constant dense<0.000000e+00> : vector<32x128xf32>
    %22 = tpu.matmul %19, %21, %cst_21 {dimension_numbers = #tpu.dot_dimension_numbers<[1], [0], [0], [1], [0, 0, 1, 1], [], []>} : vector<32x192xbf16>, vector<192x128xbf16>, vector<32x128xf32> -> vector<32x128xf32>
    %23 = arith.addf %15, %22 : vector<32x128xf32>
    %c3 = arith.constant 3 : index
    %c0_22 = arith.constant 0 : index
    %c0_23 = arith.constant 0 : index
    %24 = vector.load %arg1[%c3, %c0_22, %c0_23] : memref<4x32x64xbf16, #tpu.memory_space<vmem>>, vector<1x32x64xbf16>
    %25 = vector.shape_cast %24 : vector<1x32x64xbf16> to vector<32x64xbf16>
    %cst_24 = arith.constant dense<0.000000e+00> : vector<32x192xf32>
    %26 = tpu.matmul %25, %0, %cst_24 {dimension_numbers = #tpu.dot_dimension_numbers<[1], [0], [0], [1], [0, 0, 1, 1], [], []>} : vector<32x64xbf16>, vector<64x192xbf16>, vector<32x192xf32> -> vector<32x192xf32>
    %27 = arith.truncf %26 : vector<32x192xf32> to vector<32x192xbf16>
    %c3_25 = arith.constant 3 : index
    %c0_26 = arith.constant 0 : index
    %c0_27 = arith.constant 0 : index
    %28 = vector.load %arg2[%c3_25, %c0_26, %c0_27] : memref<4x192x128xbf16, #tpu.memory_space<vmem>>, vector<1x192x128xbf16>
    %29 = vector.shape_cast %28 : vector<1x192x128xbf16> to vector<192x128xbf16>
    %cst_28 = arith.constant dense<0.000000e+00> : vector<32x128xf32>
    %30 = tpu.matmul %27, %29, %cst_28 {dimension_numbers = #tpu.dot_dimension_numbers<[1], [0], [0], [1], [0, 0, 1, 1], [], []>} : vector<32x192xbf16>, vector<192x128xbf16>, vector<32x128xf32> -> vector<32x128xf32>
    %31 = arith.addf %23, %30 : vector<32x128xf32>
    %c0_29 = arith.constant 0 : index
    %c0_30 = arith.constant 0 : index
    %32 = vector.load %arg3[%c0_29, %c0_30] : memref<1x128xf32, #tpu.memory_space<vmem>>, vector<1x128xf32>
    %33 = vector.broadcast %32 : vector<1x128xf32> to vector<32x128xf32>
    %34 = arith.addf %31, %33 : vector<32x128xf32>
    %cst_31 = arith.constant 0.000000e+00 : f32
    %35 = vector.broadcast %cst_31 : f32 to vector<32x128xf32>
    %36 = arith.cmpf ogt, %34, %35 : vector<32x128xf32>
    %cst_32 = arith.constant 2.000000e-01 : f32
    %37 = vector.broadcast %cst_32 : f32 to vector<32x128xf32>
    %38 = arith.mulf %37, %34 : vector<32x128xf32>
    %39 = arith.select %36, %34, %38 : vector<32x128xi1>, vector<32x128xf32>
    %40 = arith.truncf %39 : vector<32x128xf32> to vector<32x128xbf16>
    %c0_33 = arith.constant 0 : index
    %c0_34 = arith.constant 0 : index
    %c0_35 = arith.constant 0 : index
    %41 = vector.load %arg4[%c0_33, %c0_34, %c0_35] : memref<4x16x32xbf16, #tpu.memory_space<vmem>>, vector<1x16x32xbf16>
    %42 = vector.shape_cast %41 : vector<1x16x32xbf16> to vector<16x32xbf16>
    %cst_36 = arith.constant dense<0.000000e+00> : vector<16x128xf32>
    %43 = tpu.matmul %42, %40, %cst_36 {dimension_numbers = #tpu.dot_dimension_numbers<[1], [0], [0], [1], [0, 0, 1, 1], [], []>} : vector<16x32xbf16>, vector<32x128xbf16>, vector<16x128xf32> -> vector<16x128xf32>
    %44 = arith.truncf %43 : vector<16x128xf32> to vector<16x128xbf16>
    %c0_37 = arith.constant 0 : index
    %c0_38 = arith.constant 0 : index
    %c0_39 = arith.constant 0 : index
    %45 = vector.load %arg5[%c0_37, %c0_38, %c0_39] : memref<4x128x128xbf16, #tpu.memory_space<vmem>>, vector<1x128x128xbf16>
    %46 = vector.shape_cast %45 : vector<1x128x128xbf16> to vector<128x128xbf16>
    %cst_40 = arith.constant dense<0.000000e+00> : vector<16x128xf32>
    %47 = tpu.matmul %44, %46, %cst_40 {dimension_numbers = #tpu.dot_dimension_numbers<[1], [0], [0], [1], [0, 0, 1, 1], [], []>} : vector<16x128xbf16>, vector<128x128xbf16>, vector<16x128xf32> -> vector<16x128xf32>
    %c1_41 = arith.constant 1 : index
    %c0_42 = arith.constant 0 : index
    %c0_43 = arith.constant 0 : index
    %48 = vector.load %arg4[%c1_41, %c0_42, %c0_43] : memref<4x16x32xbf16, #tpu.memory_space<vmem>>, vector<1x16x32xbf16>
    %49 = vector.shape_cast %48 : vector<1x16x32xbf16> to vector<16x32xbf16>
    %cst_44 = arith.constant dense<0.000000e+00> : vector<16x128xf32>
    %50 = tpu.matmul %49, %40, %cst_44 {dimension_numbers = #tpu.dot_dimension_numbers<[1], [0], [0], [1], [0, 0, 1, 1], [], []>} : vector<16x32xbf16>, vector<32x128xbf16>, vector<16x128xf32> -> vector<16x128xf32>
    %51 = arith.truncf %50 : vector<16x128xf32> to vector<16x128xbf16>
    %c1_45 = arith.constant 1 : index
    %c0_46 = arith.constant 0 : index
    %c0_47 = arith.constant 0 : index
    %52 = vector.load %arg5[%c1_45, %c0_46, %c0_47] : memref<4x128x128xbf16, #tpu.memory_space<vmem>>, vector<1x128x128xbf16>
    %53 = vector.shape_cast %52 : vector<1x128x128xbf16> to vector<128x128xbf16>
    %cst_48 = arith.constant dense<0.000000e+00> : vector<16x128xf32>
    %54 = tpu.matmul %51, %53, %cst_48 {dimension_numbers = #tpu.dot_dimension_numbers<[1], [0], [0], [1], [0, 0, 1, 1], [], []>} : vector<16x128xbf16>, vector<128x128xbf16>, vector<16x128xf32> -> vector<16x128xf32>
    %55 = arith.addf %47, %54 : vector<16x128xf32>
    %c2_49 = arith.constant 2 : index
    %c0_50 = arith.constant 0 : index
    %c0_51 = arith.constant 0 : index
    %56 = vector.load %arg4[%c2_49, %c0_50, %c0_51] : memref<4x16x32xbf16, #tpu.memory_space<vmem>>, vector<1x16x32xbf16>
    %57 = vector.shape_cast %56 : vector<1x16x32xbf16> to vector<16x32xbf16>
    %cst_52 = arith.constant dense<0.000000e+00> : vector<16x128xf32>
    %58 = tpu.matmul %57, %40, %cst_52 {dimension_numbers = #tpu.dot_dimension_numbers<[1], [0], [0], [1], [0, 0, 1, 1], [], []>} : vector<16x32xbf16>, vector<32x128xbf16>, vector<16x128xf32> -> vector<16x128xf32>
    %59 = arith.truncf %58 : vector<16x128xf32> to vector<16x128xbf16>
    %c2_53 = arith.constant 2 : index
    %c0_54 = arith.constant 0 : index
    %c0_55 = arith.constant 0 : index
    %60 = vector.load %arg5[%c2_53, %c0_54, %c0_55] : memref<4x128x128xbf16, #tpu.memory_space<vmem>>, vector<1x128x128xbf16>
    %61 = vector.shape_cast %60 : vector<1x128x128xbf16> to vector<128x128xbf16>
    %cst_56 = arith.constant dense<0.000000e+00> : vector<16x128xf32>
    %62 = tpu.matmul %59, %61, %cst_56 {dimension_numbers = #tpu.dot_dimension_numbers<[1], [0], [0], [1], [0, 0, 1, 1], [], []>} : vector<16x128xbf16>, vector<128x128xbf16>, vector<16x128xf32> -> vector<16x128xf32>
    %63 = arith.addf %55, %62 : vector<16x128xf32>
    %c3_57 = arith.constant 3 : index
    %c0_58 = arith.constant 0 : index
    %c0_59 = arith.constant 0 : index
    %64 = vector.load %arg4[%c3_57, %c0_58, %c0_59] : memref<4x16x32xbf16, #tpu.memory_space<vmem>>, vector<1x16x32xbf16>
    %65 = vector.shape_cast %64 : vector<1x16x32xbf16> to vector<16x32xbf16>
    %cst_60 = arith.constant dense<0.000000e+00> : vector<16x128xf32>
    %66 = tpu.matmul %65, %40, %cst_60 {dimension_numbers = #tpu.dot_dimension_numbers<[1], [0], [0], [1], [0, 0, 1, 1], [], []>} : vector<16x32xbf16>, vector<32x128xbf16>, vector<16x128xf32> -> vector<16x128xf32>
    %67 = arith.truncf %66 : vector<16x128xf32> to vector<16x128xbf16>
    %c3_61 = arith.constant 3 : index
    %c0_62 = arith.constant 0 : index
    %c0_63 = arith.constant 0 : index
    %68 = vector.load %arg5[%c3_61, %c0_62, %c0_63] : memref<4x128x128xbf16, #tpu.memory_space<vmem>>, vector<1x128x128xbf16>
    %69 = vector.shape_cast %68 : vector<1x128x128xbf16> to vector<128x128xbf16>
    %cst_64 = arith.constant dense<0.000000e+00> : vector<16x128xf32>
    %70 = tpu.matmul %67, %69, %cst_64 {dimension_numbers = #tpu.dot_dimension_numbers<[1], [0], [0], [1], [0, 0, 1, 1], [], []>} : vector<16x128xbf16>, vector<128x128xbf16>, vector<16x128xf32> -> vector<16x128xf32>
    %71 = arith.addf %63, %70 : vector<16x128xf32>
    %c0_65 = arith.constant 0 : index
    %c0_66 = arith.constant 0 : index
    %72 = vector.load %arg6[%c0_65, %c0_66] : memref<1x128xf32, #tpu.memory_space<vmem>>, vector<1x128xf32>
    %73 = vector.broadcast %72 : vector<1x128xf32> to vector<16x128xf32>
    %74 = arith.addf %71, %73 : vector<16x128xf32>
    %cst_67 = arith.constant 0.000000e+00 : f32
    %75 = vector.broadcast %cst_67 : f32 to vector<16x128xf32>
    %76 = arith.cmpf ogt, %74, %75 : vector<16x128xf32>
    %cst_68 = arith.constant 2.000000e-01 : f32
    %77 = vector.broadcast %cst_68 : f32 to vector<16x128xf32>
    %78 = arith.mulf %77, %74 : vector<16x128xf32>
    %79 = arith.select %76, %74, %78 : vector<16x128xi1>, vector<16x128xf32>
    %80 = arith.truncf %79 : vector<16x128xf32> to vector<16x128xbf16>
    %c0_69 = arith.constant 0 : index
    %c0_70 = arith.constant 0 : index
    %c0_71 = arith.constant 0 : index
    %81 = vector.load %arg7[%c0_69, %c0_70, %c0_71] : memref<4x8x16xbf16, #tpu.memory_space<vmem>>, vector<1x8x16xbf16>
    %82 = vector.shape_cast %81 : vector<1x8x16xbf16> to vector<8x16xbf16>
    %cst_72 = arith.constant dense<0.000000e+00> : vector<8x128xf32>
    %83 = tpu.matmul %82, %80, %cst_72 {dimension_numbers = #tpu.dot_dimension_numbers<[1], [0], [0], [1], [0, 0, 1, 1], [], []>} : vector<8x16xbf16>, vector<16x128xbf16>, vector<8x128xf32> -> vector<8x128xf32>
    %84 = arith.truncf %83 : vector<8x128xf32> to vector<8x128xbf16>
    %c0_73 = arith.constant 0 : index
    %c0_74 = arith.constant 0 : index
    %c0_75 = arith.constant 0 : index
    %85 = vector.load %arg8[%c0_73, %c0_74, %c0_75] : memref<4x128x128xbf16, #tpu.memory_space<vmem>>, vector<1x128x128xbf16>
    %86 = vector.shape_cast %85 : vector<1x128x128xbf16> to vector<128x128xbf16>
    %cst_76 = arith.constant dense<0.000000e+00> : vector<8x128xf32>
    %87 = tpu.matmul %84, %86, %cst_76 {dimension_numbers = #tpu.dot_dimension_numbers<[1], [0], [0], [1], [0, 0, 1, 1], [], []>} : vector<8x128xbf16>, vector<128x128xbf16>, vector<8x128xf32> -> vector<8x128xf32>
    %c1_77 = arith.constant 1 : index
    %c0_78 = arith.constant 0 : index
    %c0_79 = arith.constant 0 : index
    %88 = vector.load %arg7[%c1_77, %c0_78, %c0_79] : memref<4x8x16xbf16, #tpu.memory_space<vmem>>, vector<1x8x16xbf16>
    %89 = vector.shape_cast %88 : vector<1x8x16xbf16> to vector<8x16xbf16>
    %cst_80 = arith.constant dense<0.000000e+00> : vector<8x128xf32>
    %90 = tpu.matmul %89, %80, %cst_80 {dimension_numbers = #tpu.dot_dimension_numbers<[1], [0], [0], [1], [0, 0, 1, 1], [], []>} : vector<8x16xbf16>, vector<16x128xbf16>, vector<8x128xf32> -> vector<8x128xf32>
    %91 = arith.truncf %90 : vector<8x128xf32> to vector<8x128xbf16>
    %c1_81 = arith.constant 1 : index
    %c0_82 = arith.constant 0 : index
    %c0_83 = arith.constant 0 : index
    %92 = vector.load %arg8[%c1_81, %c0_82, %c0_83] : memref<4x128x128xbf16, #tpu.memory_space<vmem>>, vector<1x128x128xbf16>
    %93 = vector.shape_cast %92 : vector<1x128x128xbf16> to vector<128x128xbf16>
    %cst_84 = arith.constant dense<0.000000e+00> : vector<8x128xf32>
    %94 = tpu.matmul %91, %93, %cst_84 {dimension_numbers = #tpu.dot_dimension_numbers<[1], [0], [0], [1], [0, 0, 1, 1], [], []>} : vector<8x128xbf16>, vector<128x128xbf16>, vector<8x128xf32> -> vector<8x128xf32>
    %95 = arith.addf %87, %94 : vector<8x128xf32>
    %c2_85 = arith.constant 2 : index
    %c0_86 = arith.constant 0 : index
    %c0_87 = arith.constant 0 : index
    %96 = vector.load %arg7[%c2_85, %c0_86, %c0_87] : memref<4x8x16xbf16, #tpu.memory_space<vmem>>, vector<1x8x16xbf16>
    %97 = vector.shape_cast %96 : vector<1x8x16xbf16> to vector<8x16xbf16>
    %cst_88 = arith.constant dense<0.000000e+00> : vector<8x128xf32>
    %98 = tpu.matmul %97, %80, %cst_88 {dimension_numbers = #tpu.dot_dimension_numbers<[1], [0], [0], [1], [0, 0, 1, 1], [], []>} : vector<8x16xbf16>, vector<16x128xbf16>, vector<8x128xf32> -> vector<8x128xf32>
    %99 = arith.truncf %98 : vector<8x128xf32> to vector<8x128xbf16>
    %c2_89 = arith.constant 2 : index
    %c0_90 = arith.constant 0 : index
    %c0_91 = arith.constant 0 : index
    %100 = vector.load %arg8[%c2_89, %c0_90, %c0_91] : memref<4x128x128xbf16, #tpu.memory_space<vmem>>, vector<1x128x128xbf16>
    %101 = vector.shape_cast %100 : vector<1x128x128xbf16> to vector<128x128xbf16>
    %cst_92 = arith.constant dense<0.000000e+00> : vector<8x128xf32>
    %102 = tpu.matmul %99, %101, %cst_92 {dimension_numbers = #tpu.dot_dimension_numbers<[1], [0], [0], [1], [0, 0, 1, 1], [], []>} : vector<8x128xbf16>, vector<128x128xbf16>, vector<8x128xf32> -> vector<8x128xf32>
    %103 = arith.addf %95, %102 : vector<8x128xf32>
    %c3_93 = arith.constant 3 : index
    %c0_94 = arith.constant 0 : index
    %c0_95 = arith.constant 0 : index
    %104 = vector.load %arg7[%c3_93, %c0_94, %c0_95] : memref<4x8x16xbf16, #tpu.memory_space<vmem>>, vector<1x8x16xbf16>
    %105 = vector.shape_cast %104 : vector<1x8x16xbf16> to vector<8x16xbf16>
    %cst_96 = arith.constant dense<0.000000e+00> : vector<8x128xf32>
    %106 = tpu.matmul %105, %80, %cst_96 {dimension_numbers = #tpu.dot_dimension_numbers<[1], [0], [0], [1], [0, 0, 1, 1], [], []>} : vector<8x16xbf16>, vector<16x128xbf16>, vector<8x128xf32> -> vector<8x128xf32>
    %107 = arith.truncf %106 : vector<8x128xf32> to vector<8x128xbf16>
    %c3_97 = arith.constant 3 : index
    %c0_98 = arith.constant 0 : index
    %c0_99 = arith.constant 0 : index
    %108 = vector.load %arg8[%c3_97, %c0_98, %c0_99] : memref<4x128x128xbf16, #tpu.memory_space<vmem>>, vector<1x128x128xbf16>
    %109 = vector.shape_cast %108 : vector<1x128x128xbf16> to vector<128x128xbf16>
    %cst_100 = arith.constant dense<0.000000e+00> : vector<8x128xf32>
    %110 = tpu.matmul %107, %109, %cst_100 {dimension_numbers = #tpu.dot_dimension_numbers<[1], [0], [0], [1], [0, 0, 1, 1], [], []>} : vector<8x128xbf16>, vector<128x128xbf16>, vector<8x128xf32> -> vector<8x128xf32>
    %111 = arith.addf %103, %110 : vector<8x128xf32>
    %c0_101 = arith.constant 0 : index
    %c0_102 = arith.constant 0 : index
    %112 = vector.load %arg9[%c0_101, %c0_102] : memref<1x128xf32, #tpu.memory_space<vmem>>, vector<1x128xf32>
    %113 = vector.broadcast %112 : vector<1x128xf32> to vector<8x128xf32>
    %114 = arith.addf %111, %113 : vector<8x128xf32>
    %cst_103 = arith.constant 0.000000e+00 : f32
    %115 = vector.broadcast %cst_103 : f32 to vector<8x128xf32>
    %116 = arith.cmpf ogt, %114, %115 : vector<8x128xf32>
    %cst_104 = arith.constant 2.000000e-01 : f32
    %117 = vector.broadcast %cst_104 : f32 to vector<8x128xf32>
    %118 = arith.mulf %117, %114 : vector<8x128xf32>
    %119 = arith.select %116, %114, %118 : vector<8x128xi1>, vector<8x128xf32>
    %120 = arith.truncf %119 : vector<8x128xf32> to vector<8x128xbf16>
    %c0_105 = arith.constant 0 : index
    %c0_106 = arith.constant 0 : index
    %c0_107 = arith.constant 0 : index
    %121 = vector.load %arg10[%c0_105, %c0_106, %c0_107] : memref<4x6x8xbf16, #tpu.memory_space<vmem>>, vector<1x6x8xbf16>
    %122 = vector.shape_cast %121 : vector<1x6x8xbf16> to vector<6x8xbf16>
    %cst_108 = arith.constant dense<0.000000e+00> : vector<6x128xf32>
    %123 = tpu.matmul %122, %120, %cst_108 {dimension_numbers = #tpu.dot_dimension_numbers<[1], [0], [0], [1], [0, 0, 1, 1], [], []>} : vector<6x8xbf16>, vector<8x128xbf16>, vector<6x128xf32> -> vector<6x128xf32>
    %124 = arith.truncf %123 : vector<6x128xf32> to vector<6x128xbf16>
    %c0_109 = arith.constant 0 : index
    %c0_110 = arith.constant 0 : index
    %c0_111 = arith.constant 0 : index
    %125 = vector.load %arg11[%c0_109, %c0_110, %c0_111] : memref<4x128x192xbf16, #tpu.memory_space<vmem>>, vector<1x128x192xbf16>
    %126 = vector.shape_cast %125 : vector<1x128x192xbf16> to vector<128x192xbf16>
    %cst_112 = arith.constant dense<0.000000e+00> : vector<6x192xf32>
    %127 = tpu.matmul %124, %126, %cst_112 {dimension_numbers = #tpu.dot_dimension_numbers<[1], [0], [0], [1], [0, 0, 1, 1], [], []>} : vector<6x128xbf16>, vector<128x192xbf16>, vector<6x192xf32> -> vector<6x192xf32>
    %c1_113 = arith.constant 1 : index
    %c0_114 = arith.constant 0 : index
    %c0_115 = arith.constant 0 : index
    %128 = vector.load %arg10[%c1_113, %c0_114, %c0_115] : memref<4x6x8xbf16, #tpu.memory_space<vmem>>, vector<1x6x8xbf16>
    %129 = vector.shape_cast %128 : vector<1x6x8xbf16> to vector<6x8xbf16>
    %cst_116 = arith.constant dense<0.000000e+00> : vector<6x128xf32>
    %130 = tpu.matmul %129, %120, %cst_116 {dimension_numbers = #tpu.dot_dimension_numbers<[1], [0], [0], [1], [0, 0, 1, 1], [], []>} : vector<6x8xbf16>, vector<8x128xbf16>, vector<6x128xf32> -> vector<6x128xf32>
    %131 = arith.truncf %130 : vector<6x128xf32> to vector<6x128xbf16>
    %c1_117 = arith.constant 1 : index
    %c0_118 = arith.constant 0 : index
    %c0_119 = arith.constant 0 : index
    %132 = vector.load %arg11[%c1_117, %c0_118, %c0_119] : memref<4x128x192xbf16, #tpu.memory_space<vmem>>, vector<1x128x192xbf16>
    %133 = vector.shape_cast %132 : vector<1x128x192xbf16> to vector<128x192xbf16>
    %cst_120 = arith.constant dense<0.000000e+00> : vector<6x192xf32>
    %134 = tpu.matmul %131, %133, %cst_120 {dimension_numbers = #tpu.dot_dimension_numbers<[1], [0], [0], [1], [0, 0, 1, 1], [], []>} : vector<6x128xbf16>, vector<128x192xbf16>, vector<6x192xf32> -> vector<6x192xf32>
    %135 = arith.addf %127, %134 : vector<6x192xf32>
    %c2_121 = arith.constant 2 : index
    %c0_122 = arith.constant 0 : index
    %c0_123 = arith.constant 0 : index
    %136 = vector.load %arg10[%c2_121, %c0_122, %c0_123] : memref<4x6x8xbf16, #tpu.memory_space<vmem>>, vector<1x6x8xbf16>
    %137 = vector.shape_cast %136 : vector<1x6x8xbf16> to vector<6x8xbf16>
    %cst_124 = arith.constant dense<0.000000e+00> : vector<6x128xf32>
    %138 = tpu.matmul %137, %120, %cst_124 {dimension_numbers = #tpu.dot_dimension_numbers<[1], [0], [0], [1], [0, 0, 1, 1], [], []>} : vector<6x8xbf16>, vector<8x128xbf16>, vector<6x128xf32> -> vector<6x128xf32>
    %139 = arith.truncf %138 : vector<6x128xf32> to vector<6x128xbf16>
    %c2_125 = arith.constant 2 : index
    %c0_126 = arith.constant 0 : index
    %c0_127 = arith.constant 0 : index
    %140 = vector.load %arg11[%c2_125, %c0_126, %c0_127] : memref<4x128x192xbf16, #tpu.memory_space<vmem>>, vector<1x128x192xbf16>
    %141 = vector.shape_cast %140 : vector<1x128x192xbf16> to vector<128x192xbf16>
    %cst_128 = arith.constant dense<0.000000e+00> : vector<6x192xf32>
    %142 = tpu.matmul %139, %141, %cst_128 {dimension_numbers = #tpu.dot_dimension_numbers<[1], [0], [0], [1], [0, 0, 1, 1], [], []>} : vector<6x128xbf16>, vector<128x192xbf16>, vector<6x192xf32> -> vector<6x192xf32>
    %143 = arith.addf %135, %142 : vector<6x192xf32>
    %c3_129 = arith.constant 3 : index
    %c0_130 = arith.constant 0 : index
    %c0_131 = arith.constant 0 : index
    %144 = vector.load %arg10[%c3_129, %c0_130, %c0_131] : memref<4x6x8xbf16, #tpu.memory_space<vmem>>, vector<1x6x8xbf16>
    %145 = vector.shape_cast %144 : vector<1x6x8xbf16> to vector<6x8xbf16>
    %cst_132 = arith.constant dense<0.000000e+00> : vector<6x128xf32>
    %146 = tpu.matmul %145, %120, %cst_132 {dimension_numbers = #tpu.dot_dimension_numbers<[1], [0], [0], [1], [0, 0, 1, 1], [], []>} : vector<6x8xbf16>, vector<8x128xbf16>, vector<6x128xf32> -> vector<6x128xf32>
    %147 = arith.truncf %146 : vector<6x128xf32> to vector<6x128xbf16>
    %c3_133 = arith.constant 3 : index
    %c0_134 = arith.constant 0 : index
    %c0_135 = arith.constant 0 : index
    %148 = vector.load %arg11[%c3_133, %c0_134, %c0_135] : memref<4x128x192xbf16, #tpu.memory_space<vmem>>, vector<1x128x192xbf16>
    %149 = vector.shape_cast %148 : vector<1x128x192xbf16> to vector<128x192xbf16>
    %cst_136 = arith.constant dense<0.000000e+00> : vector<6x192xf32>
    %150 = tpu.matmul %147, %149, %cst_136 {dimension_numbers = #tpu.dot_dimension_numbers<[1], [0], [0], [1], [0, 0, 1, 1], [], []>} : vector<6x128xbf16>, vector<128x192xbf16>, vector<6x192xf32> -> vector<6x192xf32>
    %151 = arith.addf %143, %150 : vector<6x192xf32>
    %c0_137 = arith.constant 0 : index
    %c0_138 = arith.constant 0 : index
    %152 = vector.load %arg12[%c0_137, %c0_138] : memref<1x192xf32, #tpu.memory_space<vmem>>, vector<1x192xf32>
    %153 = vector.broadcast %152 : vector<1x192xf32> to vector<6x192xf32>
    %154 = arith.addf %151, %153 : vector<6x192xf32>
    %cst_139 = arith.constant 0.000000e+00 : f32
    %155 = vector.broadcast %cst_139 : f32 to vector<6x192xf32>
    %156 = arith.cmpf ogt, %154, %155 : vector<6x192xf32>
    %cst_140 = arith.constant 2.000000e-01 : f32
    %157 = vector.broadcast %cst_140 : f32 to vector<6x192xf32>
    %158 = arith.mulf %157, %154 : vector<6x192xf32>
    %159 = arith.select %156, %154, %158 : vector<6x192xi1>, vector<6x192xf32>
    %160 = arith.truncf %159 : vector<6x192xf32> to vector<6x192xbf16>
    %c0_141 = arith.constant 0 : index
    %c0_142 = arith.constant 0 : index
    %c0_143 = arith.constant 0 : index
    %161 = vector.load %arg13[%c0_141, %c0_142, %c0_143] : memref<4x4x6xbf16, #tpu.memory_space<vmem>>, vector<1x4x6xbf16>
    %162 = vector.shape_cast %161 : vector<1x4x6xbf16> to vector<4x6xbf16>
    %cst_144 = arith.constant dense<0.000000e+00> : vector<4x192xf32>
    %163 = tpu.matmul %162, %160, %cst_144 {dimension_numbers = #tpu.dot_dimension_numbers<[1], [0], [0], [1], [0, 0, 1, 1], [], []>} : vector<4x6xbf16>, vector<6x192xbf16>, vector<4x192xf32> -> vector<4x192xf32>
    %164 = arith.truncf %163 : vector<4x192xf32> to vector<4x192xbf16>
    %c0_145 = arith.constant 0 : index
    %c0_146 = arith.constant 0 : index
    %c0_147 = arith.constant 0 : index
    %165 = vector.load %arg14[%c0_145, %c0_146, %c0_147] : memref<4x192x2xbf16, #tpu.memory_space<vmem>>, vector<1x192x2xbf16>
    %166 = vector.shape_cast %165 : vector<1x192x2xbf16> to vector<192x2xbf16>
    %cst_148 = arith.constant dense<0.000000e+00> : vector<4x2xf32>
    %167 = tpu.matmul %164, %166, %cst_148 {dimension_numbers = #tpu.dot_dimension_numbers<[1], [0], [0], [1], [0, 0, 1, 1], [], []>} : vector<4x192xbf16>, vector<192x2xbf16>, vector<4x2xf32> -> vector<4x2xf32>
    %c1_149 = arith.constant 1 : index
    %c0_150 = arith.constant 0 : index
    %c0_151 = arith.constant 0 : index
    %168 = vector.load %arg13[%c1_149, %c0_150, %c0_151] : memref<4x4x6xbf16, #tpu.memory_space<vmem>>, vector<1x4x6xbf16>
    %169 = vector.shape_cast %168 : vector<1x4x6xbf16> to vector<4x6xbf16>
    %cst_152 = arith.constant dense<0.000000e+00> : vector<4x192xf32>
    %170 = tpu.matmul %169, %160, %cst_152 {dimension_numbers = #tpu.dot_dimension_numbers<[1], [0], [0], [1], [0, 0, 1, 1], [], []>} : vector<4x6xbf16>, vector<6x192xbf16>, vector<4x192xf32> -> vector<4x192xf32>
    %171 = arith.truncf %170 : vector<4x192xf32> to vector<4x192xbf16>
    %c1_153 = arith.constant 1 : index
    %c0_154 = arith.constant 0 : index
    %c0_155 = arith.constant 0 : index
    %172 = vector.load %arg14[%c1_153, %c0_154, %c0_155] : memref<4x192x2xbf16, #tpu.memory_space<vmem>>, vector<1x192x2xbf16>
    %173 = vector.shape_cast %172 : vector<1x192x2xbf16> to vector<192x2xbf16>
    %cst_156 = arith.constant dense<0.000000e+00> : vector<4x2xf32>
    %174 = tpu.matmul %171, %173, %cst_156 {dimension_numbers = #tpu.dot_dimension_numbers<[1], [0], [0], [1], [0, 0, 1, 1], [], []>} : vector<4x192xbf16>, vector<192x2xbf16>, vector<4x2xf32> -> vector<4x2xf32>
    %175 = arith.addf %167, %174 : vector<4x2xf32>
    %c2_157 = arith.constant 2 : index
    %c0_158 = arith.constant 0 : index
    %c0_159 = arith.constant 0 : index
    %176 = vector.load %arg13[%c2_157, %c0_158, %c0_159] : memref<4x4x6xbf16, #tpu.memory_space<vmem>>, vector<1x4x6xbf16>
    %177 = vector.shape_cast %176 : vector<1x4x6xbf16> to vector<4x6xbf16>
    %cst_160 = arith.constant dense<0.000000e+00> : vector<4x192xf32>
    %178 = tpu.matmul %177, %160, %cst_160 {dimension_numbers = #tpu.dot_dimension_numbers<[1], [0], [0], [1], [0, 0, 1, 1], [], []>} : vector<4x6xbf16>, vector<6x192xbf16>, vector<4x192xf32> -> vector<4x192xf32>
    %179 = arith.truncf %178 : vector<4x192xf32> to vector<4x192xbf16>
    %c2_161 = arith.constant 2 : index
    %c0_162 = arith.constant 0 : index
    %c0_163 = arith.constant 0 : index
    %180 = vector.load %arg14[%c2_161, %c0_162, %c0_163] : memref<4x192x2xbf16, #tpu.memory_space<vmem>>, vector<1x192x2xbf16>
    %181 = vector.shape_cast %180 : vector<1x192x2xbf16> to vector<192x2xbf16>
    %cst_164 = arith.constant dense<0.000000e+00> : vector<4x2xf32>
    %182 = tpu.matmul %179, %181, %cst_164 {dimension_numbers = #tpu.dot_dimension_numbers<[1], [0], [0], [1], [0, 0, 1, 1], [], []>} : vector<4x192xbf16>, vector<192x2xbf16>, vector<4x2xf32> -> vector<4x2xf32>
    %183 = arith.addf %175, %182 : vector<4x2xf32>
    %c3_165 = arith.constant 3 : index
    %c0_166 = arith.constant 0 : index
    %c0_167 = arith.constant 0 : index
    %184 = vector.load %arg13[%c3_165, %c0_166, %c0_167] : memref<4x4x6xbf16, #tpu.memory_space<vmem>>, vector<1x4x6xbf16>
    %185 = vector.shape_cast %184 : vector<1x4x6xbf16> to vector<4x6xbf16>
    %cst_168 = arith.constant dense<0.000000e+00> : vector<4x192xf32>
    %186 = tpu.matmul %185, %160, %cst_168 {dimension_numbers = #tpu.dot_dimension_numbers<[1], [0], [0], [1], [0, 0, 1, 1], [], []>} : vector<4x6xbf16>, vector<6x192xbf16>, vector<4x192xf32> -> vector<4x192xf32>
    %187 = arith.truncf %186 : vector<4x192xf32> to vector<4x192xbf16>
    %c3_169 = arith.constant 3 : index
    %c0_170 = arith.constant 0 : index
    %c0_171 = arith.constant 0 : index
    %188 = vector.load %arg14[%c3_169, %c0_170, %c0_171] : memref<4x192x2xbf16, #tpu.memory_space<vmem>>, vector<1x192x2xbf16>
    %189 = vector.shape_cast %188 : vector<1x192x2xbf16> to vector<192x2xbf16>
    %cst_172 = arith.constant dense<0.000000e+00> : vector<4x2xf32>
    %190 = tpu.matmul %187, %189, %cst_172 {dimension_numbers = #tpu.dot_dimension_numbers<[1], [0], [0], [1], [0, 0, 1, 1], [], []>} : vector<4x192xbf16>, vector<192x2xbf16>, vector<4x2xf32> -> vector<4x2xf32>
    %191 = arith.addf %183, %190 : vector<4x2xf32>
    %c0_173 = arith.constant 0 : index
    %c0_174 = arith.constant 0 : index
    %192 = vector.load %arg15[%c0_173, %c0_174] : memref<1x2xf32, #tpu.memory_space<vmem>>, vector<1x2xf32>
    %193 = vector.broadcast %192 : vector<1x2xf32> to vector<4x2xf32>
    %194 = arith.addf %191, %193 : vector<4x2xf32>
    %c0_175 = arith.constant 0 : index
    %c0_176 = arith.constant 0 : index
    %195 = vector.load %arg16[%c0_175, %c0_176] : memref<4x2xf32, #tpu.memory_space<vmem>>, vector<4x2xf32>
    tpu.vector_store %arg16[%c0_175, %c0_176], %194 {strides = array<i32>} : memref<4x2xf32, #tpu.memory_space<vmem>>, vector<4x2xf32>,
    return
  }
}

</mosaic_0001>

<llo_original>
// kernel: disc_forward.1
$region0: #{disc_forward.1}
  #allocation0 [shape = 'u32[]', space=smem, size = 0x4, offset = 0x4, fixed_abs, tag = 'smem constant byte address 0x4 - core index']
  #allocation1 [shape = 'u32[72,128]{1,0:T(1,128)}', space=vmem, size = 0x9000, scoped, tag = 'internal scratch']
  %s0 = inlined_call_operand.vmem [shape: bf16[64,192], index: 0, kind: input, shape index: {}]
  %s1 = inlined_call_operand.vmem [shape: bf16[4,32,64], index: 1, kind: input, shape index: {}]
  %s2 = inlined_call_operand.vmem [shape: bf16[4,192,128], index: 2, kind: input, shape index: {}]
  %s3 = inlined_call_operand.vmem [shape: f32[1,128], index: 3, kind: input, shape index: {}]
  %s4 = inlined_call_operand.vmem [shape: bf16[4,16,32], index: 4, kind: input, shape index: {}]
  %s5 = inlined_call_operand.vmem [shape: bf16[4,128,128], index: 5, kind: input, shape index: {}]
  %s6 = inlined_call_operand.vmem [shape: f32[1,128], index: 6, kind: input, shape index: {}]
  %s7 = inlined_call_operand.vmem [shape: bf16[4,8,16], index: 7, kind: input, shape index: {}]
  %s8 = inlined_call_operand.vmem [shape: bf16[4,128,128], index: 8, kind: input, shape index: {}]
  %s9 = inlined_call_operand.vmem [shape: f32[1,128], index: 9, kind: input, shape index: {}]
  %s10 = inlined_call_operand.vmem [shape: bf16[4,6,8], index: 10, kind: input, shape index: {}]
  %s11 = inlined_call_operand.vmem [shape: bf16[4,128,192], index: 11, kind: input, shape index: {}]
  %s12 = inlined_call_operand.vmem [shape: f32[1,192], index: 12, kind: input, shape index: {}]
  %s13 = inlined_call_operand.vmem [shape: bf16[4,4,6], index: 13, kind: input, shape index: {}]
  %s14 = inlined_call_operand.vmem [shape: bf16[4,192,2], index: 14, kind: input, shape index: {}]
  %s15 = inlined_call_operand.vmem [shape: f32[1,2], index: 15, kind: input, shape index: {}]
  %s16 = inlined_call_operand.hbm [shape: f32[4,2], index: 16, kind: output, shape index: {}]
  %s17 = sld [smem:[#allocation0]]
  $region74: #{disc_forward.1} parent=0
    _
  %s19 = ssub.s32 1, %s17
  %s20 = scalar_select 0, %s19, %s17
  $region1: #{disc_forward.1} parent=0
    #allocation2 [shape = 'u8[2048]{0}', space=vmem, size = 0x800, scoped, tag = 'output window, operand 0, single buffered']
    #allocation3 [shape = 's32[1]{0}', space=sflag, size = 0x4, scoped, tag = 'scoped memory for disc_forward.1']
    %21 = vsyncpa [#allocation3], 0
    // Predicated region
    $region2: #{disc_forward.1} parent=1 // pred_check
      _
    $region3: #{disc_forward.1} parent=1 // pred_check_branch
      %23 = sbr.rel (0) target = $region5
    $region4: #{disc_forward.1} parent=1 // pred_region
      _
    $region5: #{disc_forward.1} parent=1 // pred_fallthru
      _
    // Predicated region
    $region6: #{disc_forward.1} parent=1 // pred_check
      _
    $region7: #{disc_forward.1} parent=1 // pred_check_branch
      %25 = sbr.rel (0) target = $region9
    $region8: #{disc_forward.1} parent=1 // pred_region
      _
    $region9: #{disc_forward.1} parent=1 // pred_fallthru
      _
    // Predicated region
    $region10: #{disc_forward.1} parent=1 // pred_check
      _
    $region11: #{disc_forward.1} parent=1 // pred_check_branch
      %27 = sbr.rel (0) target = $region13
    $region12: #{disc_forward.1} parent=1 // pred_region
      _
    $region13: #{disc_forward.1} parent=1 // pred_fallthru
      _
    // Predicated region
    $region14: #{disc_forward.1} parent=1 // pred_check
      _
    $region15: #{disc_forward.1} parent=1 // pred_check_branch
      %29 = sbr.rel (0) target = $region17
    $region16: #{disc_forward.1} parent=1 // pred_region
      _
    $region17: #{disc_forward.1} parent=1 // pred_fallthru
      _
    // Predicated region
    $region18: #{disc_forward.1} parent=1 // pred_check
      _
    $region19: #{disc_forward.1} parent=1 // pred_check_branch
      %31 = sbr.rel (0) target = $region21
    $region20: #{disc_forward.1} parent=1 // pred_region
      _
    $region21: #{disc_forward.1} parent=1 // pred_fallthru
      _
    // Predicated region
    $region22: #{disc_forward.1} parent=1 // pred_check
      _
    $region23: #{disc_forward.1} parent=1 // pred_check_branch
      %33 = sbr.rel (0) target = $region25
    $region24: #{disc_forward.1} parent=1 // pred_region
      _
    $region25: #{disc_forward.1} parent=1 // pred_fallthru
      _
    // Predicated region
    $region26: #{disc_forward.1} parent=1 // pred_check
      _
    $region27: #{disc_forward.1} parent=1 // pred_check_branch
      %35 = sbr.rel (0) target = $region29
    $region28: #{disc_forward.1} parent=1 // pred_region
      _
    $region29: #{disc_forward.1} parent=1 // pred_fallthru
      _
    // Predicated region
    $region30: #{disc_forward.1} parent=1 // pred_check
      _
    $region31: #{disc_forward.1} parent=1 // pred_check_branch
      %37 = sbr.rel (0) target = $region33
    $region32: #{disc_forward.1} parent=1 // pred_region
      _
    $region33: #{disc_forward.1} parent=1 // pred_fallthru
      _
    // Predicated region
    $region34: #{disc_forward.1} parent=1 // pred_check
      _
    $region35: #{disc_forward.1} parent=1 // pred_check_branch
      %39 = sbr.rel (0) target = $region37
    $region36: #{disc_forward.1} parent=1 // pred_region
      _
    $region37: #{disc_forward.1} parent=1 // pred_fallthru
      _
    // Predicated region
    $region38: #{disc_forward.1} parent=1 // pred_check
      _
    $region39: #{disc_forward.1} parent=1 // pred_check_branch
      %41 = sbr.rel (0) target = $region41
    $region40: #{disc_forward.1} parent=1 // pred_region
      _
    $region41: #{disc_forward.1} parent=1 // pred_fallthru
      _
    // Predicated region
    $region42: #{disc_forward.1} parent=1 // pred_check
      _
    $region43: #{disc_forward.1} parent=1 // pred_check_branch
      %43 = sbr.rel (0) target = $region45
    $region44: #{disc_forward.1} parent=1 // pred_region
      _
    $region45: #{disc_forward.1} parent=1 // pred_fallthru
      _
    // Predicated region
    $region46: #{disc_forward.1} parent=1 // pred_check
      _
    $region47: #{disc_forward.1} parent=1 // pred_check_branch
      %45 = sbr.rel (0) target = $region49
    $region48: #{disc_forward.1} parent=1 // pred_region
      _
    $region49: #{disc_forward.1} parent=1 // pred_fallthru
      _
    // Predicated region
    $region50: #{disc_forward.1} parent=1 // pred_check
      _
    $region51: #{disc_forward.1} parent=1 // pred_check_branch
      %47 = sbr.rel (0) target = $region53
    $region52: #{disc_forward.1} parent=1 // pred_region
      _
    $region53: #{disc_forward.1} parent=1 // pred_fallthru
      _
    // Predicated region
    $region54: #{disc_forward.1} parent=1 // pred_check
      _
    $region55: #{disc_forward.1} parent=1 // pred_check_branch
      %49 = sbr.rel (0) target = $region57
    $region56: #{disc_forward.1} parent=1 // pred_region
      _
    $region57: #{disc_forward.1} parent=1 // pred_fallthru
      _
    // Predicated region
    $region58: #{disc_forward.1} parent=1 // pred_check
      _
    $region59: #{disc_forward.1} parent=1 // pred_check_branch
      %51 = sbr.rel (0) target = $region61
    $region60: #{disc_forward.1} parent=1 // pred_region
      _
    $region61: #{disc_forward.1} parent=1 // pred_fallthru
      _
    // Predicated region
    $region62: #{disc_forward.1} parent=1 // pred_check
      _
    $region63: #{disc_forward.1} parent=1 // pred_check_branch
      %53 = sbr.rel (0) target = $region65
    $region64: #{disc_forward.1} parent=1 // pred_region
      _
    $region65: #{disc_forward.1} parent=1 // pred_fallthru
      _
    %v55 = vld [vmem:[%s0] sm:$0xff]
    %v56 = vld [vmem:[%s0 + $0x8] sm:$0xff]
    %v57 = vld [vmem:[%s0 + $0x10] sm:$0xff]
    %v58 = vld [vmem:[%s0 + $0x18] sm:$0xff]
    %v59 = vld [vmem:[%s0 + $0x20] sm:$0xff]
    %v60 = vld [vmem:[%s0 + $0x28] sm:$0xff]
    %v61 = vld [vmem:[%s0 + $0x30] sm:$0xff]
    %v62 = vld [vmem:[%s0 + $0x38] sm:$0xff]
    %v63 = vld [vmem:[%s1] sm:$0xf]
    %v64 = vld [vmem:[%s1 + $0x4] sm:$0xf]
    %v65 = vld [vmem:[%s1 + $0x8] sm:$0xf]
    %v66 = vld [vmem:[%s1 + $0xc] sm:$0xf]
    %v71 = vunpack.c.l.b16 %v63
    %v72 = vunpack.c.l.b16 %v64
    %v73 = vunpack.c.l.b16 %v65
    %v74 = vunpack.c.l.b16 %v66
    %v75 = vpack.c.b16 %v72, %v71
    %v76 = vpack.c.b16 %v74, %v73
    %v85 = vunpack.c.l.b16 %v55
    %v86 = vunpack.c.h.b16 %v55
    %v87 = vunpack.c.l.b16 %v56
    %v88 = vunpack.c.h.b16 %v56
    %v89 = vunpack.c.l.b16 %v57
    %v90 = vunpack.c.h.b16 %v57
    %v91 = vunpack.c.l.b16 %v58
    %v92 = vunpack.c.h.b16 %v58
    %v93 = vunpack.c.l.b16 %v59
    %v94 = vunpack.c.h.b16 %v59
    %v95 = vunpack.c.l.b16 %v60
    %v96 = vunpack.c.h.b16 %v60
    %v97 = vunpack.c.l.b16 %v61
    %v98 = vunpack.c.h.b16 %v61
    %v99 = vunpack.c.l.b16 %v62
    %v100 = vunpack.c.h.b16 %v62
    %v101 = vpack.c.b16 %v87, %v85
    %v102 = vpack.c.b16 %v88, %v86
    %v103 = vpack.c.b16 %v91, %v89
    %v104 = vpack.c.b16 %v92, %v90
    %v105 = vpack.c.b16 %v95, %v93
    %v106 = vpack.c.b16 %v96, %v94
    %v107 = vpack.c.b16 %v99, %v97
    %v108 = vpack.c.b16 %v100, %v98
    %vm117 = vcmask 523264
    %v119 = vsel %vm117, %v75, 0
    %v122 = vsel %vm117, %v76, 0
    %124 = vmatpush.bf16.msra.mxu0 0
    %125 = vmatpush.bf16.msra.mxu0 0
    %126 = vmatpush.bf16.msra.mxu0 0
    %127 = vmatpush.bf16.msra.mxu0 0
    %128 = vmatpush.bf16.msra.mxu0 %v107
    %129 = vmatpush.bf16.msra.mxu0 %v105
    %130 = vmatpush.bf16.msra.mxu0 %v103
    %131 = vmatpush.bf16.msra.mxu0 %v101
    %132 = vmatmul.bf16.gmra.mxu0 %v119
    %v133 = vpop.f32.mrf.mxu0
    %v134 = vadd.f32 0.0, %v133
    %v135 = vpop.f32.mrf.mxu0
    %v136 = vadd.f32 0.0, %v135
    %137 = vmatmul.bf16.gmra.mxu0 %v122
    %v138 = vpop.f32.mrf.mxu0
    %v139 = vadd.f32 0.0, %v138
    %v140 = vpop.f32.mrf.mxu0
    %v141 = vadd.f32 0.0, %v140
    %142 = vdwg.mxu0
    %143 = vmatpush.bf16.msra.mxu0 0
    %144 = vmatpush.bf16.msra.mxu0 0
    %145 = vmatpush.bf16.msra.mxu0 0
    %146 = vmatpush.bf16.msra.mxu0 0
    %147 = vmatpush.bf16.msra.mxu0 %v108
    %148 = vmatpush.bf16.msra.mxu0 %v106
    %149 = vmatpush.bf16.msra.mxu0 %v104
    %150 = vmatpush.bf16.msra.mxu0 %v102
    %151 = vmatmul.bf16.gmra.mxu0 %v119
    %v152 = vpop.f32.mrf.mxu0
    %v153 = vadd.f32 0.0, %v152
    %v154 = vpop.f32.mrf.mxu0
    %v155 = vadd.f32 0.0, %v154
    %156 = vmatmul.bf16.gmra.mxu0 %v122
    %v157 = vpop.f32.mrf.mxu0
    %v158 = vadd.f32 0.0, %v157
    %v159 = vpop.f32.mrf.mxu0
    %v160 = vadd.f32 0.0, %v159
    %161 = vdwg.mxu0
    %v162 = vpack.c.bf16 %v136, %v134
    %v163 = vpack.c.bf16 %v155, %v153
    %v164 = vpack.c.bf16 %v141, %v139
    %v165 = vpack.c.bf16 %v160, %v158
    %v166 = vld [vmem:[%s2] sm:$0xf]
    %v167 = vld [vmem:[%s2 + $0x4] sm:$0xf]
    %v168 = vld [vmem:[%s2 + $0x8] sm:$0xf]
    %v169 = vld [vmem:[%s2 + $0xc] sm:$0xf]
    %v170 = vld [vmem:[%s2 + $0x10] sm:$0xf]
    %v171 = vld [vmem:[%s2 + $0x14] sm:$0xf]
    %v172 = vld [vmem:[%s2 + $0x18] sm:$0xf]
    %v173 = vld [vmem:[%s2 + $0x1c] sm:$0xf]
    %v174 = vld [vmem:[%s2 + $0x20] sm:$0xf]
    %v175 = vld [vmem:[%s2 + $0x24] sm:$0xf]
    %v176 = vld [vmem:[%s2 + $0x28] sm:$0xf]
    %v177 = vld [vmem:[%s2 + $0x2c] sm:$0xf]
    %v178 = vld [vmem:[%s2 + $0x30] sm:$0xf]
    %v179 = vld [vmem:[%s2 + $0x34] sm:$0xf]
    %v180 = vld [vmem:[%s2 + $0x38] sm:$0xf]
    %v181 = vld [vmem:[%s2 + $0x3c] sm:$0xf]
    %v182 = vld [vmem:[%s2 + $0x40] sm:$0xf]
    %v183 = vld [vmem:[%s2 + $0x44] sm:$0xf]
    %v184 = vld [vmem:[%s2 + $0x48] sm:$0xf]
    %v185 = vld [vmem:[%s2 + $0x4c] sm:$0xf]
    %v186 = vld [vmem:[%s2 + $0x50] sm:$0xf]
    %v187 = vld [vmem:[%s2 + $0x54] sm:$0xf]
    %v188 = vld [vmem:[%s2 + $0x58] sm:$0xf]
    %v189 = vld [vmem:[%s2 + $0x5c] sm:$0xf]
    %s190 = scalar_lea.vmem %s1, 16
    %v191 = vld [vmem:[%s190] sm:$0xf]
    %v192 = vld [vmem:[%s190 + $0x4] sm:$0xf]
    %v193 = vld [vmem:[%s190 + $0x8] sm:$0xf]
    %v194 = vld [vmem:[%s190 + $0xc] sm:$0xf]
    %v199 = vunpack.c.l.b16 %v191
    %v200 = vunpack.c.l.b16 %v192
    %v201 = vunpack.c.l.b16 %v193
    %v202 = vunpack.c.l.b16 %v194
    %v203 = vpack.c.b16 %v200, %v199
    %v204 = vpack.c.b16 %v202, %v201
    %v206 = vsel %vm117, %v203, 0
    %v209 = vsel %vm117, %v204, 0
    %211 = vmatpush.bf16.msra.mxu0 0
    %212 = vmatpush.bf16.msra.mxu0 0
    %213 = vmatpush.bf16.msra.mxu0 0
    %214 = vmatpush.bf16.msra.mxu0 0
    %215 = vmatpush.bf16.msra.mxu0 %v107
    %216 = vmatpush.bf16.msra.mxu0 %v105
    %217 = vmatpush.bf16.msra.mxu0 %v103
    %218 = vmatpush.bf16.msra.mxu0 %v101
    %219 = vmatmul.bf16.gmra.mxu0 %v206
    %v220 = vpop.f32.mrf.mxu0
    %v221 = vadd.f32 0.0, %v220
    %v222 = vpop.f32.mrf.mxu0
    %v223 = vadd.f32 0.0, %v222
    %224 = vmatmul.bf16.gmra.mxu0 %v209
    %v225 = vpop.f32.mrf.mxu0
    %v226 = vadd.f32 0.0, %v225
    %v227 = vpop.f32.mrf.mxu0
    %v228 = vadd.f32 0.0, %v227
    %229 = vdwg.mxu0
    %230 = vmatpush.bf16.msra.mxu0 0
    %231 = vmatpush.bf16.msra.mxu0 0
    %232 = vmatpush.bf16.msra.mxu0 0
    %233 = vmatpush.bf16.msra.mxu0 0
    %234 = vmatpush.bf16.msra.mxu0 %v108
    %235 = vmatpush.bf16.msra.mxu0 %v106
    %236 = vmatpush.bf16.msra.mxu0 %v104
    %237 = vmatpush.bf16.msra.mxu0 %v102
    %238 = vmatmul.bf16.gmra.mxu0 %v206
    %v239 = vpop.f32.mrf.mxu0
    %v240 = vadd.f32 0.0, %v239
    %v241 = vpop.f32.mrf.mxu0
    %v242 = vadd.f32 0.0, %v241
    %243 = vmatmul.bf16.gmra.mxu0 %v209
    %v244 = vpop.f32.mrf.mxu0
    %v245 = vadd.f32 0.0, %v244
    %v246 = vpop.f32.mrf.mxu0
    %v247 = vadd.f32 0.0, %v246
    %248 = vdwg.mxu0
    %v249 = vpack.c.bf16 %v223, %v221
    %v250 = vpack.c.bf16 %v242, %v240
    %v251 = vpack.c.bf16 %v228, %v226
    %v252 = vpack.c.bf16 %v247, %v245
    %s253 = scalar_lea.vmem %s2, 96
    %v254 = vld [vmem:[%s253] sm:$0xf]
    %v255 = vld [vmem:[%s253 + $0x4] sm:$0xf]
    %v256 = vld [vmem:[%s253 + $0x8] sm:$0xf]
    %v257 = vld [vmem:[%s253 + $0xc] sm:$0xf]
    %v258 = vld [vmem:[%s253 + $0x10] sm:$0xf]
    %v259 = vld [vmem:[%s253 + $0x14] sm:$0xf]
    %v260 = vld [vmem:[%s253 + $0x18] sm:$0xf]
    %v261 = vld [vmem:[%s253 + $0x1c] sm:$0xf]
    %v262 = vld [vmem:[%s253 + $0x20] sm:$0xf]
    %v263 = vld [vmem:[%s253 + $0x24] sm:$0xf]
    %v264 = vld [vmem:[%s253 + $0x28] sm:$0xf]
    %v265 = vld [vmem:[%s253 + $0x2c] sm:$0xf]
    %v266 = vld [vmem:[%s253 + $0x30] sm:$0xf]
    %v267 = vld [vmem:[%s253 + $0x34] sm:$0xf]
    %v268 = vld [vmem:[%s253 + $0x38] sm:$0xf]
    %v269 = vld [vmem:[%s253 + $0x3c] sm:$0xf]
    %v270 = vld [vmem:[%s253 + $0x40] sm:$0xf]
    %v271 = vld [vmem:[%s253 + $0x44] sm:$0xf]
    %v272 = vld [vmem:[%s253 + $0x48] sm:$0xf]
    %v273 = vld [vmem:[%s253 + $0x4c] sm:$0xf]
    %v274 = vld [vmem:[%s253 + $0x50] sm:$0xf]
    %v275 = vld [vmem:[%s253 + $0x54] sm:$0xf]
    %v276 = vld [vmem:[%s253 + $0x58] sm:$0xf]
    %v277 = vld [vmem:[%s253 + $0x5c] sm:$0xf]
    %v302 = vunpack.c.l.b16 %v254
    %v303 = vunpack.c.l.b16 %v255
    %v304 = vunpack.c.l.b16 %v256
    %v305 = vunpack.c.l.b16 %v257
    %v306 = vunpack.c.l.b16 %v258
    %v307 = vunpack.c.l.b16 %v259
    %v308 = vunpack.c.l.b16 %v260
    %v309 = vunpack.c.l.b16 %v261
    %v310 = vunpack.c.l.b16 %v262
    %v311 = vunpack.c.l.b16 %v263
    %v312 = vunpack.c.l.b16 %v264
    %v313 = vunpack.c.l.b16 %v265
    %v314 = vunpack.c.l.b16 %v266
    %v315 = vunpack.c.l.b16 %v267
    %v316 = vunpack.c.l.b16 %v268
    %v317 = vunpack.c.l.b16 %v269
    %v318 = vunpack.c.l.b16 %v270
    %v319 = vunpack.c.l.b16 %v271
    %v320 = vunpack.c.l.b16 %v272
    %v321 = vunpack.c.l.b16 %v273
    %v322 = vunpack.c.l.b16 %v274
    %v323 = vunpack.c.l.b16 %v275
    %v324 = vunpack.c.l.b16 %v276
    %v325 = vunpack.c.l.b16 %v277
    %v326 = vpack.c.b16 %v303, %v302
    %v327 = vpack.c.b16 %v305, %v304
    %v328 = vpack.c.b16 %v307, %v306
    %v329 = vpack.c.b16 %v309, %v308
    %v330 = vpack.c.b16 %v311, %v310
    %v331 = vpack.c.b16 %v313, %v312
    %v332 = vpack.c.b16 %v315, %v314
    %v333 = vpack.c.b16 %v317, %v316
    %v334 = vpack.c.b16 %v319, %v318
    %v335 = vpack.c.b16 %v321, %v320
    %v336 = vpack.c.b16 %v323, %v322
    %v337 = vpack.c.b16 %v325, %v324
    %v351 = vsel %vm117, %v250, 0
    %v354 = vsel %vm117, %v252, 0
    %356 = vmatpush.bf16.msra.mxu0 %v333
    %357 = vmatpush.bf16.msra.mxu0 %v332
    %358 = vmatpush.bf16.msra.mxu0 %v331
    %359 = vmatpush.bf16.msra.mxu0 %v330
    %360 = vmatpush.bf16.msra.mxu0 %v329
    %361 = vmatpush.bf16.msra.mxu0 %v328
    %362 = vmatpush.bf16.msra.mxu0 %v327
    %363 = vmatpush.bf16.msra.mxu0 %v326
    %364 = vmatmul.bf16.gmra.mxu0 %v249
    %v365 = vpop.f32.mrf.mxu0
    %v366 = vadd.f32 0.0, %v365
    %v367 = vpop.f32.mrf.mxu0
    %v368 = vadd.f32 0.0, %v367
    %369 = vmatmul.bf16.gmra.mxu0 %v251
    %v370 = vpop.f32.mrf.mxu0
    %v371 = vadd.f32 0.0, %v370
    %v372 = vpop.f32.mrf.mxu0
    %v373 = vadd.f32 0.0, %v372
    %374 = vdwg.mxu0
    %375 = vmatpush.bf16.msra.mxu0 0
    %376 = vmatpush.bf16.msra.mxu0 0
    %377 = vmatpush.bf16.msra.mxu0 0
    %378 = vmatpush.bf16.msra.mxu0 0
    %379 = vmatpush.bf16.msra.mxu0 %v337
    %380 = vmatpush.bf16.msra.mxu0 %v336
    %381 = vmatpush.bf16.msra.mxu0 %v335
    %382 = vmatpush.bf16.msra.mxu0 %v334
    %383 = vmatmul.bf16.gmra.mxu0 %v351
    %v384 = vpop.f32.mrf.mxu0
    %v385 = vadd.f32 %v366, %v384
    %v386 = vpop.f32.mrf.mxu0
    %v387 = vadd.f32 %v368, %v386
    %388 = vmatmul.bf16.gmra.mxu0 %v354
    %v389 = vpop.f32.mrf.mxu0
    %v390 = vadd.f32 %v371, %v389
    %v391 = vpop.f32.mrf.mxu0
    %v392 = vadd.f32 %v373, %v391
    %393 = vdwg.mxu0
    %v418 = vunpack.c.l.b16 %v166
    %v419 = vunpack.c.l.b16 %v167
    %v420 = vunpack.c.l.b16 %v168
    %v421 = vunpack.c.l.b16 %v169
    %v422 = vunpack.c.l.b16 %v170
    %v423 = vunpack.c.l.b16 %v171
    %v424 = vunpack.c.l.b16 %v172
    %v425 = vunpack.c.l.b16 %v173
    %v426 = vunpack.c.l.b16 %v174
    %v427 = vunpack.c.l.b16 %v175
    %v428 = vunpack.c.l.b16 %v176
    %v429 = vunpack.c.l.b16 %v177
    %v430 = vunpack.c.l.b16 %v178
    %v431 = vunpack.c.l.b16 %v179
    %v432 = vunpack.c.l.b16 %v180
    %v433 = vunpack.c.l.b16 %v181
    %v434 = vunpack.c.l.b16 %v182
    %v435 = vunpack.c.l.b16 %v183
    %v436 = vunpack.c.l.b16 %v184
    %v437 = vunpack.c.l.b16 %v185
    %v438 = vunpack.c.l.b16 %v186
    %v439 = vunpack.c.l.b16 %v187
    %v440 = vunpack.c.l.b16 %v188
    %v441 = vunpack.c.l.b16 %v189
    %v442 = vpack.c.b16 %v419, %v418
    %v443 = vpack.c.b16 %v421, %v420
    %v444 = vpack.c.b16 %v423, %v422
    %v445 = vpack.c.b16 %v425, %v424
    %v446 = vpack.c.b16 %v427, %v426
    %v447 = vpack.c.b16 %v429, %v428
    %v448 = vpack.c.b16 %v431, %v430
    %v449 = vpack.c.b16 %v433, %v432
    %v450 = vpack.c.b16 %v435, %v434
    %v451 = vpack.c.b16 %v437, %v436
    %v452 = vpack.c.b16 %v439, %v438
    %v453 = vpack.c.b16 %v441, %v440
    %v467 = vsel %vm117, %v163, 0
    %v470 = vsel %vm117, %v165, 0
    %472 = vmatpush.bf16.msra.mxu0 %v449
    %473 = vmatpush.bf16.msra.mxu0 %v448
    %474 = vmatpush.bf16.msra.mxu0 %v447
    %475 = vmatpush.bf16.msra.mxu0 %v446
    %476 = vmatpush.bf16.msra.mxu0 %v445
    %477 = vmatpush.bf16.msra.mxu0 %v444
    %478 = vmatpush.bf16.msra.mxu0 %v443
    %479 = vmatpush.bf16.msra.mxu0 %v442
    %480 = vmatmul.bf16.gmra.mxu0 %v162
    %v481 = vpop.f32.mrf.mxu0
    %v482 = vadd.f32 %v385, %v481
    %v483 = vpop.f32.mrf.mxu0
    %v484 = vadd.f32 %v387, %v483
    %485 = vmatmul.bf16.gmra.mxu0 %v164
    %v486 = vpop.f32.mrf.mxu0
    %v487 = vadd.f32 %v390, %v486
    %v488 = vpop.f32.mrf.mxu0
    %v489 = vadd.f32 %v392, %v488
    %490 = vdwg.mxu0
    %491 = vmatpush.bf16.msra.mxu0 0
    %492 = vmatpush.bf16.msra.mxu0 0
    %493 = vmatpush.bf16.msra.mxu0 0
    %494 = vmatpush.bf16.msra.mxu0 0
    %495 = vmatpush.bf16.msra.mxu0 %v453
    %496 = vmatpush.bf16.msra.mxu0 %v452
    %497 = vmatpush.bf16.msra.mxu0 %v451
    %498 = vmatpush.bf16.msra.mxu0 %v450
    %499 = vmatmul.bf16.gmra.mxu0 %v467
    %v500 = vpop.f32.mrf.mxu0
    %v501 = vadd.f32 %v482, %v500
    %v502 = vpop.f32.mrf.mxu0
    %v503 = vadd.f32 %v484, %v502
    %504 = vmatmul.bf16.gmra.mxu0 %v470
    %v505 = vpop.f32.mrf.mxu0
    %v506 = vadd.f32 %v487, %v505
    %v507 = vpop.f32.mrf.mxu0
    %v508 = vadd.f32 %v489, %v507
    %509 = vdwg.mxu0
    %s510 = scalar_lea.vmem %s1, 32
    %v511 = vld [vmem:[%s510] sm:$0xf]
    %v512 = vld [vmem:[%s510 + $0x4] sm:$0xf]
    %v513 = vld [vmem:[%s510 + $0x8] sm:$0xf]
    %v514 = vld [vmem:[%s510 + $0xc] sm:$0xf]
    %v519 = vunpack.c.l.b16 %v511
    %v520 = vunpack.c.l.b16 %v512
    %v521 = vunpack.c.l.b16 %v513
    %v522 = vunpack.c.l.b16 %v514
    %v523 = vpack.c.b16 %v520, %v519
    %v524 = vpack.c.b16 %v522, %v521
    %v526 = vsel %vm117, %v523, 0
    %v529 = vsel %vm117, %v524, 0
    %531 = vmatpush.bf16.msra.mxu0 0
    %532 = vmatpush.bf16.msra.mxu0 0
    %533 = vmatpush.bf16.msra.mxu0 0
    %534 = vmatpush.bf16.msra.mxu0 0
    %535 = vmatpush.bf16.msra.mxu0 %v107
    %536 = vmatpush.bf16.msra.mxu0 %v105
    %537 = vmatpush.bf16.msra.mxu0 %v103
    %538 = vmatpush.bf16.msra.mxu0 %v101
    %539 = vmatmul.bf16.gmra.mxu0 %v526
    %v540 = vpop.f32.mrf.mxu0
    %v541 = vadd.f32 0.0, %v540
    %v542 = vpop.f32.mrf.mxu0
    %v543 = vadd.f32 0.0, %v542
    %544 = vmatmul.bf16.gmra.mxu0 %v529
    %v545 = vpop.f32.mrf.mxu0
    %v546 = vadd.f32 0.0, %v545
    %v547 = vpop.f32.mrf.mxu0
    %v548 = vadd.f32 0.0, %v547
    %549 = vdwg.mxu0
    %550 = vmatpush.bf16.msra.mxu0 0
    %551 = vmatpush.bf16.msra.mxu0 0
    %552 = vmatpush.bf16.msra.mxu0 0
    %553 = vmatpush.bf16.msra.mxu0 0
    %554 = vmatpush.bf16.msra.mxu0 %v108
    %555 = vmatpush.bf16.msra.mxu0 %v106
    %556 = vmatpush.bf16.msra.mxu0 %v104
    %557 = vmatpush.bf16.msra.mxu0 %v102
    %558 = vmatmul.bf16.gmra.mxu0 %v526
    %v559 = vpop.f32.mrf.mxu0
    %v560 = vadd.f32 0.0, %v559
    %v561 = vpop.f32.mrf.mxu0
    %v562 = vadd.f32 0.0, %v561
    %563 = vmatmul.bf16.gmra.mxu0 %v529
    %v564 = vpop.f32.mrf.mxu0
    %v565 = vadd.f32 0.0, %v564
    %v566 = vpop.f32.mrf.mxu0
    %v567 = vadd.f32 0.0, %v566
    %568 = vdwg.mxu0
    %v569 = vpack.c.bf16 %v543, %v541
    %v570 = vpack.c.bf16 %v562, %v560
    %v571 = vpack.c.bf16 %v548, %v546
    %v572 = vpack.c.bf16 %v567, %v565
    %s573 = scalar_lea.vmem %s2, 192
    %v574 = vld [vmem:[%s573] sm:$0xf]
    %v575 = vld [vmem:[%s573 + $0x4] sm:$0xf]
    %v576 = vld [vmem:[%s573 + $0x8] sm:$0xf]
    %v577 = vld [vmem:[%s573 + $0xc] sm:$0xf]
    %v578 = vld [vmem:[%s573 + $0x10] sm:$0xf]
    %v579 = vld [vmem:[%s573 + $0x14] sm:$0xf]
    %v580 = vld [vmem:[%s573 + $0x18] sm:$0xf]
    %v581 = vld [vmem:[%s573 + $0x1c] sm:$0xf]
    %v582 = vld [vmem:[%s573 + $0x20] sm:$0xf]
    %v583 = vld [vmem:[%s573 + $0x24] sm:$0xf]
    %v584 = vld [vmem:[%s573 + $0x28] sm:$0xf]
    %v585 = vld [vmem:[%s573 + $0x2c] sm:$0xf]
    %v586 = vld [vmem:[%s573 + $0x30] sm:$0xf]
    %v587 = vld [vmem:[%s573 + $0x34] sm:$0xf]
    %v588 = vld [vmem:[%s573 + $0x38] sm:$0xf]
    %v589 = vld [vmem:[%s573 + $0x3c] sm:$0xf]
    %v590 = vld [vmem:[%s573 + $0x40] sm:$0xf]
    %v591 = vld [vmem:[%s573 + $0x44] sm:$0xf]
    %v592 = vld [vmem:[%s573 + $0x48] sm:$0xf]
    %v593 = vld [vmem:[%s573 + $0x4c] sm:$0xf]
    %v594 = vld [vmem:[%s573 + $0x50] sm:$0xf]
    %v595 = vld [vmem:[%s573 + $0x54] sm:$0xf]
    %v596 = vld [vmem:[%s573 + $0x58] sm:$0xf]
    %v597 = vld [vmem:[%s573 + $0x5c] sm:$0xf]
    %v622 = vunpack.c.l.b16 %v574
    %v623 = vunpack.c.l.b16 %v575
    %v624 = vunpack.c.l.b16 %v576
    %v625 = vunpack.c.l.b16 %v577
    %v626 = vunpack.c.l.b16 %v578
    %v627 = vunpack.c.l.b16 %v579
    %v628 = vunpack.c.l.b16 %v580
    %v629 = vunpack.c.l.b16 %v581
    %v630 = vunpack.c.l.b16 %v582
    %v631 = vunpack.c.l.b16 %v583
    %v632 = vunpack.c.l.b16 %v584
    %v633 = vunpack.c.l.b16 %v585
    %v634 = vunpack.c.l.b16 %v586
    %v635 = vunpack.c.l.b16 %v587
    %v636 = vunpack.c.l.b16 %v588
    %v637 = vunpack.c.l.b16 %v589
    %v638 = vunpack.c.l.b16 %v590
    %v639 = vunpack.c.l.b16 %v591
    %v640 = vunpack.c.l.b16 %v592
    %v641 = vunpack.c.l.b16 %v593
    %v642 = vunpack.c.l.b16 %v594
    %v643 = vunpack.c.l.b16 %v595
    %v644 = vunpack.c.l.b16 %v596
    %v645 = vunpack.c.l.b16 %v597
    %v646 = vpack.c.b16 %v623, %v622
    %v647 = vpack.c.b16 %v625, %v624
    %v648 = vpack.c.b16 %v627, %v626
    %v649 = vpack.c.b16 %v629, %v628
    %v650 = vpack.c.b16 %v631, %v630
    %v651 = vpack.c.b16 %v633, %v632
    %v652 = vpack.c.b16 %v635, %v634
    %v653 = vpack.c.b16 %v637, %v636
    %v654 = vpack.c.b16 %v639, %v638
    %v655 = vpack.c.b16 %v641, %v640
    %v656 = vpack.c.b16 %v643, %v642
    %v657 = vpack.c.b16 %v645, %v644
    %v671 = vsel %vm117, %v570, 0
    %v674 = vsel %vm117, %v572, 0
    %676 = vmatpush.bf16.msra.mxu0 %v653
    %677 = vmatpush.bf16.msra.mxu0 %v652
    %678 = vmatpush.bf16.msra.mxu0 %v651
    %679 = vmatpush.bf16.msra.mxu0 %v650
    %680 = vmatpush.bf16.msra.mxu0 %v649
    %681 = vmatpush.bf16.msra.mxu0 %v648
    %682 = vmatpush.bf16.msra.mxu0 %v647
    %683 = vmatpush.bf16.msra.mxu0 %v646
    %684 = vmatmul.bf16.gmra.mxu0 %v569
    %v685 = vpop.f32.mrf.mxu0
    %v686 = vadd.f32 0.0, %v685
    %v687 = vpop.f32.mrf.mxu0
    %v688 = vadd.f32 0.0, %v687
    %689 = vmatmul.bf16.gmra.mxu0 %v571
    %v690 = vpop.f32.mrf.mxu0
    %v691 = vadd.f32 0.0, %v690
    %v692 = vpop.f32.mrf.mxu0
    %v693 = vadd.f32 0.0, %v692
    %694 = vdwg.mxu0
    %695 = vmatpush.bf16.msra.mxu0 0
    %696 = vmatpush.bf16.msra.mxu0 0
    %697 = vmatpush.bf16.msra.mxu0 0
    %698 = vmatpush.bf16.msra.mxu0 0
    %699 = vmatpush.bf16.msra.mxu0 %v657
    %700 = vmatpush.bf16.msra.mxu0 %v656
    %701 = vmatpush.bf16.msra.mxu0 %v655
    %702 = vmatpush.bf16.msra.mxu0 %v654
    %703 = vmatmul.bf16.gmra.mxu0 %v671
    %v704 = vpop.f32.mrf.mxu0
    %v705 = vadd.f32 %v686, %v704
    %v706 = vpop.f32.mrf.mxu0
    %v707 = vadd.f32 %v688, %v706
    %708 = vmatmul.bf16.gmra.mxu0 %v674
    %v709 = vpop.f32.mrf.mxu0
    %v710 = vadd.f32 %v691, %v709
    %v711 = vpop.f32.mrf.mxu0
    %v712 = vadd.f32 %v693, %v711
    %713 = vdwg.mxu0
    %v714 = vadd.f32 %v501, %v705
    %v715 = vadd.f32 %v503, %v707
    %v716 = vadd.f32 %v506, %v710
    %v717 = vadd.f32 %v508, %v712
    %s718 = scalar_lea.vmem %s1, 48
    %v719 = vld [vmem:[%s718] sm:$0xf]
    %v720 = vld [vmem:[%s718 + $0x4] sm:$0xf]
    %v721 = vld [vmem:[%s718 + $0x8] sm:$0xf]
    %v722 = vld [vmem:[%s718 + $0xc] sm:$0xf]
    %v727 = vunpack.c.l.b16 %v719
    %v728 = vunpack.c.l.b16 %v720
    %v729 = vunpack.c.l.b16 %v721
    %v730 = vunpack.c.l.b16 %v722
    %v731 = vpack.c.b16 %v728, %v727
    %v732 = vpack.c.b16 %v730, %v729
    %v734 = vsel %vm117, %v731, 0
    %v737 = vsel %vm117, %v732, 0
    %739 = vmatpush.bf16.msra.mxu0 0
    %740 = vmatpush.bf16.msra.mxu0 0
    %741 = vmatpush.bf16.msra.mxu0 0
    %742 = vmatpush.bf16.msra.mxu0 0
    %743 = vmatpush.bf16.msra.mxu0 %v107
    %744 = vmatpush.bf16.msra.mxu0 %v105
    %745 = vmatpush.bf16.msra.mxu0 %v103
    %746 = vmatpush.bf16.msra.mxu0 %v101
    %747 = vmatmul.bf16.gmra.mxu0 %v734
    %v748 = vpop.f32.mrf.mxu0
    %v749 = vadd.f32 0.0, %v748
    %v750 = vpop.f32.mrf.mxu0
    %v751 = vadd.f32 0.0, %v750
    %752 = vmatmul.bf16.gmra.mxu0 %v737
    %v753 = vpop.f32.mrf.mxu0
    %v754 = vadd.f32 0.0, %v753
    %v755 = vpop.f32.mrf.mxu0
    %v756 = vadd.f32 0.0, %v755
    %757 = vdwg.mxu0
    %758 = vmatpush.bf16.msra.mxu0 0
    %759 = vmatpush.bf16.msra.mxu0 0
    %760 = vmatpush.bf16.msra.mxu0 0
    %761 = vmatpush.bf16.msra.mxu0 0
    %762 = vmatpush.bf16.msra.mxu0 %v108
    %763 = vmatpush.bf16.msra.mxu0 %v106
    %764 = vmatpush.bf16.msra.mxu0 %v104
    %765 = vmatpush.bf16.msra.mxu0 %v102
    %766 = vmatmul.bf16.gmra.mxu0 %v734
    %v767 = vpop.f32.mrf.mxu0
    %v768 = vadd.f32 0.0, %v767
    %v769 = vpop.f32.mrf.mxu0
    %v770 = vadd.f32 0.0, %v769
    %771 = vmatmul.bf16.gmra.mxu0 %v737
    %v772 = vpop.f32.mrf.mxu0
    %v773 = vadd.f32 0.0, %v772
    %v774 = vpop.f32.mrf.mxu0
    %v775 = vadd.f32 0.0, %v774
    %776 = vdwg.mxu0
    %v777 = vpack.c.bf16 %v751, %v749
    %v778 = vpack.c.bf16 %v770, %v768
    %v779 = vpack.c.bf16 %v756, %v754
    %v780 = vpack.c.bf16 %v775, %v773
    %s781 = scalar_lea.vmem %s2, 288
    %v782 = vld [vmem:[%s781] sm:$0xf]
    %v783 = vld [vmem:[%s781 + $0x4] sm:$0xf]
    %v784 = vld [vmem:[%s781 + $0x8] sm:$0xf]
    %v785 = vld [vmem:[%s781 + $0xc] sm:$0xf]
    %v786 = vld [vmem:[%s781 + $0x10] sm:$0xf]
    %v787 = vld [vmem:[%s781 + $0x14] sm:$0xf]
    %v788 = vld [vmem:[%s781 + $0x18] sm:$0xf]
    %v789 = vld [vmem:[%s781 + $0x1c] sm:$0xf]
    %v790 = vld [vmem:[%s781 + $0x20] sm:$0xf]
    %v791 = vld [vmem:[%s781 + $0x24] sm:$0xf]
    %v792 = vld [vmem:[%s781 + $0x28] sm:$0xf]
    %v793 = vld [vmem:[%s781 + $0x2c] sm:$0xf]
    %v794 = vld [vmem:[%s781 + $0x30] sm:$0xf]
    %v795 = vld [vmem:[%s781 + $0x34] sm:$0xf]
    %v796 = vld [vmem:[%s781 + $0x38] sm:$0xf]
    %v797 = vld [vmem:[%s781 + $0x3c] sm:$0xf]
    %v798 = vld [vmem:[%s781 + $0x40] sm:$0xf]
    %v799 = vld [vmem:[%s781 + $0x44] sm:$0xf]
    %v800 = vld [vmem:[%s781 + $0x48] sm:$0xf]
    %v801 = vld [vmem:[%s781 + $0x4c] sm:$0xf]
    %v802 = vld [vmem:[%s781 + $0x50] sm:$0xf]
    %v803 = vld [vmem:[%s781 + $0x54] sm:$0xf]
    %v804 = vld [vmem:[%s781 + $0x58] sm:$0xf]
    %v805 = vld [vmem:[%s781 + $0x5c] sm:$0xf]
    %v830 = vunpack.c.l.b16 %v782
    %v831 = vunpack.c.l.b16 %v783
    %v832 = vunpack.c.l.b16 %v784
    %v833 = vunpack.c.l.b16 %v785
    %v834 = vunpack.c.l.b16 %v786
    %v835 = vunpack.c.l.b16 %v787
    %v836 = vunpack.c.l.b16 %v788
    %v837 = vunpack.c.l.b16 %v789
    %v838 = vunpack.c.l.b16 %v790
    %v839 = vunpack.c.l.b16 %v791
    %v840 = vunpack.c.l.b16 %v792
    %v841 = vunpack.c.l.b16 %v793
    %v842 = vunpack.c.l.b16 %v794
    %v843 = vunpack.c.l.b16 %v795
    %v844 = vunpack.c.l.b16 %v796
    %v845 = vunpack.c.l.b16 %v797
    %v846 = vunpack.c.l.b16 %v798
    %v847 = vunpack.c.l.b16 %v799
    %v848 = vunpack.c.l.b16 %v800
    %v849 = vunpack.c.l.b16 %v801
    %v850 = vunpack.c.l.b16 %v802
    %v851 = vunpack.c.l.b16 %v803
    %v852 = vunpack.c.l.b16 %v804
    %v853 = vunpack.c.l.b16 %v805
    %v854 = vpack.c.b16 %v831, %v830
    %v855 = vpack.c.b16 %v833, %v832
    %v856 = vpack.c.b16 %v835, %v834
    %v857 = vpack.c.b16 %v837, %v836
    %v858 = vpack.c.b16 %v839, %v838
    %v859 = vpack.c.b16 %v841, %v840
    %v860 = vpack.c.b16 %v843, %v842
    %v861 = vpack.c.b16 %v845, %v844
    %v862 = vpack.c.b16 %v847, %v846
    %v863 = vpack.c.b16 %v849, %v848
    %v864 = vpack.c.b16 %v851, %v850
    %v865 = vpack.c.b16 %v853, %v852
    %v879 = vsel %vm117, %v778, 0
    %v882 = vsel %vm117, %v780, 0
    %884 = vmatpush.bf16.msra.mxu0 %v861
    %885 = vmatpush.bf16.msra.mxu0 %v860
    %886 = vmatpush.bf16.msra.mxu0 %v859
    %887 = vmatpush.bf16.msra.mxu0 %v858
    %888 = vmatpush.bf16.msra.mxu0 %v857
    %889 = vmatpush.bf16.msra.mxu0 %v856
    %890 = vmatpush.bf16.msra.mxu0 %v855
    %891 = vmatpush.bf16.msra.mxu0 %v854
    %892 = vmatmul.bf16.gmra.mxu0 %v777
    %v893 = vpop.f32.mrf.mxu0
    %v894 = vadd.f32 0.0, %v893
    %v895 = vpop.f32.mrf.mxu0
    %v896 = vadd.f32 0.0, %v895
    %897 = vmatmul.bf16.gmra.mxu0 %v779
    %v898 = vpop.f32.mrf.mxu0
    %v899 = vadd.f32 0.0, %v898
    %v900 = vpop.f32.mrf.mxu0
    %v901 = vadd.f32 0.0, %v900
    %902 = vdwg.mxu0
    %903 = vmatpush.bf16.msra.mxu0 0
    %904 = vmatpush.bf16.msra.mxu0 0
    %905 = vmatpush.bf16.msra.mxu0 0
    %906 = vmatpush.bf16.msra.mxu0 0
    %907 = vmatpush.bf16.msra.mxu0 %v865
    %908 = vmatpush.bf16.msra.mxu0 %v864
    %909 = vmatpush.bf16.msra.mxu0 %v863
    %910 = vmatpush.bf16.msra.mxu0 %v862
    %911 = vmatmul.bf16.gmra.mxu0 %v879
    %v912 = vpop.f32.mrf.mxu0
    %v913 = vadd.f32 %v894, %v912
    %v914 = vpop.f32.mrf.mxu0
    %v915 = vadd.f32 %v896, %v914
    %916 = vmatmul.bf16.gmra.mxu0 %v882
    %v917 = vpop.f32.mrf.mxu0
    %v918 = vadd.f32 %v899, %v917
    %v919 = vpop.f32.mrf.mxu0
    %v920 = vadd.f32 %v901, %v919
    %921 = vdwg.mxu0
    %v922 = vadd.f32 %v714, %v913
    %v923 = vadd.f32 %v715, %v915
    %v924 = vadd.f32 %v716, %v918
    %v925 = vadd.f32 %v717, %v920
    %v926 = vld [vmem:[%s3] sm:$0x1]
    %v928 = vperm.slane %v926, 0
    %v930 = vadd.f32 %v922, %v928
    %v931 = vadd.f32 %v923, %v928
    %v932 = vadd.f32 %v924, %v928
    %v933 = vadd.f32 %v925, %v928
    %vm934 = vcmp.gt.f32.partialorder %v930, 0.0
    %vm935 = vcmp.gt.f32.partialorder %v931, 0.0
    %vm936 = vcmp.gt.f32.partialorder %v932, 0.0
    %vm937 = vcmp.gt.f32.partialorder %v933, 0.0
    %v938 = vmul.f32 %v930, 0.2
    %v939 = vmul.f32 %v931, 0.2
    %v940 = vmul.f32 %v932, 0.2
    %v941 = vmul.f32 %v933, 0.2
    %v942 = vsel %vm934, %v930, %v938
    %v943 = vsel %vm935, %v931, %v939
    %v944 = vsel %vm936, %v932, %v940
    %v945 = vsel %vm937, %v933, %v941
    %v946 = vpack.c.bf16 %v943, %v942
    %v947 = vpack.c.bf16 %v945, %v944
    %v948 = vld [vmem:[%s4] sm:$0xf]
    %v949 = vld [vmem:[%s4 + $0x4] sm:$0xf]
    %v952 = vunpack.c.l.b16 %v948
    %v953 = vunpack.c.l.b16 %v949
    %v954 = vpack.c.b16 %v953, %v952
    %vm955 = vcmask 261120
    %v957 = vsel %vm955, %v954, 0
    %959 = vmatpush.bf16.msra.mxu0 0
    %960 = vmatpush.bf16.msra.mxu0 0
    %961 = vmatpush.bf16.msra.mxu0 0
    %962 = vmatpush.bf16.msra.mxu0 0
    %963 = vmatpush.bf16.msra.mxu0 0
    %964 = vmatpush.bf16.msra.mxu0 0
    %965 = vmatpush.bf16.msra.mxu0 %v947
    %966 = vmatpush.bf16.msra.mxu0 %v946
    %967 = vmatmul.bf16.gmra.mxu0 %v957
    %v968 = vpop.f32.mrf.mxu0
    %v969 = vadd.f32 0.0, %v968
    %v970 = vpop.f32.mrf.mxu0
    %v971 = vadd.f32 0.0, %v970
    %972 = vdwg.mxu0
    %v973 = vpack.c.bf16 %v971, %v969
    %v974 = vld [vmem:[%s5] sm:$0xf]
    %v975 = vld [vmem:[%s5 + $0x4] sm:$0xf]
    %v976 = vld [vmem:[%s5 + $0x8] sm:$0xf]
    %v977 = vld [vmem:[%s5 + $0xc] sm:$0xf]
    %v978 = vld [vmem:[%s5 + $0x10] sm:$0xf]
    %v979 = vld [vmem:[%s5 + $0x14] sm:$0xf]
    %v980 = vld [vmem:[%s5 + $0x18] sm:$0xf]
    %v981 = vld [vmem:[%s5 + $0x1c] sm:$0xf]
    %v982 = vld [vmem:[%s5 + $0x20] sm:$0xf]
    %v983 = vld [vmem:[%s5 + $0x24] sm:$0xf]
    %v984 = vld [vmem:[%s5 + $0x28] sm:$0xf]
    %v985 = vld [vmem:[%s5 + $0x2c] sm:$0xf]
    %v986 = vld [vmem:[%s5 + $0x30] sm:$0xf]
    %v987 = vld [vmem:[%s5 + $0x34] sm:$0xf]
    %v988 = vld [vmem:[%s5 + $0x38] sm:$0xf]
    %v989 = vld [vmem:[%s5 + $0x3c] sm:$0xf]
    %s990 = scalar_lea.vmem %s4, 8
    %v991 = vld [vmem:[%s990] sm:$0xf]
    %v992 = vld [vmem:[%s990 + $0x4] sm:$0xf]
    %v995 = vunpack.c.l.b16 %v991
    %v996 = vunpack.c.l.b16 %v992
    %v997 = vpack.c.b16 %v996, %v995
    %v999 = vsel %vm955, %v997, 0
    %1001 = vmatpush.bf16.msra.mxu0 0
    %1002 = vmatpush.bf16.msra.mxu0 0
    %1003 = vmatpush.bf16.msra.mxu0 0
    %1004 = vmatpush.bf16.msra.mxu0 0
    %1005 = vmatpush.bf16.msra.mxu0 0
    %1006 = vmatpush.bf16.msra.mxu0 0
    %1007 = vmatpush.bf16.msra.mxu0 %v947
    %1008 = vmatpush.bf16.msra.mxu0 %v946
    %1009 = vmatmul.bf16.gmra.mxu0 %v999
    %v1010 = vpop.f32.mrf.mxu0
    %v1011 = vadd.f32 0.0, %v1010
    %v1012 = vpop.f32.mrf.mxu0
    %v1013 = vadd.f32 0.0, %v1012
    %1014 = vdwg.mxu0
    %v1015 = vpack.c.bf16 %v1013, %v1011
    %s1016 = scalar_lea.vmem %s5, 64
    %v1017 = vld [vmem:[%s1016] sm:$0xf]
    %v1018 = vld [vmem:[%s1016 + $0x4] sm:$0xf]
    %v1019 = vld [vmem:[%s1016 + $0x8] sm:$0xf]
    %v1020 = vld [vmem:[%s1016 + $0xc] sm:$0xf]
    %v1021 = vld [vmem:[%s1016 + $0x10] sm:$0xf]
    %v1022 = vld [vmem:[%s1016 + $0x14] sm:$0xf]
    %v1023 = vld [vmem:[%s1016 + $0x18] sm:$0xf]
    %v1024 = vld [vmem:[%s1016 + $0x1c] sm:$0xf]
    %v1025 = vld [vmem:[%s1016 + $0x20] sm:$0xf]
    %v1026 = vld [vmem:[%s1016 + $0x24] sm:$0xf]
    %v1027 = vld [vmem:[%s1016 + $0x28] sm:$0xf]
    %v1028 = vld [vmem:[%s1016 + $0x2c] sm:$0xf]
    %v1029 = vld [vmem:[%s1016 + $0x30] sm:$0xf]
    %v1030 = vld [vmem:[%s1016 + $0x34] sm:$0xf]
    %v1031 = vld [vmem:[%s1016 + $0x38] sm:$0xf]
    %v1032 = vld [vmem:[%s1016 + $0x3c] sm:$0xf]
    %v1049 = vunpack.c.l.b16 %v1017
    %v1050 = vunpack.c.l.b16 %v1018
    %v1051 = vunpack.c.l.b16 %v1019
    %v1052 = vunpack.c.l.b16 %v1020
    %v1053 = vunpack.c.l.b16 %v1021
    %v1054 = vunpack.c.l.b16 %v1022
    %v1055 = vunpack.c.l.b16 %v1023
    %v1056 = vunpack.c.l.b16 %v1024
    %v1057 = vunpack.c.l.b16 %v1025
    %v1058 = vunpack.c.l.b16 %v1026
    %v1059 = vunpack.c.l.b16 %v1027
    %v1060 = vunpack.c.l.b16 %v1028
    %v1061 = vunpack.c.l.b16 %v1029
    %v1062 = vunpack.c.l.b16 %v1030
    %v1063 = vunpack.c.l.b16 %v1031
    %v1064 = vunpack.c.l.b16 %v1032
    %v1065 = vpack.c.b16 %v1050, %v1049
    %v1066 = vpack.c.b16 %v1052, %v1051
    %v1067 = vpack.c.b16 %v1054, %v1053
    %v1068 = vpack.c.b16 %v1056, %v1055
    %v1069 = vpack.c.b16 %v1058, %v1057
    %v1070 = vpack.c.b16 %v1060, %v1059
    %v1071 = vpack.c.b16 %v1062, %v1061
    %v1072 = vpack.c.b16 %v1064, %v1063
    %1081 = vmatpush.bf16.msra.mxu0 %v1072
    %1082 = vmatpush.bf16.msra.mxu0 %v1071
    %1083 = vmatpush.bf16.msra.mxu0 %v1070
    %1084 = vmatpush.bf16.msra.mxu0 %v1069
    %1085 = vmatpush.bf16.msra.mxu0 %v1068
    %1086 = vmatpush.bf16.msra.mxu0 %v1067
    %1087 = vmatpush.bf16.msra.mxu0 %v1066
    %1088 = vmatpush.bf16.msra.mxu0 %v1065
    %1089 = vmatmul.bf16.gmra.mxu0 %v1015
    %v1090 = vpop.f32.mrf.mxu0
    %v1091 = vadd.f32 0.0, %v1090
    %v1092 = vpop.f32.mrf.mxu0
    %v1093 = vadd.f32 0.0, %v1092
    %1094 = vdwg.mxu0
    %v1111 = vunpack.c.l.b16 %v974
    %v1112 = vunpack.c.l.b16 %v975
    %v1113 = vunpack.c.l.b16 %v976
    %v1114 = vunpack.c.l.b16 %v977
    %v1115 = vunpack.c.l.b16 %v978
    %v1116 = vunpack.c.l.b16 %v979
    %v1117 = vunpack.c.l.b16 %v980
    %v1118 = vunpack.c.l.b16 %v981
    %v1119 = vunpack.c.l.b16 %v982
    %v1120 = vunpack.c.l.b16 %v983
    %v1121 = vunpack.c.l.b16 %v984
    %v1122 = vunpack.c.l.b16 %v985
    %v1123 = vunpack.c.l.b16 %v986
    %v1124 = vunpack.c.l.b16 %v987
    %v1125 = vunpack.c.l.b16 %v988
    %v1126 = vunpack.c.l.b16 %v989
    %v1127 = vpack.c.b16 %v1112, %v1111
    %v1128 = vpack.c.b16 %v1114, %v1113
    %v1129 = vpack.c.b16 %v1116, %v1115
    %v1130 = vpack.c.b16 %v1118, %v1117
    %v1131 = vpack.c.b16 %v1120, %v1119
    %v1132 = vpack.c.b16 %v1122, %v1121
    %v1133 = vpack.c.b16 %v1124, %v1123
    %v1134 = vpack.c.b16 %v1126, %v1125
    %1143 = vmatpush.bf16.msra.mxu0 %v1134
    %1144 = vmatpush.bf16.msra.mxu0 %v1133
    %1145 = vmatpush.bf16.msra.mxu0 %v1132
    %1146 = vmatpush.bf16.msra.mxu0 %v1131
    %1147 = vmatpush.bf16.msra.mxu0 %v1130
    %1148 = vmatpush.bf16.msra.mxu0 %v1129
    %1149 = vmatpush.bf16.msra.mxu0 %v1128
    %1150 = vmatpush.bf16.msra.mxu0 %v1127
    %1151 = vmatmul.bf16.gmra.mxu0 %v973
    %v1152 = vpop.f32.mrf.mxu0
    %v1153 = vadd.f32 %v1091, %v1152
    %v1154 = vpop.f32.mrf.mxu0
    %v1155 = vadd.f32 %v1093, %v1154
    %1156 = vdwg.mxu0
    %s1157 = scalar_lea.vmem %s4, 16
    %v1158 = vld [vmem:[%s1157] sm:$0xf]
    %v1159 = vld [vmem:[%s1157 + $0x4] sm:$0xf]
    %v1162 = vunpack.c.l.b16 %v1158
    %v1163 = vunpack.c.l.b16 %v1159
    %v1164 = vpack.c.b16 %v1163, %v1162
    %v1166 = vsel %vm955, %v1164, 0
    %1168 = vmatpush.bf16.msra.mxu0 0
    %1169 = vmatpush.bf16.msra.mxu0 0
    %1170 = vmatpush.bf16.msra.mxu0 0
    %1171 = vmatpush.bf16.msra.mxu0 0
    %1172 = vmatpush.bf16.msra.mxu0 0
    %1173 = vmatpush.bf16.msra.mxu0 0
    %1174 = vmatpush.bf16.msra.mxu0 %v947
    %1175 = vmatpush.bf16.msra.mxu0 %v946
    %1176 = vmatmul.bf16.gmra.mxu0 %v1166
    %v1177 = vpop.f32.mrf.mxu0
    %v1178 = vadd.f32 0.0, %v1177
    %v1179 = vpop.f32.mrf.mxu0
    %v1180 = vadd.f32 0.0, %v1179
    %1181 = vdwg.mxu0
    %v1182 = vpack.c.bf16 %v1180, %v1178
    %s1183 = scalar_lea.vmem %s5, 128
    %v1184 = vld [vmem:[%s1183] sm:$0xf]
    %v1185 = vld [vmem:[%s1183 + $0x4] sm:$0xf]
    %v1186 = vld [vmem:[%s1183 + $0x8] sm:$0xf]
    %v1187 = vld [vmem:[%s1183 + $0xc] sm:$0xf]
    %v1188 = vld [vmem:[%s1183 + $0x10] sm:$0xf]
    %v1189 = vld [vmem:[%s1183 + $0x14] sm:$0xf]
    %v1190 = vld [vmem:[%s1183 + $0x18] sm:$0xf]
    %v1191 = vld [vmem:[%s1183 + $0x1c] sm:$0xf]
    %v1192 = vld [vmem:[%s1183 + $0x20] sm:$0xf]
    %v1193 = vld [vmem:[%s1183 + $0x24] sm:$0xf]
    %v1194 = vld [vmem:[%s1183 + $0x28] sm:$0xf]
    %v1195 = vld [vmem:[%s1183 + $0x2c] sm:$0xf]
    %v1196 = vld [vmem:[%s1183 + $0x30] sm:$0xf]
    %v1197 = vld [vmem:[%s1183 + $0x34] sm:$0xf]
    %v1198 = vld [vmem:[%s1183 + $0x38] sm:$0xf]
    %v1199 = vld [vmem:[%s1183 + $0x3c] sm:$0xf]
    %v1216 = vunpack.c.l.b16 %v1184
    %v1217 = vunpack.c.l.b16 %v1185
    %v1218 = vunpack.c.l.b16 %v1186
    %v1219 = vunpack.c.l.b16 %v1187
    %v1220 = vunpack.c.l.b16 %v1188
    %v1221 = vunpack.c.l.b16 %v1189
    %v1222 = vunpack.c.l.b16 %v1190
    %v1223 = vunpack.c.l.b16 %v1191
    %v1224 = vunpack.c.l.b16 %v1192
    %v1225 = vunpack.c.l.b16 %v1193
    %v1226 = vunpack.c.l.b16 %v1194
    %v1227 = vunpack.c.l.b16 %v1195
    %v1228 = vunpack.c.l.b16 %v1196
    %v1229 = vunpack.c.l.b16 %v1197
    %v1230 = vunpack.c.l.b16 %v1198
    %v1231 = vunpack.c.l.b16 %v1199
    %v1232 = vpack.c.b16 %v1217, %v1216
    %v1233 = vpack.c.b16 %v1219, %v1218
    %v1234 = vpack.c.b16 %v1221, %v1220
    %v1235 = vpack.c.b16 %v1223, %v1222
    %v1236 = vpack.c.b16 %v1225, %v1224
    %v1237 = vpack.c.b16 %v1227, %v1226
    %v1238 = vpack.c.b16 %v1229, %v1228
    %v1239 = vpack.c.b16 %v1231, %v1230
    %1248 = vmatpush.bf16.msra.mxu0 %v1239
    %1249 = vmatpush.bf16.msra.mxu0 %v1238
    %1250 = vmatpush.bf16.msra.mxu0 %v1237
    %1251 = vmatpush.bf16.msra.mxu0 %v1236
    %1252 = vmatpush.bf16.msra.mxu0 %v1235
    %1253 = vmatpush.bf16.msra.mxu0 %v1234
    %1254 = vmatpush.bf16.msra.mxu0 %v1233
    %1255 = vmatpush.bf16.msra.mxu0 %v1232
    %1256 = vmatmul.bf16.gmra.mxu0 %v1182
    %v1257 = vpop.f32.mrf.mxu0
    %v1258 = vadd.f32 0.0, %v1257
    %v1259 = vpop.f32.mrf.mxu0
    %v1260 = vadd.f32 0.0, %v1259
    %1261 = vdwg.mxu0
    %v1262 = vadd.f32 %v1153, %v1258
    %v1263 = vadd.f32 %v1155, %v1260
    %s1264 = scalar_lea.vmem %s4, 24
    %v1265 = vld [vmem:[%s1264] sm:$0xf]
    %v1266 = vld [vmem:[%s1264 + $0x4] sm:$0xf]
    %v1269 = vunpack.c.l.b16 %v1265
    %v1270 = vunpack.c.l.b16 %v1266
    %v1271 = vpack.c.b16 %v1270, %v1269
    %v1273 = vsel %vm955, %v1271, 0
    %1275 = vmatpush.bf16.msra.mxu0 0
    %1276 = vmatpush.bf16.msra.mxu0 0
    %1277 = vmatpush.bf16.msra.mxu0 0
    %1278 = vmatpush.bf16.msra.mxu0 0
    %1279 = vmatpush.bf16.msra.mxu0 0
    %1280 = vmatpush.bf16.msra.mxu0 0
    %1281 = vmatpush.bf16.msra.mxu0 %v947
    %1282 = vmatpush.bf16.msra.mxu0 %v946
    %1283 = vmatmul.bf16.gmra.mxu0 %v1273
    %v1284 = vpop.f32.mrf.mxu0
    %v1285 = vadd.f32 0.0, %v1284
    %v1286 = vpop.f32.mrf.mxu0
    %v1287 = vadd.f32 0.0, %v1286
    %1288 = vdwg.mxu0
    %v1289 = vpack.c.bf16 %v1287, %v1285
    %s1290 = scalar_lea.vmem %s5, 192
    %v1291 = vld [vmem:[%s1290] sm:$0xf]
    %v1292 = vld [vmem:[%s1290 + $0x4] sm:$0xf]
    %v1293 = vld [vmem:[%s1290 + $0x8] sm:$0xf]
    %v1294 = vld [vmem:[%s1290 + $0xc] sm:$0xf]
    %v1295 = vld [vmem:[%s1290 + $0x10] sm:$0xf]
    %v1296 = vld [vmem:[%s1290 + $0x14] sm:$0xf]
    %v1297 = vld [vmem:[%s1290 + $0x18] sm:$0xf]
    %v1298 = vld [vmem:[%s1290 + $0x1c] sm:$0xf]
    %v1299 = vld [vmem:[%s1290 + $0x20] sm:$0xf]
    %v1300 = vld [vmem:[%s1290 + $0x24] sm:$0xf]
    %v1301 = vld [vmem:[%s1290 + $0x28] sm:$0xf]
    %v1302 = vld [vmem:[%s1290 + $0x2c] sm:$0xf]
    %v1303 = vld [vmem:[%s1290 + $0x30] sm:$0xf]
    %v1304 = vld [vmem:[%s1290 + $0x34] sm:$0xf]
    %v1305 = vld [vmem:[%s1290 + $0x38] sm:$0xf]
    %v1306 = vld [vmem:[%s1290 + $0x3c] sm:$0xf]
    %v1323 = vunpack.c.l.b16 %v1291
    %v1324 = vunpack.c.l.b16 %v1292
    %v1325 = vunpack.c.l.b16 %v1293
    %v1326 = vunpack.c.l.b16 %v1294
    %v1327 = vunpack.c.l.b16 %v1295
    %v1328 = vunpack.c.l.b16 %v1296
    %v1329 = vunpack.c.l.b16 %v1297
    %v1330 = vunpack.c.l.b16 %v1298
    %v1331 = vunpack.c.l.b16 %v1299
    %v1332 = vunpack.c.l.b16 %v1300
    %v1333 = vunpack.c.l.b16 %v1301
    %v1334 = vunpack.c.l.b16 %v1302
    %v1335 = vunpack.c.l.b16 %v1303
    %v1336 = vunpack.c.l.b16 %v1304
    %v1337 = vunpack.c.l.b16 %v1305
    %v1338 = vunpack.c.l.b16 %v1306
    %v1339 = vpack.c.b16 %v1324, %v1323
    %v1340 = vpack.c.b16 %v1326, %v1325
    %v1341 = vpack.c.b16 %v1328, %v1327
    %v1342 = vpack.c.b16 %v1330, %v1329
    %v1343 = vpack.c.b16 %v1332, %v1331
    %v1344 = vpack.c.b16 %v1334, %v1333
    %v1345 = vpack.c.b16 %v1336, %v1335
    %v1346 = vpack.c.b16 %v1338, %v1337
    %1355 = vmatpush.bf16.msra.mxu0 %v1346
    %1356 = vmatpush.bf16.msra.mxu0 %v1345
    %1357 = vmatpush.bf16.msra.mxu0 %v1344
    %1358 = vmatpush.bf16.msra.mxu0 %v1343
    %1359 = vmatpush.bf16.msra.mxu0 %v1342
    %1360 = vmatpush.bf16.msra.mxu0 %v1341
    %1361 = vmatpush.bf16.msra.mxu0 %v1340
    %1362 = vmatpush.bf16.msra.mxu0 %v1339
    %1363 = vmatmul.bf16.gmra.mxu0 %v1289
    %v1364 = vpop.f32.mrf.mxu0
    %v1365 = vadd.f32 0.0, %v1364
    %v1366 = vpop.f32.mrf.mxu0
    %v1367 = vadd.f32 0.0, %v1366
    %1368 = vdwg.mxu0
    %v1369 = vadd.f32 %v1262, %v1365
    %v1370 = vadd.f32 %v1263, %v1367
    %v1371 = vld [vmem:[%s6] sm:$0x1]
    %v1373 = vperm.slane %v1371, 0
    %v1375 = vadd.f32 %v1369, %v1373
    %v1376 = vadd.f32 %v1370, %v1373
    %vm1377 = vcmp.gt.f32.partialorder %v1375, 0.0
    %vm1378 = vcmp.gt.f32.partialorder %v1376, 0.0
    %v1379 = vmul.f32 %v1375, 0.2
    %v1380 = vmul.f32 %v1376, 0.2
    %v1381 = vsel %vm1377, %v1375, %v1379
    %v1382 = vsel %vm1378, %v1376, %v1380
    %v1383 = vpack.c.bf16 %v1382, %v1381
    %v1384 = vld [vmem:[%s7] sm:$0xf]
    %vm1385 = vcmask 130048
    %v1387 = vsel %vm1385, %v1384, 0
    %1389 = vmatpush.bf16.msra.mxu0 0
    %1390 = vmatpush.bf16.msra.mxu0 0
    %1391 = vmatpush.bf16.msra.mxu0 0
    %1392 = vmatpush.bf16.msra.mxu0 0
    %1393 = vmatpush.bf16.msra.mxu0 0
    %1394 = vmatpush.bf16.msra.mxu0 0
    %1395 = vmatpush.bf16.msra.mxu0 0
    %1396 = vmatpush.bf16.msra.mxu0 %v1383
    %1397 = vmatmul.bf16.gmra.mxu0 %v1387
    %v1398 = vpop.f32.mrf.mxu0
    %v1399 = vadd.f32 0.0, %v1398
    %v1400 = vpop.f32.mrf.mxu0
    %1401 = vdwg.mxu0
    %v1402 = vpack.c.bf16 %v1399, %v1399
    %v1403 = vld [vmem:[%s8] sm:$0xf]
    %v1404 = vld [vmem:[%s8 + $0x4] sm:$0xf]
    %v1405 = vld [vmem:[%s8 + $0x8] sm:$0xf]
    %v1406 = vld [vmem:[%s8 + $0xc] sm:$0xf]
    %v1407 = vld [vmem:[%s8 + $0x10] sm:$0xf]
    %v1408 = vld [vmem:[%s8 + $0x14] sm:$0xf]
    %v1409 = vld [vmem:[%s8 + $0x18] sm:$0xf]
    %v1410 = vld [vmem:[%s8 + $0x1c] sm:$0xf]
    %v1411 = vld [vmem:[%s8 + $0x20] sm:$0xf]
    %v1412 = vld [vmem:[%s8 + $0x24] sm:$0xf]
    %v1413 = vld [vmem:[%s8 + $0x28] sm:$0xf]
    %v1414 = vld [vmem:[%s8 + $0x2c] sm:$0xf]
    %v1415 = vld [vmem:[%s8 + $0x30] sm:$0xf]
    %v1416 = vld [vmem:[%s8 + $0x34] sm:$0xf]
    %v1417 = vld [vmem:[%s8 + $0x38] sm:$0xf]
    %v1418 = vld [vmem:[%s8 + $0x3c] sm:$0xf]
    %s1419 = scalar_lea.vmem %s7, 4
    %v1420 = vld [vmem:[%s1419] sm:$0xf]
    %v1422 = vsel %vm1385, %v1420, 0
    %1424 = vmatpush.bf16.msra.mxu0 0
    %1425 = vmatpush.bf16.msra.mxu0 0
    %1426 = vmatpush.bf16.msra.mxu0 0
    %1427 = vmatpush.bf16.msra.mxu0 0
    %1428 = vmatpush.bf16.msra.mxu0 0
    %1429 = vmatpush.bf16.msra.mxu0 0
    %1430 = vmatpush.bf16.msra.mxu0 0
    %1431 = vmatpush.bf16.msra.mxu0 %v1383
    %1432 = vmatmul.bf16.gmra.mxu0 %v1422
    %v1433 = vpop.f32.mrf.mxu0
    %v1434 = vadd.f32 0.0, %v1433
    %v1435 = vpop.f32.mrf.mxu0
    %1436 = vdwg.mxu0
    %v1437 = vpack.c.bf16 %v1434, %v1434
    %s1438 = scalar_lea.vmem %s8, 64
    %v1439 = vld [vmem:[%s1438] sm:$0xf]
    %v1440 = vld [vmem:[%s1438 + $0x4] sm:$0xf]
    %v1441 = vld [vmem:[%s1438 + $0x8] sm:$0xf]
    %v1442 = vld [vmem:[%s1438 + $0xc] sm:$0xf]
    %v1443 = vld [vmem:[%s1438 + $0x10] sm:$0xf]
    %v1444 = vld [vmem:[%s1438 + $0x14] sm:$0xf]
    %v1445 = vld [vmem:[%s1438 + $0x18] sm:$0xf]
    %v1446 = vld [vmem:[%s1438 + $0x1c] sm:$0xf]
    %v1447 = vld [vmem:[%s1438 + $0x20] sm:$0xf]
    %v1448 = vld [vmem:[%s1438 + $0x24] sm:$0xf]
    %v1449 = vld [vmem:[%s1438 + $0x28] sm:$0xf]
    %v1450 = vld [vmem:[%s1438 + $0x2c] sm:$0xf]
    %v1451 = vld [vmem:[%s1438 + $0x30] sm:$0xf]
    %v1452 = vld [vmem:[%s1438 + $0x34] sm:$0xf]
    %v1453 = vld [vmem:[%s1438 + $0x38] sm:$0xf]
    %v1454 = vld [vmem:[%s1438 + $0x3c] sm:$0xf]
    %v1471 = vunpack.c.l.b16 %v1439
    %v1472 = vunpack.c.l.b16 %v1440
    %v1473 = vunpack.c.l.b16 %v1441
    %v1474 = vunpack.c.l.b16 %v1442
    %v1475 = vunpack.c.l.b16 %v1443
    %v1476 = vunpack.c.l.b16 %v1444
    %v1477 = vunpack.c.l.b16 %v1445
    %v1478 = vunpack.c.l.b16 %v1446
    %v1479 = vunpack.c.l.b16 %v1447
    %v1480 = vunpack.c.l.b16 %v1448
    %v1481 = vunpack.c.l.b16 %v1449
    %v1482 = vunpack.c.l.b16 %v1450
    %v1483 = vunpack.c.l.b16 %v1451
    %v1484 = vunpack.c.l.b16 %v1452
    %v1485 = vunpack.c.l.b16 %v1453
    %v1486 = vunpack.c.l.b16 %v1454
    %v1487 = vpack.c.b16 %v1472, %v1471
    %v1488 = vpack.c.b16 %v1474, %v1473
    %v1489 = vpack.c.b16 %v1476, %v1475
    %v1490 = vpack.c.b16 %v1478, %v1477
    %v1491 = vpack.c.b16 %v1480, %v1479
    %v1492 = vpack.c.b16 %v1482, %v1481
    %v1493 = vpack.c.b16 %v1484, %v1483
    %v1494 = vpack.c.b16 %v1486, %v1485
    %1503 = vmatpush.bf16.msra.mxu0 %v1494
    %1504 = vmatpush.bf16.msra.mxu0 %v1493
    %1505 = vmatpush.bf16.msra.mxu0 %v1492
    %1506 = vmatpush.bf16.msra.mxu0 %v1491
    %1507 = vmatpush.bf16.msra.mxu0 %v1490
    %1508 = vmatpush.bf16.msra.mxu0 %v1489
    %1509 = vmatpush.bf16.msra.mxu0 %v1488
    %1510 = vmatpush.bf16.msra.mxu0 %v1487
    %1511 = vmatmul.bf16.gmra.mxu0 %v1437
    %v1512 = vpop.f32.mrf.mxu0
    %v1513 = vadd.f32 0.0, %v1512
    %v1514 = vpop.f32.mrf.mxu0
    %1515 = vdwg.mxu0
    %v1532 = vunpack.c.l.b16 %v1403
    %v1533 = vunpack.c.l.b16 %v1404
    %v1534 = vunpack.c.l.b16 %v1405
    %v1535 = vunpack.c.l.b16 %v1406
    %v1536 = vunpack.c.l.b16 %v1407
    %v1537 = vunpack.c.l.b16 %v1408
    %v1538 = vunpack.c.l.b16 %v1409
    %v1539 = vunpack.c.l.b16 %v1410
    %v1540 = vunpack.c.l.b16 %v1411
    %v1541 = vunpack.c.l.b16 %v1412
    %v1542 = vunpack.c.l.b16 %v1413
    %v1543 = vunpack.c.l.b16 %v1414
    %v1544 = vunpack.c.l.b16 %v1415
    %v1545 = vunpack.c.l.b16 %v1416
    %v1546 = vunpack.c.l.b16 %v1417
    %v1547 = vunpack.c.l.b16 %v1418
    %v1548 = vpack.c.b16 %v1533, %v1532
    %v1549 = vpack.c.b16 %v1535, %v1534
    %v1550 = vpack.c.b16 %v1537, %v1536
    %v1551 = vpack.c.b16 %v1539, %v1538
    %v1552 = vpack.c.b16 %v1541, %v1540
    %v1553 = vpack.c.b16 %v1543, %v1542
    %v1554 = vpack.c.b16 %v1545, %v1544
    %v1555 = vpack.c.b16 %v1547, %v1546
    %1564 = vmatpush.bf16.msra.mxu0 %v1555
    %1565 = vmatpush.bf16.msra.mxu0 %v1554
    %1566 = vmatpush.bf16.msra.mxu0 %v1553
    %1567 = vmatpush.bf16.msra.mxu0 %v1552
    %1568 = vmatpush.bf16.msra.mxu0 %v1551
    %1569 = vmatpush.bf16.msra.mxu0 %v1550
    %1570 = vmatpush.bf16.msra.mxu0 %v1549
    %1571 = vmatpush.bf16.msra.mxu0 %v1548
    %1572 = vmatmul.bf16.gmra.mxu0 %v1402
    %v1573 = vpop.f32.mrf.mxu0
    %v1574 = vadd.f32 %v1513, %v1573
    %v1575 = vpop.f32.mrf.mxu0
    %1576 = vdwg.mxu0
    %s1577 = scalar_lea.vmem %s7, 8
    %v1578 = vld [vmem:[%s1577] sm:$0xf]
    %v1580 = vsel %vm1385, %v1578, 0
    %1582 = vmatpush.bf16.msra.mxu0 0
    %1583 = vmatpush.bf16.msra.mxu0 0
    %1584 = vmatpush.bf16.msra.mxu0 0
    %1585 = vmatpush.bf16.msra.mxu0 0
    %1586 = vmatpush.bf16.msra.mxu0 0
    %1587 = vmatpush.bf16.msra.mxu0 0
    %1588 = vmatpush.bf16.msra.mxu0 0
    %1589 = vmatpush.bf16.msra.mxu0 %v1383
    %1590 = vmatmul.bf16.gmra.mxu0 %v1580
    %v1591 = vpop.f32.mrf.mxu0
    %v1592 = vadd.f32 0.0, %v1591
    %v1593 = vpop.f32.mrf.mxu0
    %1594 = vdwg.mxu0
    %v1595 = vpack.c.bf16 %v1592, %v1592
    %s1596 = scalar_lea.vmem %s8, 128
    %v1597 = vld [vmem:[%s1596] sm:$0xf]
    %v1598 = vld [vmem:[%s1596 + $0x4] sm:$0xf]
    %v1599 = vld [vmem:[%s1596 + $0x8] sm:$0xf]
    %v1600 = vld [vmem:[%s1596 + $0xc] sm:$0xf]
    %v1601 = vld [vmem:[%s1596 + $0x10] sm:$0xf]
    %v1602 = vld [vmem:[%s1596 + $0x14] sm:$0xf]
    %v1603 = vld [vmem:[%s1596 + $0x18] sm:$0xf]
    %v1604 = vld [vmem:[%s1596 + $0x1c] sm:$0xf]
    %v1605 = vld [vmem:[%s1596 + $0x20] sm:$0xf]
    %v1606 = vld [vmem:[%s1596 + $0x24] sm:$0xf]
    %v1607 = vld [vmem:[%s1596 + $0x28] sm:$0xf]
    %v1608 = vld [vmem:[%s1596 + $0x2c] sm:$0xf]
    %v1609 = vld [vmem:[%s1596 + $0x30] sm:$0xf]
    %v1610 = vld [vmem:[%s1596 + $0x34] sm:$0xf]
    %v1611 = vld [vmem:[%s1596 + $0x38] sm:$0xf]
    %v1612 = vld [vmem:[%s1596 + $0x3c] sm:$0xf]
    %v1629 = vunpack.c.l.b16 %v1597
    %v1630 = vunpack.c.l.b16 %v1598
    %v1631 = vunpack.c.l.b16 %v1599
    %v1632 = vunpack.c.l.b16 %v1600
    %v1633 = vunpack.c.l.b16 %v1601
    %v1634 = vunpack.c.l.b16 %v1602
    %v1635 = vunpack.c.l.b16 %v1603
    %v1636 = vunpack.c.l.b16 %v1604
    %v1637 = vunpack.c.l.b16 %v1605
    %v1638 = vunpack.c.l.b16 %v1606
    %v1639 = vunpack.c.l.b16 %v1607
    %v1640 = vunpack.c.l.b16 %v1608
    %v1641 = vunpack.c.l.b16 %v1609
    %v1642 = vunpack.c.l.b16 %v1610
    %v1643 = vunpack.c.l.b16 %v1611
    %v1644 = vunpack.c.l.b16 %v1612
    %v1645 = vpack.c.b16 %v1630, %v1629
    %v1646 = vpack.c.b16 %v1632, %v1631
    %v1647 = vpack.c.b16 %v1634, %v1633
    %v1648 = vpack.c.b16 %v1636, %v1635
    %v1649 = vpack.c.b16 %v1638, %v1637
    %v1650 = vpack.c.b16 %v1640, %v1639
    %v1651 = vpack.c.b16 %v1642, %v1641
    %v1652 = vpack.c.b16 %v1644, %v1643
    %1661 = vmatpush.bf16.msra.mxu0 %v1652
    %1662 = vmatpush.bf16.msra.mxu0 %v1651
    %1663 = vmatpush.bf16.msra.mxu0 %v1650
    %1664 = vmatpush.bf16.msra.mxu0 %v1649
    %1665 = vmatpush.bf16.msra.mxu0 %v1648
    %1666 = vmatpush.bf16.msra.mxu0 %v1647
    %1667 = vmatpush.bf16.msra.mxu0 %v1646
    %1668 = vmatpush.bf16.msra.mxu0 %v1645
    %1669 = vmatmul.bf16.gmra.mxu0 %v1595
    %v1670 = vpop.f32.mrf.mxu0
    %v1671 = vadd.f32 0.0, %v1670
    %v1672 = vpop.f32.mrf.mxu0
    %1673 = vdwg.mxu0
    %v1674 = vadd.f32 %v1574, %v1671
    %s1675 = scalar_lea.vmem %s7, 12
    %v1676 = vld [vmem:[%s1675] sm:$0xf]
    %v1678 = vsel %vm1385, %v1676, 0
    %1680 = vmatpush.bf16.msra.mxu0 0
    %1681 = vmatpush.bf16.msra.mxu0 0
    %1682 = vmatpush.bf16.msra.mxu0 0
    %1683 = vmatpush.bf16.msra.mxu0 0
    %1684 = vmatpush.bf16.msra.mxu0 0
    %1685 = vmatpush.bf16.msra.mxu0 0
    %1686 = vmatpush.bf16.msra.mxu0 0
    %1687 = vmatpush.bf16.msra.mxu0 %v1383
    %1688 = vmatmul.bf16.gmra.mxu0 %v1678
    %v1689 = vpop.f32.mrf.mxu0
    %v1690 = vadd.f32 0.0, %v1689
    %v1691 = vpop.f32.mrf.mxu0
    %1692 = vdwg.mxu0
    %v1693 = vpack.c.bf16 %v1690, %v1690
    %s1694 = scalar_lea.vmem %s8, 192
    %v1695 = vld [vmem:[%s1694] sm:$0xf]
    %v1696 = vld [vmem:[%s1694 + $0x4] sm:$0xf]
    %v1697 = vld [vmem:[%s1694 + $0x8] sm:$0xf]
    %v1698 = vld [vmem:[%s1694 + $0xc] sm:$0xf]
    %v1699 = vld [vmem:[%s1694 + $0x10] sm:$0xf]
    %v1700 = vld [vmem:[%s1694 + $0x14] sm:$0xf]
    %v1701 = vld [vmem:[%s1694 + $0x18] sm:$0xf]
    %v1702 = vld [vmem:[%s1694 + $0x1c] sm:$0xf]
    %v1703 = vld [vmem:[%s1694 + $0x20] sm:$0xf]
    %v1704 = vld [vmem:[%s1694 + $0x24] sm:$0xf]
    %v1705 = vld [vmem:[%s1694 + $0x28] sm:$0xf]
    %v1706 = vld [vmem:[%s1694 + $0x2c] sm:$0xf]
    %v1707 = vld [vmem:[%s1694 + $0x30] sm:$0xf]
    %v1708 = vld [vmem:[%s1694 + $0x34] sm:$0xf]
    %v1709 = vld [vmem:[%s1694 + $0x38] sm:$0xf]
    %v1710 = vld [vmem:[%s1694 + $0x3c] sm:$0xf]
    %v1727 = vunpack.c.l.b16 %v1695
    %v1728 = vunpack.c.l.b16 %v1696
    %v1729 = vunpack.c.l.b16 %v1697
    %v1730 = vunpack.c.l.b16 %v1698
    %v1731 = vunpack.c.l.b16 %v1699
    %v1732 = vunpack.c.l.b16 %v1700
    %v1733 = vunpack.c.l.b16 %v1701
    %v1734 = vunpack.c.l.b16 %v1702
    %v1735 = vunpack.c.l.b16 %v1703
    %v1736 = vunpack.c.l.b16 %v1704
    %v1737 = vunpack.c.l.b16 %v1705
    %v1738 = vunpack.c.l.b16 %v1706
    %v1739 = vunpack.c.l.b16 %v1707
    %v1740 = vunpack.c.l.b16 %v1708
    %v1741 = vunpack.c.l.b16 %v1709
    %v1742 = vunpack.c.l.b16 %v1710
    %v1743 = vpack.c.b16 %v1728, %v1727
    %v1744 = vpack.c.b16 %v1730, %v1729
    %v1745 = vpack.c.b16 %v1732, %v1731
    %v1746 = vpack.c.b16 %v1734, %v1733
    %v1747 = vpack.c.b16 %v1736, %v1735
    %v1748 = vpack.c.b16 %v1738, %v1737
    %v1749 = vpack.c.b16 %v1740, %v1739
    %v1750 = vpack.c.b16 %v1742, %v1741
    %1759 = vmatpush.bf16.msra.mxu0 %v1750
    %1760 = vmatpush.bf16.msra.mxu0 %v1749
    %1761 = vmatpush.bf16.msra.mxu0 %v1748
    %1762 = vmatpush.bf16.msra.mxu0 %v1747
    %1763 = vmatpush.bf16.msra.mxu0 %v1746
    %1764 = vmatpush.bf16.msra.mxu0 %v1745
    %1765 = vmatpush.bf16.msra.mxu0 %v1744
    %1766 = vmatpush.bf16.msra.mxu0 %v1743
    %1767 = vmatmul.bf16.gmra.mxu0 %v1693
    %v1768 = vpop.f32.mrf.mxu0
    %v1769 = vadd.f32 0.0, %v1768
    %v1770 = vpop.f32.mrf.mxu0
    %1771 = vdwg.mxu0
    %v1772 = vadd.f32 %v1674, %v1769
    %v1773 = vld [vmem:[%s9] sm:$0x1]
    %v1775 = vperm.slane %v1773, 0
    %v1777 = vadd.f32 %v1772, %v1775
    %vm1778 = vcmp.gt.f32.partialorder %v1777, 0.0
    %v1779 = vmul.f32 %v1777, 0.2
    %v1780 = vsel %vm1778, %v1777, %v1779
    %v1781 = vpack.c.bf16 %v1780, %v1780
    %v1782 = vld [vmem:[%s10] sm:$0x7]
    %vm1783 = vcmask 64512
    %v1785 = vsel %vm1783, %v1782, 0
    %vm1787 = vcmask 1043456
    %v1789 = vsel %vm1787, %v1781, 0
    %1791 = vmatpush.bf16.msra.mxu0 0
    %1792 = vmatpush.bf16.msra.mxu0 0
    %1793 = vmatpush.bf16.msra.mxu0 0
    %1794 = vmatpush.bf16.msra.mxu0 0
    %1795 = vmatpush.bf16.msra.mxu0 0
    %1796 = vmatpush.bf16.msra.mxu0 0
    %1797 = vmatpush.bf16.msra.mxu0 0
    %1798 = vmatpush.bf16.msra.mxu0 %v1789
    %1799 = vmatmul.bf16.gmra.mxu0 %v1785
    %v1800 = vpop.f32.mrf.mxu0
    %v1801 = vadd.f32 0.0, %v1800
    %v1802 = vpop.f32.mrf.mxu0
    %1803 = vdwg.mxu0
    %v1804 = vpack.c.bf16 %v1801, %v1801
    %v1805 = vld [vmem:[%s11] sm:$0xff]
    %v1806 = vld [vmem:[%s11 + $0x8] sm:$0xff]
    %v1807 = vld [vmem:[%s11 + $0x10] sm:$0xff]
    %v1808 = vld [vmem:[%s11 + $0x18] sm:$0xff]
    %v1809 = vld [vmem:[%s11 + $0x20] sm:$0xff]
    %v1810 = vld [vmem:[%s11 + $0x28] sm:$0xff]
    %v1811 = vld [vmem:[%s11 + $0x30] sm:$0xff]
    %v1812 = vld [vmem:[%s11 + $0x38] sm:$0xff]
    %v1813 = vld [vmem:[%s11 + $0x40] sm:$0xff]
    %v1814 = vld [vmem:[%s11 + $0x48] sm:$0xff]
    %v1815 = vld [vmem:[%s11 + $0x50] sm:$0xff]
    %v1816 = vld [vmem:[%s11 + $0x58] sm:$0xff]
    %v1817 = vld [vmem:[%s11 + $0x60] sm:$0xff]
    %v1818 = vld [vmem:[%s11 + $0x68] sm:$0xff]
    %v1819 = vld [vmem:[%s11 + $0x70] sm:$0xff]
    %v1820 = vld [vmem:[%s11 + $0x78] sm:$0xff]
    %s1821 = scalar_lea.vmem %s10, 4
    %v1822 = vld [vmem:[%s1821] sm:$0x7]
    %v1824 = vsel %vm1783, %v1822, 0
    %1826 = vmatpush.bf16.msra.mxu0 0
    %1827 = vmatpush.bf16.msra.mxu0 0
    %1828 = vmatpush.bf16.msra.mxu0 0
    %1829 = vmatpush.bf16.msra.mxu0 0
    %1830 = vmatpush.bf16.msra.mxu0 0
    %1831 = vmatpush.bf16.msra.mxu0 0
    %1832 = vmatpush.bf16.msra.mxu0 0
    %1833 = vmatpush.bf16.msra.mxu0 %v1789
    %1834 = vmatmul.bf16.gmra.mxu0 %v1824
    %v1835 = vpop.f32.mrf.mxu0
    %v1836 = vadd.f32 0.0, %v1835
    %v1837 = vpop.f32.mrf.mxu0
    %1838 = vdwg.mxu0
    %v1839 = vpack.c.bf16 %v1836, %v1836
    %s1840 = scalar_lea.vmem %s11, 128
    %v1841 = vld [vmem:[%s1840] sm:$0xff]
    %v1842 = vld [vmem:[%s1840 + $0x8] sm:$0xff]
    %v1843 = vld [vmem:[%s1840 + $0x10] sm:$0xff]
    %v1844 = vld [vmem:[%s1840 + $0x18] sm:$0xff]
    %v1845 = vld [vmem:[%s1840 + $0x20] sm:$0xff]
    %v1846 = vld [vmem:[%s1840 + $0x28] sm:$0xff]
    %v1847 = vld [vmem:[%s1840 + $0x30] sm:$0xff]
    %v1848 = vld [vmem:[%s1840 + $0x38] sm:$0xff]
    %v1849 = vld [vmem:[%s1840 + $0x40] sm:$0xff]
    %v1850 = vld [vmem:[%s1840 + $0x48] sm:$0xff]
    %v1851 = vld [vmem:[%s1840 + $0x50] sm:$0xff]
    %v1852 = vld [vmem:[%s1840 + $0x58] sm:$0xff]
    %v1853 = vld [vmem:[%s1840 + $0x60] sm:$0xff]
    %v1854 = vld [vmem:[%s1840 + $0x68] sm:$0xff]
    %v1855 = vld [vmem:[%s1840 + $0x70] sm:$0xff]
    %v1856 = vld [vmem:[%s1840 + $0x78] sm:$0xff]
    %v1873 = vunpack.c.l.b16 %v1841
    %v1874 = vunpack.c.h.b16 %v1841
    %v1875 = vunpack.c.l.b16 %v1842
    %v1876 = vunpack.c.h.b16 %v1842
    %v1877 = vunpack.c.l.b16 %v1843
    %v1878 = vunpack.c.h.b16 %v1843
    %v1879 = vunpack.c.l.b16 %v1844
    %v1880 = vunpack.c.h.b16 %v1844
    %v1881 = vunpack.c.l.b16 %v1845
    %v1882 = vunpack.c.h.b16 %v1845
    %v1883 = vunpack.c.l.b16 %v1846
    %v1884 = vunpack.c.h.b16 %v1846
    %v1885 = vunpack.c.l.b16 %v1847
    %v1886 = vunpack.c.h.b16 %v1847
    %v1887 = vunpack.c.l.b16 %v1848
    %v1888 = vunpack.c.h.b16 %v1848
    %v1889 = vunpack.c.l.b16 %v1849
    %v1890 = vunpack.c.h.b16 %v1849
    %v1891 = vunpack.c.l.b16 %v1850
    %v1892 = vunpack.c.h.b16 %v1850
    %v1893 = vunpack.c.l.b16 %v1851
    %v1894 = vunpack.c.h.b16 %v1851
    %v1895 = vunpack.c.l.b16 %v1852
    %v1896 = vunpack.c.h.b16 %v1852
    %v1897 = vunpack.c.l.b16 %v1853
    %v1898 = vunpack.c.h.b16 %v1853
    %v1899 = vunpack.c.l.b16 %v1854
    %v1900 = vunpack.c.h.b16 %v1854
    %v1901 = vunpack.c.l.b16 %v1855
    %v1902 = vunpack.c.h.b16 %v1855
    %v1903 = vunpack.c.l.b16 %v1856
    %v1904 = vunpack.c.h.b16 %v1856
    %v1905 = vpack.c.b16 %v1875, %v1873
    %v1906 = vpack.c.b16 %v1876, %v1874
    %v1907 = vpack.c.b16 %v1879, %v1877
    %v1908 = vpack.c.b16 %v1880, %v1878
    %v1909 = vpack.c.b16 %v1883, %v1881
    %v1910 = vpack.c.b16 %v1884, %v1882
    %v1911 = vpack.c.b16 %v1887, %v1885
    %v1912 = vpack.c.b16 %v1888, %v1886
    %v1913 = vpack.c.b16 %v1891, %v1889
    %v1914 = vpack.c.b16 %v1892, %v1890
    %v1915 = vpack.c.b16 %v1895, %v1893
    %v1916 = vpack.c.b16 %v1896, %v1894
    %v1917 = vpack.c.b16 %v1899, %v1897
    %v1918 = vpack.c.b16 %v1900, %v1898
    %v1919 = vpack.c.b16 %v1903, %v1901
    %v1920 = vpack.c.b16 %v1904, %v1902
    %1937 = vmatpush.bf16.msra.mxu0 %v1919
    %1938 = vmatpush.bf16.msra.mxu0 %v1917
    %1939 = vmatpush.bf16.msra.mxu0 %v1915
    %1940 = vmatpush.bf16.msra.mxu0 %v1913
    %1941 = vmatpush.bf16.msra.mxu0 %v1911
    %1942 = vmatpush.bf16.msra.mxu0 %v1909
    %1943 = vmatpush.bf16.msra.mxu0 %v1907
    %1944 = vmatpush.bf16.msra.mxu0 %v1905
    %1945 = vmatmul.bf16.gmra.mxu0 %v1839
    %v1946 = vpop.f32.mrf.mxu0
    %v1947 = vadd.f32 0.0, %v1946
    %v1948 = vpop.f32.mrf.mxu0
    %1949 = vdwg.mxu0
    %1950 = vmatpush.bf16.msra.mxu0 %v1920
    %1951 = vmatpush.bf16.msra.mxu0 %v1918
    %1952 = vmatpush.bf16.msra.mxu0 %v1916
    %1953 = vmatpush.bf16.msra.mxu0 %v1914
    %1954 = vmatpush.bf16.msra.mxu0 %v1912
    %1955 = vmatpush.bf16.msra.mxu0 %v1910
    %1956 = vmatpush.bf16.msra.mxu0 %v1908
    %1957 = vmatpush.bf16.msra.mxu0 %v1906
    %1958 = vmatmul.bf16.gmra.mxu0 %v1839
    %v1959 = vpop.f32.mrf.mxu0
    %v1960 = vadd.f32 0.0, %v1959
    %v1961 = vpop.f32.mrf.mxu0
    %1962 = vdwg.mxu0
    %v1979 = vunpack.c.l.b16 %v1805
    %v1980 = vunpack.c.h.b16 %v1805
    %v1981 = vunpack.c.l.b16 %v1806
    %v1982 = vunpack.c.h.b16 %v1806
    %v1983 = vunpack.c.l.b16 %v1807
    %v1984 = vunpack.c.h.b16 %v1807
    %v1985 = vunpack.c.l.b16 %v1808
    %v1986 = vunpack.c.h.b16 %v1808
    %v1987 = vunpack.c.l.b16 %v1809
    %v1988 = vunpack.c.h.b16 %v1809
    %v1989 = vunpack.c.l.b16 %v1810
    %v1990 = vunpack.c.h.b16 %v1810
    %v1991 = vunpack.c.l.b16 %v1811
    %v1992 = vunpack.c.h.b16 %v1811
    %v1993 = vunpack.c.l.b16 %v1812
    %v1994 = vunpack.c.h.b16 %v1812
    %v1995 = vunpack.c.l.b16 %v1813
    %v1996 = vunpack.c.h.b16 %v1813
    %v1997 = vunpack.c.l.b16 %v1814
    %v1998 = vunpack.c.h.b16 %v1814
    %v1999 = vunpack.c.l.b16 %v1815
    %v2000 = vunpack.c.h.b16 %v1815
    %v2001 = vunpack.c.l.b16 %v1816
    %v2002 = vunpack.c.h.b16 %v1816
    %v2003 = vunpack.c.l.b16 %v1817
    %v2004 = vunpack.c.h.b16 %v1817
    %v2005 = vunpack.c.l.b16 %v1818
    %v2006 = vunpack.c.h.b16 %v1818
    %v2007 = vunpack.c.l.b16 %v1819
    %v2008 = vunpack.c.h.b16 %v1819
    %v2009 = vunpack.c.l.b16 %v1820
    %v2010 = vunpack.c.h.b16 %v1820
    %v2011 = vpack.c.b16 %v1981, %v1979
    %v2012 = vpack.c.b16 %v1982, %v1980
    %v2013 = vpack.c.b16 %v1985, %v1983
    %v2014 = vpack.c.b16 %v1986, %v1984
    %v2015 = vpack.c.b16 %v1989, %v1987
    %v2016 = vpack.c.b16 %v1990, %v1988
    %v2017 = vpack.c.b16 %v1993, %v1991
    %v2018 = vpack.c.b16 %v1994, %v1992
    %v2019 = vpack.c.b16 %v1997, %v1995
    %v2020 = vpack.c.b16 %v1998, %v1996
    %v2021 = vpack.c.b16 %v2001, %v1999
    %v2022 = vpack.c.b16 %v2002, %v2000
    %v2023 = vpack.c.b16 %v2005, %v2003
    %v2024 = vpack.c.b16 %v2006, %v2004
    %v2025 = vpack.c.b16 %v2009, %v2007
    %v2026 = vpack.c.b16 %v2010, %v2008
    %2043 = vmatpush.bf16.msra.mxu0 %v2025
    %2044 = vmatpush.bf16.msra.mxu0 %v2023
    %2045 = vmatpush.bf16.msra.mxu0 %v2021
    %2046 = vmatpush.bf16.msra.mxu0 %v2019
    %2047 = vmatpush.bf16.msra.mxu0 %v2017
    %2048 = vmatpush.bf16.msra.mxu0 %v2015
    %2049 = vmatpush.bf16.msra.mxu0 %v2013
    %2050 = vmatpush.bf16.msra.mxu0 %v2011
    %2051 = vmatmul.bf16.gmra.mxu0 %v1804
    %v2052 = vpop.f32.mrf.mxu0
    %v2053 = vadd.f32 %v1947, %v2052
    %v2054 = vpop.f32.mrf.mxu0
    %2055 = vdwg.mxu0
    %2056 = vmatpush.bf16.msra.mxu0 %v2026
    %2057 = vmatpush.bf16.msra.mxu0 %v2024
    %2058 = vmatpush.bf16.msra.mxu0 %v2022
    %2059 = vmatpush.bf16.msra.mxu0 %v2020
    %2060 = vmatpush.bf16.msra.mxu0 %v2018
    %2061 = vmatpush.bf16.msra.mxu0 %v2016
    %2062 = vmatpush.bf16.msra.mxu0 %v2014
    %2063 = vmatpush.bf16.msra.mxu0 %v2012
    %2064 = vmatmul.bf16.gmra.mxu0 %v1804
    %v2065 = vpop.f32.mrf.mxu0
    %v2066 = vadd.f32 %v1960, %v2065
    %v2067 = vpop.f32.mrf.mxu0
    %2068 = vdwg.mxu0
    %s2069 = scalar_lea.vmem %s10, 8
    %v2070 = vld [vmem:[%s2069] sm:$0x7]
    %v2072 = vsel %vm1783, %v2070, 0
    %2074 = vmatpush.bf16.msra.mxu0 0
    %2075 = vmatpush.bf16.msra.mxu0 0
    %2076 = vmatpush.bf16.msra.mxu0 0
    %2077 = vmatpush.bf16.msra.mxu0 0
    %2078 = vmatpush.bf16.msra.mxu0 0
    %2079 = vmatpush.bf16.msra.mxu0 0
    %2080 = vmatpush.bf16.msra.mxu0 0
    %2081 = vmatpush.bf16.msra.mxu0 %v1789
    %2082 = vmatmul.bf16.gmra.mxu0 %v2072
    %v2083 = vpop.f32.mrf.mxu0
    %v2084 = vadd.f32 0.0, %v2083
    %v2085 = vpop.f32.mrf.mxu0
    %2086 = vdwg.mxu0
    %v2087 = vpack.c.bf16 %v2084, %v2084
    %s2088 = scalar_lea.vmem %s11, 256
    %v2089 = vld [vmem:[%s2088] sm:$0xff]
    %v2090 = vld [vmem:[%s2088 + $0x8] sm:$0xff]
    %v2091 = vld [vmem:[%s2088 + $0x10] sm:$0xff]
    %v2092 = vld [vmem:[%s2088 + $0x18] sm:$0xff]
    %v2093 = vld [vmem:[%s2088 + $0x20] sm:$0xff]
    %v2094 = vld [vmem:[%s2088 + $0x28] sm:$0xff]
    %v2095 = vld [vmem:[%s2088 + $0x30] sm:$0xff]
    %v2096 = vld [vmem:[%s2088 + $0x38] sm:$0xff]
    %v2097 = vld [vmem:[%s2088 + $0x40] sm:$0xff]
    %v2098 = vld [vmem:[%s2088 + $0x48] sm:$0xff]
    %v2099 = vld [vmem:[%s2088 + $0x50] sm:$0xff]
    %v2100 = vld [vmem:[%s2088 + $0x58] sm:$0xff]
    %v2101 = vld [vmem:[%s2088 + $0x60] sm:$0xff]
    %v2102 = vld [vmem:[%s2088 + $0x68] sm:$0xff]
    %v2103 = vld [vmem:[%s2088 + $0x70] sm:$0xff]
    %v2104 = vld [vmem:[%s2088 + $0x78] sm:$0xff]
    %v2121 = vunpack.c.l.b16 %v2089
    %v2122 = vunpack.c.h.b16 %v2089
    %v2123 = vunpack.c.l.b16 %v2090
    %v2124 = vunpack.c.h.b16 %v2090
    %v2125 = vunpack.c.l.b16 %v2091
    %v2126 = vunpack.c.h.b16 %v2091
    %v2127 = vunpack.c.l.b16 %v2092
    %v2128 = vunpack.c.h.b16 %v2092
    %v2129 = vunpack.c.l.b16 %v2093
    %v2130 = vunpack.c.h.b16 %v2093
    %v2131 = vunpack.c.l.b16 %v2094
    %v2132 = vunpack.c.h.b16 %v2094
    %v2133 = vunpack.c.l.b16 %v2095
    %v2134 = vunpack.c.h.b16 %v2095
    %v2135 = vunpack.c.l.b16 %v2096
    %v2136 = vunpack.c.h.b16 %v2096
    %v2137 = vunpack.c.l.b16 %v2097
    %v2138 = vunpack.c.h.b16 %v2097
    %v2139 = vunpack.c.l.b16 %v2098
    %v2140 = vunpack.c.h.b16 %v2098
    %v2141 = vunpack.c.l.b16 %v2099
    %v2142 = vunpack.c.h.b16 %v2099
    %v2143 = vunpack.c.l.b16 %v2100
    %v2144 = vunpack.c.h.b16 %v2100
    %v2145 = vunpack.c.l.b16 %v2101
    %v2146 = vunpack.c.h.b16 %v2101
    %v2147 = vunpack.c.l.b16 %v2102
    %v2148 = vunpack.c.h.b16 %v2102
    %v2149 = vunpack.c.l.b16 %v2103
    %v2150 = vunpack.c.h.b16 %v2103
    %v2151 = vunpack.c.l.b16 %v2104
    %v2152 = vunpack.c.h.b16 %v2104
    %v2153 = vpack.c.b16 %v2123, %v2121
    %v2154 = vpack.c.b16 %v2124, %v2122
    %v2155 = vpack.c.b16 %v2127, %v2125
    %v2156 = vpack.c.b16 %v2128, %v2126
    %v2157 = vpack.c.b16 %v2131, %v2129
    %v2158 = vpack.c.b16 %v2132, %v2130
    %v2159 = vpack.c.b16 %v2135, %v2133
    %v2160 = vpack.c.b16 %v2136, %v2134
    %v2161 = vpack.c.b16 %v2139, %v2137
    %v2162 = vpack.c.b16 %v2140, %v2138
    %v2163 = vpack.c.b16 %v2143, %v2141
    %v2164 = vpack.c.b16 %v2144, %v2142
    %v2165 = vpack.c.b16 %v2147, %v2145
    %v2166 = vpack.c.b16 %v2148, %v2146
    %v2167 = vpack.c.b16 %v2151, %v2149
    %v2168 = vpack.c.b16 %v2152, %v2150
    %2185 = vmatpush.bf16.msra.mxu0 %v2167
    %2186 = vmatpush.bf16.msra.mxu0 %v2165
    %2187 = vmatpush.bf16.msra.mxu0 %v2163
    %2188 = vmatpush.bf16.msra.mxu0 %v2161
    %2189 = vmatpush.bf16.msra.mxu0 %v2159
    %2190 = vmatpush.bf16.msra.mxu0 %v2157
    %2191 = vmatpush.bf16.msra.mxu0 %v2155
    %2192 = vmatpush.bf16.msra.mxu0 %v2153
    %2193 = vmatmul.bf16.gmra.mxu0 %v2087
    %v2194 = vpop.f32.mrf.mxu0
    %v2195 = vadd.f32 0.0, %v2194
    %v2196 = vpop.f32.mrf.mxu0
    %2197 = vdwg.mxu0
    %2198 = vmatpush.bf16.msra.mxu0 %v2168
    %2199 = vmatpush.bf16.msra.mxu0 %v2166
    %2200 = vmatpush.bf16.msra.mxu0 %v2164
    %2201 = vmatpush.bf16.msra.mxu0 %v2162
    %2202 = vmatpush.bf16.msra.mxu0 %v2160
    %2203 = vmatpush.bf16.msra.mxu0 %v2158
    %2204 = vmatpush.bf16.msra.mxu0 %v2156
    %2205 = vmatpush.bf16.msra.mxu0 %v2154
    %2206 = vmatmul.bf16.gmra.mxu0 %v2087
    %v2207 = vpop.f32.mrf.mxu0
    %v2208 = vadd.f32 0.0, %v2207
    %v2209 = vpop.f32.mrf.mxu0
    %2210 = vdwg.mxu0
    %v2211 = vadd.f32 %v2053, %v2195
    %v2212 = vadd.f32 %v2066, %v2208
    %s2213 = scalar_lea.vmem %s10, 12
    %v2214 = vld [vmem:[%s2213] sm:$0x7]
    %v2216 = vsel %vm1783, %v2214, 0
    %2218 = vmatpush.bf16.msra.mxu0 0
    %2219 = vmatpush.bf16.msra.mxu0 0
    %2220 = vmatpush.bf16.msra.mxu0 0
    %2221 = vmatpush.bf16.msra.mxu0 0
    %2222 = vmatpush.bf16.msra.mxu0 0
    %2223 = vmatpush.bf16.msra.mxu0 0
    %2224 = vmatpush.bf16.msra.mxu0 0
    %2225 = vmatpush.bf16.msra.mxu0 %v1789
    %2226 = vmatmul.bf16.gmra.mxu0 %v2216
    %v2227 = vpop.f32.mrf.mxu0
    %v2228 = vadd.f32 0.0, %v2227
    %v2229 = vpop.f32.mrf.mxu0
    %2230 = vdwg.mxu0
    %v2231 = vpack.c.bf16 %v2228, %v2228
    %s2232 = scalar_lea.vmem %s11, 384
    %v2233 = vld [vmem:[%s2232] sm:$0xff]
    %v2234 = vld [vmem:[%s2232 + $0x8] sm:$0xff]
    %v2235 = vld [vmem:[%s2232 + $0x10] sm:$0xff]
    %v2236 = vld [vmem:[%s2232 + $0x18] sm:$0xff]
    %v2237 = vld [vmem:[%s2232 + $0x20] sm:$0xff]
    %v2238 = vld [vmem:[%s2232 + $0x28] sm:$0xff]
    %v2239 = vld [vmem:[%s2232 + $0x30] sm:$0xff]
    %v2240 = vld [vmem:[%s2232 + $0x38] sm:$0xff]
    %v2241 = vld [vmem:[%s2232 + $0x40] sm:$0xff]
    %v2242 = vld [vmem:[%s2232 + $0x48] sm:$0xff]
    %v2243 = vld [vmem:[%s2232 + $0x50] sm:$0xff]
    %v2244 = vld [vmem:[%s2232 + $0x58] sm:$0xff]
    %v2245 = vld [vmem:[%s2232 + $0x60] sm:$0xff]
    %v2246 = vld [vmem:[%s2232 + $0x68] sm:$0xff]
    %v2247 = vld [vmem:[%s2232 + $0x70] sm:$0xff]
    %v2248 = vld [vmem:[%s2232 + $0x78] sm:$0xff]
    %v2265 = vunpack.c.l.b16 %v2233
    %v2266 = vunpack.c.h.b16 %v2233
    %v2267 = vunpack.c.l.b16 %v2234
    %v2268 = vunpack.c.h.b16 %v2234
    %v2269 = vunpack.c.l.b16 %v2235
    %v2270 = vunpack.c.h.b16 %v2235
    %v2271 = vunpack.c.l.b16 %v2236
    %v2272 = vunpack.c.h.b16 %v2236
    %v2273 = vunpack.c.l.b16 %v2237
    %v2274 = vunpack.c.h.b16 %v2237
    %v2275 = vunpack.c.l.b16 %v2238
    %v2276 = vunpack.c.h.b16 %v2238
    %v2277 = vunpack.c.l.b16 %v2239
    %v2278 = vunpack.c.h.b16 %v2239
    %v2279 = vunpack.c.l.b16 %v2240
    %v2280 = vunpack.c.h.b16 %v2240
    %v2281 = vunpack.c.l.b16 %v2241
    %v2282 = vunpack.c.h.b16 %v2241
    %v2283 = vunpack.c.l.b16 %v2242
    %v2284 = vunpack.c.h.b16 %v2242
    %v2285 = vunpack.c.l.b16 %v2243
    %v2286 = vunpack.c.h.b16 %v2243
    %v2287 = vunpack.c.l.b16 %v2244
    %v2288 = vunpack.c.h.b16 %v2244
    %v2289 = vunpack.c.l.b16 %v2245
    %v2290 = vunpack.c.h.b16 %v2245
    %v2291 = vunpack.c.l.b16 %v2246
    %v2292 = vunpack.c.h.b16 %v2246
    %v2293 = vunpack.c.l.b16 %v2247
    %v2294 = vunpack.c.h.b16 %v2247
    %v2295 = vunpack.c.l.b16 %v2248
    %v2296 = vunpack.c.h.b16 %v2248
    %v2297 = vpack.c.b16 %v2267, %v2265
    %v2298 = vpack.c.b16 %v2268, %v2266
    %v2299 = vpack.c.b16 %v2271, %v2269
    %v2300 = vpack.c.b16 %v2272, %v2270
    %v2301 = vpack.c.b16 %v2275, %v2273
    %v2302 = vpack.c.b16 %v2276, %v2274
    %v2303 = vpack.c.b16 %v2279, %v2277
    %v2304 = vpack.c.b16 %v2280, %v2278
    %v2305 = vpack.c.b16 %v2283, %v2281
    %v2306 = vpack.c.b16 %v2284, %v2282
    %v2307 = vpack.c.b16 %v2287, %v2285
    %v2308 = vpack.c.b16 %v2288, %v2286
    %v2309 = vpack.c.b16 %v2291, %v2289
    %v2310 = vpack.c.b16 %v2292, %v2290
    %v2311 = vpack.c.b16 %v2295, %v2293
    %v2312 = vpack.c.b16 %v2296, %v2294
    %2329 = vmatpush.bf16.msra.mxu0 %v2311
    %2330 = vmatpush.bf16.msra.mxu0 %v2309
    %2331 = vmatpush.bf16.msra.mxu0 %v2307
    %2332 = vmatpush.bf16.msra.mxu0 %v2305
    %2333 = vmatpush.bf16.msra.mxu0 %v2303
    %2334 = vmatpush.bf16.msra.mxu0 %v2301
    %2335 = vmatpush.bf16.msra.mxu0 %v2299
    %2336 = vmatpush.bf16.msra.mxu0 %v2297
    %2337 = vmatmul.bf16.gmra.mxu0 %v2231
    %v2338 = vpop.f32.mrf.mxu0
    %v2339 = vadd.f32 0.0, %v2338
    %v2340 = vpop.f32.mrf.mxu0
    %2341 = vdwg.mxu0
    %2342 = vmatpush.bf16.msra.mxu0 %v2312
    %2343 = vmatpush.bf16.msra.mxu0 %v2310
    %2344 = vmatpush.bf16.msra.mxu0 %v2308
    %2345 = vmatpush.bf16.msra.mxu0 %v2306
    %2346 = vmatpush.bf16.msra.mxu0 %v2304
    %2347 = vmatpush.bf16.msra.mxu0 %v2302
    %2348 = vmatpush.bf16.msra.mxu0 %v2300
    %2349 = vmatpush.bf16.msra.mxu0 %v2298
    %2350 = vmatmul.bf16.gmra.mxu0 %v2231
    %v2351 = vpop.f32.mrf.mxu0
    %v2352 = vadd.f32 0.0, %v2351
    %v2353 = vpop.f32.mrf.mxu0
    %2354 = vdwg.mxu0
    %v2355 = vadd.f32 %v2211, %v2339
    %v2356 = vadd.f32 %v2212, %v2352
    %v2357 = vld [vmem:[%s12] sm:$0x3]
    %v2359 = vperm.slane %v2357, 0
    %v2360 = vperm.slane %v2357, 1
    %v2363 = vadd.f32 %v2355, %v2359
    %v2364 = vadd.f32 %v2356, %v2360
    %vm2365 = vcmp.gt.f32.partialorder %v2363, 0.0
    %vm2366 = vcmp.gt.f32.partialorder %v2364, 0.0
    %v2367 = vmul.f32 %v2363, 0.2
    %v2368 = vmul.f32 %v2364, 0.2
    %v2369 = vsel %vm2365, %v2363, %v2367
    %v2370 = vsel %vm2366, %v2364, %v2368
    %v2371 = vpack.c.bf16 %v2369, %v2369
    %v2372 = vpack.c.bf16 %v2370, %v2370
    %v2373 = vld [vmem:[%s13] sm:$0x3]
    %vm2374 = vcmask 48128
    %v2376 = vsel %vm2374, %v2373, 0
    %vm2378 = vcmask 1042432
    %v2380 = vsel %vm2378, %v2371, 0
    %v2383 = vsel %vm2378, %v2372, 0
    %2385 = vmatpush.bf16.msra.mxu0 0
    %2386 = vmatpush.bf16.msra.mxu0 0
    %2387 = vmatpush.bf16.msra.mxu0 0
    %2388 = vmatpush.bf16.msra.mxu0 0
    %2389 = vmatpush.bf16.msra.mxu0 0
    %2390 = vmatpush.bf16.msra.mxu0 0
    %2391 = vmatpush.bf16.msra.mxu0 0
    %2392 = vmatpush.bf16.msra.mxu0 %v2380
    %2393 = vmatmul.bf16.gmra.mxu0 %v2376
    %v2394 = vpop.f32.mrf.mxu0
    %v2395 = vadd.f32 0.0, %v2394
    %v2396 = vpop.f32.mrf.mxu0
    %2397 = vdwg.mxu0
    %2398 = vmatpush.bf16.msra.mxu0 0
    %2399 = vmatpush.bf16.msra.mxu0 0
    %2400 = vmatpush.bf16.msra.mxu0 0
    %2401 = vmatpush.bf16.msra.mxu0 0
    %2402 = vmatpush.bf16.msra.mxu0 0
    %2403 = vmatpush.bf16.msra.mxu0 0
    %2404 = vmatpush.bf16.msra.mxu0 0
    %2405 = vmatpush.bf16.msra.mxu0 %v2383
    %2406 = vmatmul.bf16.gmra.mxu0 %v2376
    %v2407 = vpop.f32.mrf.mxu0
    %v2408 = vadd.f32 0.0, %v2407
    %v2409 = vpop.f32.mrf.mxu0
    %2410 = vdwg.mxu0
    %v2411 = vpack.c.bf16 %v2395, %v2395
    %v2412 = vpack.c.bf16 %v2408, %v2408
    %v2413 = vld [vmem:[%s14] sm:$0xf]
    %v2414 = vld [vmem:[%s14 + $0x4] sm:$0xf]
    %v2415 = vld [vmem:[%s14 + $0x8] sm:$0xf]
    %v2416 = vld [vmem:[%s14 + $0xc] sm:$0xf]
    %v2417 = vld [vmem:[%s14 + $0x10] sm:$0xf]
    %v2418 = vld [vmem:[%s14 + $0x14] sm:$0xf]
    %v2419 = vld [vmem:[%s14 + $0x18] sm:$0xf]
    %v2420 = vld [vmem:[%s14 + $0x1c] sm:$0xf]
    %v2421 = vld [vmem:[%s14 + $0x20] sm:$0xf]
    %v2422 = vld [vmem:[%s14 + $0x24] sm:$0xf]
    %v2423 = vld [vmem:[%s14 + $0x28] sm:$0xf]
    %v2424 = vld [vmem:[%s14 + $0x2c] sm:$0xf]
    %v2425 = vld [vmem:[%s14 + $0x30] sm:$0xf]
    %v2426 = vld [vmem:[%s14 + $0x34] sm:$0xf]
    %v2427 = vld [vmem:[%s14 + $0x38] sm:$0xf]
    %v2428 = vld [vmem:[%s14 + $0x3c] sm:$0xf]
    %v2429 = vld [vmem:[%s14 + $0x40] sm:$0xf]
    %v2430 = vld [vmem:[%s14 + $0x44] sm:$0xf]
    %v2431 = vld [vmem:[%s14 + $0x48] sm:$0xf]
    %v2432 = vld [vmem:[%s14 + $0x4c] sm:$0xf]
    %v2433 = vld [vmem:[%s14 + $0x50] sm:$0xf]
    %v2434 = vld [vmem:[%s14 + $0x54] sm:$0xf]
    %v2435 = vld [vmem:[%s14 + $0x58] sm:$0xf]
    %v2436 = vld [vmem:[%s14 + $0x5c] sm:$0xf]
    %s2437 = scalar_lea.vmem %s13, 2
    %v2438 = vld [vmem:[%s2437] sm:$0x3]
    %v2440 = vsel %vm2374, %v2438, 0
    %2442 = vmatpush.bf16.msra.mxu0 0
    %2443 = vmatpush.bf16.msra.mxu0 0
    %2444 = vmatpush.bf16.msra.mxu0 0
    %2445 = vmatpush.bf16.msra.mxu0 0
    %2446 = vmatpush.bf16.msra.mxu0 0
    %2447 = vmatpush.bf16.msra.mxu0 0
    %2448 = vmatpush.bf16.msra.mxu0 0
    %2449 = vmatpush.bf16.msra.mxu0 %v2380
    %2450 = vmatmul.bf16.gmra.mxu0 %v2440
    %v2451 = vpop.f32.mrf.mxu0
    %v2452 = vadd.f32 0.0, %v2451
    %v2453 = vpop.f32.mrf.mxu0
    %2454 = vdwg.mxu0
    %2455 = vmatpush.bf16.msra.mxu0 0
    %2456 = vmatpush.bf16.msra.mxu0 0
    %2457 = vmatpush.bf16.msra.mxu0 0
    %2458 = vmatpush.bf16.msra.mxu0 0
    %2459 = vmatpush.bf16.msra.mxu0 0
    %2460 = vmatpush.bf16.msra.mxu0 0
    %2461 = vmatpush.bf16.msra.mxu0 0
    %2462 = vmatpush.bf16.msra.mxu0 %v2383
    %2463 = vmatmul.bf16.gmra.mxu0 %v2440
    %v2464 = vpop.f32.mrf.mxu0
    %v2465 = vadd.f32 0.0, %v2464
    %v2466 = vpop.f32.mrf.mxu0
    %2467 = vdwg.mxu0
    %v2468 = vpack.c.bf16 %v2452, %v2452
    %v2469 = vpack.c.bf16 %v2465, %v2465
    %s2470 = scalar_lea.vmem %s14, 96
    %v2471 = vld [vmem:[%s2470] sm:$0xf]
    %v2472 = vld [vmem:[%s2470 + $0x4] sm:$0xf]
    %v2473 = vld [vmem:[%s2470 + $0x8] sm:$0xf]
    %v2474 = vld [vmem:[%s2470 + $0xc] sm:$0xf]
    %v2475 = vld [vmem:[%s2470 + $0x10] sm:$0xf]
    %v2476 = vld [vmem:[%s2470 + $0x14] sm:$0xf]
    %v2477 = vld [vmem:[%s2470 + $0x18] sm:$0xf]
    %v2478 = vld [vmem:[%s2470 + $0x1c] sm:$0xf]
    %v2479 = vld [vmem:[%s2470 + $0x20] sm:$0xf]
    %v2480 = vld [vmem:[%s2470 + $0x24] sm:$0xf]
    %v2481 = vld [vmem:[%s2470 + $0x28] sm:$0xf]
    %v2482 = vld [vmem:[%s2470 + $0x2c] sm:$0xf]
    %v2483 = vld [vmem:[%s2470 + $0x30] sm:$0xf]
    %v2484 = vld [vmem:[%s2470 + $0x34] sm:$0xf]
    %v2485 = vld [vmem:[%s2470 + $0x38] sm:$0xf]
    %v2486 = vld [vmem:[%s2470 + $0x3c] sm:$0xf]
    %v2487 = vld [vmem:[%s2470 + $0x40] sm:$0xf]
    %v2488 = vld [vmem:[%s2470 + $0x44] sm:$0xf]
    %v2489 = vld [vmem:[%s2470 + $0x48] sm:$0xf]
    %v2490 = vld [vmem:[%s2470 + $0x4c] sm:$0xf]
    %v2491 = vld [vmem:[%s2470 + $0x50] sm:$0xf]
    %v2492 = vld [vmem:[%s2470 + $0x54] sm:$0xf]
    %v2493 = vld [vmem:[%s2470 + $0x58] sm:$0xf]
    %v2494 = vld [vmem:[%s2470 + $0x5c] sm:$0xf]
    %v2519 = vunpack.c.l.b16 %v2471
    %v2520 = vunpack.c.l.b16 %v2472
    %v2521 = vunpack.c.l.b16 %v2473
    %v2522 = vunpack.c.l.b16 %v2474
    %v2523 = vunpack.c.l.b16 %v2475
    %v2524 = vunpack.c.l.b16 %v2476
    %v2525 = vunpack.c.l.b16 %v2477
    %v2526 = vunpack.c.l.b16 %v2478
    %v2527 = vunpack.c.l.b16 %v2479
    %v2528 = vunpack.c.l.b16 %v2480
    %v2529 = vunpack.c.l.b16 %v2481
    %v2530 = vunpack.c.l.b16 %v2482
    %v2531 = vunpack.c.l.b16 %v2483
    %v2532 = vunpack.c.l.b16 %v2484
    %v2533 = vunpack.c.l.b16 %v2485
    %v2534 = vunpack.c.l.b16 %v2486
    %v2535 = vunpack.c.l.b16 %v2487
    %v2536 = vunpack.c.l.b16 %v2488
    %v2537 = vunpack.c.l.b16 %v2489
    %v2538 = vunpack.c.l.b16 %v2490
    %v2539 = vunpack.c.l.b16 %v2491
    %v2540 = vunpack.c.l.b16 %v2492
    %v2541 = vunpack.c.l.b16 %v2493
    %v2542 = vunpack.c.l.b16 %v2494
    %v2543 = vpack.c.b16 %v2520, %v2519
    %v2544 = vpack.c.b16 %v2522, %v2521
    %v2545 = vpack.c.b16 %v2524, %v2523
    %v2546 = vpack.c.b16 %v2526, %v2525
    %v2547 = vpack.c.b16 %v2528, %v2527
    %v2548 = vpack.c.b16 %v2530, %v2529
    %v2549 = vpack.c.b16 %v2532, %v2531
    %v2550 = vpack.c.b16 %v2534, %v2533
    %v2551 = vpack.c.b16 %v2536, %v2535
    %v2552 = vpack.c.b16 %v2538, %v2537
    %v2553 = vpack.c.b16 %v2540, %v2539
    %v2554 = vpack.c.b16 %v2542, %v2541
    %v2568 = vsel %vm117, %v2469, 0
    %2570 = vmatpush.bf16.msra.mxu0 %v2550
    %2571 = vmatpush.bf16.msra.mxu0 %v2549
    %2572 = vmatpush.bf16.msra.mxu0 %v2548
    %2573 = vmatpush.bf16.msra.mxu0 %v2547
    %2574 = vmatpush.bf16.msra.mxu0 %v2546
    %2575 = vmatpush.bf16.msra.mxu0 %v2545
    %2576 = vmatpush.bf16.msra.mxu0 %v2544
    %2577 = vmatpush.bf16.msra.mxu0 %v2543
    %2578 = vmatmul.bf16.gmra.mxu0 %v2468
    %v2579 = vpop.f32.mrf.mxu0
    %v2580 = vadd.f32 0.0, %v2579
    %v2581 = vpop.f32.mrf.mxu0
    %2582 = vdwg.mxu0
    %2583 = vmatpush.bf16.msra.mxu0 0
    %2584 = vmatpush.bf16.msra.mxu0 0
    %2585 = vmatpush.bf16.msra.mxu0 0
    %2586 = vmatpush.bf16.msra.mxu0 0
    %2587 = vmatpush.bf16.msra.mxu0 %v2554
    %2588 = vmatpush.bf16.msra.mxu0 %v2553
    %2589 = vmatpush.bf16.msra.mxu0 %v2552
    %2590 = vmatpush.bf16.msra.mxu0 %v2551
    %2591 = vmatmul.bf16.gmra.mxu0 %v2568
    %v2592 = vpop.f32.mrf.mxu0
    %v2593 = vadd.f32 %v2580, %v2592
    %v2594 = vpop.f32.mrf.mxu0
    %2595 = vdwg.mxu0
    %v2620 = vunpack.c.l.b16 %v2413
    %v2621 = vunpack.c.l.b16 %v2414
    %v2622 = vunpack.c.l.b16 %v2415
    %v2623 = vunpack.c.l.b16 %v2416
    %v2624 = vunpack.c.l.b16 %v2417
    %v2625 = vunpack.c.l.b16 %v2418
    %v2626 = vunpack.c.l.b16 %v2419
    %v2627 = vunpack.c.l.b16 %v2420
    %v2628 = vunpack.c.l.b16 %v2421
    %v2629 = vunpack.c.l.b16 %v2422
    %v2630 = vunpack.c.l.b16 %v2423
    %v2631 = vunpack.c.l.b16 %v2424
    %v2632 = vunpack.c.l.b16 %v2425
    %v2633 = vunpack.c.l.b16 %v2426
    %v2634 = vunpack.c.l.b16 %v2427
    %v2635 = vunpack.c.l.b16 %v2428
    %v2636 = vunpack.c.l.b16 %v2429
    %v2637 = vunpack.c.l.b16 %v2430
    %v2638 = vunpack.c.l.b16 %v2431
    %v2639 = vunpack.c.l.b16 %v2432
    %v2640 = vunpack.c.l.b16 %v2433
    %v2641 = vunpack.c.l.b16 %v2434
    %v2642 = vunpack.c.l.b16 %v2435
    %v2643 = vunpack.c.l.b16 %v2436
    %v2644 = vpack.c.b16 %v2621, %v2620
    %v2645 = vpack.c.b16 %v2623, %v2622
    %v2646 = vpack.c.b16 %v2625, %v2624
    %v2647 = vpack.c.b16 %v2627, %v2626
    %v2648 = vpack.c.b16 %v2629, %v2628
    %v2649 = vpack.c.b16 %v2631, %v2630
    %v2650 = vpack.c.b16 %v2633, %v2632
    %v2651 = vpack.c.b16 %v2635, %v2634
    %v2652 = vpack.c.b16 %v2637, %v2636
    %v2653 = vpack.c.b16 %v2639, %v2638
    %v2654 = vpack.c.b16 %v2641, %v2640
    %v2655 = vpack.c.b16 %v2643, %v2642
    %v2669 = vsel %vm117, %v2412, 0
    %2671 = vmatpush.bf16.msra.mxu0 %v2651
    %2672 = vmatpush.bf16.msra.mxu0 %v2650
    %2673 = vmatpush.bf16.msra.mxu0 %v2649
    %2674 = vmatpush.bf16.msra.mxu0 %v2648
    %2675 = vmatpush.bf16.msra.mxu0 %v2647
    %2676 = vmatpush.bf16.msra.mxu0 %v2646
    %2677 = vmatpush.bf16.msra.mxu0 %v2645
    %2678 = vmatpush.bf16.msra.mxu0 %v2644
    %2679 = vmatmul.bf16.gmra.mxu0 %v2411
    %v2680 = vpop.f32.mrf.mxu0
    %v2681 = vadd.f32 %v2593, %v2680
    %v2682 = vpop.f32.mrf.mxu0
    %2683 = vdwg.mxu0
    %2684 = vmatpush.bf16.msra.mxu0 0
    %2685 = vmatpush.bf16.msra.mxu0 0
    %2686 = vmatpush.bf16.msra.mxu0 0
    %2687 = vmatpush.bf16.msra.mxu0 0
    %2688 = vmatpush.bf16.msra.mxu0 %v2655
    %2689 = vmatpush.bf16.msra.mxu0 %v2654
    %2690 = vmatpush.bf16.msra.mxu0 %v2653
    %2691 = vmatpush.bf16.msra.mxu0 %v2652
    %2692 = vmatmul.bf16.gmra.mxu0 %v2669
    %v2693 = vpop.f32.mrf.mxu0
    %v2694 = vadd.f32 %v2681, %v2693
    %v2695 = vpop.f32.mrf.mxu0
    %2696 = vdwg.mxu0
    %s2697 = scalar_lea.vmem %s13, 4
    %v2698 = vld [vmem:[%s2697] sm:$0x3]
    %v2700 = vsel %vm2374, %v2698, 0
    %2702 = vmatpush.bf16.msra.mxu0 0
    %2703 = vmatpush.bf16.msra.mxu0 0
    %2704 = vmatpush.bf16.msra.mxu0 0
    %2705 = vmatpush.bf16.msra.mxu0 0
    %2706 = vmatpush.bf16.msra.mxu0 0
    %2707 = vmatpush.bf16.msra.mxu0 0
    %2708 = vmatpush.bf16.msra.mxu0 0
    %2709 = vmatpush.bf16.msra.mxu0 %v2380
    %2710 = vmatmul.bf16.gmra.mxu0 %v2700
    %v2711 = vpop.f32.mrf.mxu0
    %v2712 = vadd.f32 0.0, %v2711
    %v2713 = vpop.f32.mrf.mxu0
    %2714 = vdwg.mxu0
    %2715 = vmatpush.bf16.msra.mxu0 0
    %2716 = vmatpush.bf16.msra.mxu0 0
    %2717 = vmatpush.bf16.msra.mxu0 0
    %2718 = vmatpush.bf16.msra.mxu0 0
    %2719 = vmatpush.bf16.msra.mxu0 0
    %2720 = vmatpush.bf16.msra.mxu0 0
    %2721 = vmatpush.bf16.msra.mxu0 0
    %2722 = vmatpush.bf16.msra.mxu0 %v2383
    %2723 = vmatmul.bf16.gmra.mxu0 %v2700
    %v2724 = vpop.f32.mrf.mxu0
    %v2725 = vadd.f32 0.0, %v2724
    %v2726 = vpop.f32.mrf.mxu0
    %2727 = vdwg.mxu0
    %v2728 = vpack.c.bf16 %v2712, %v2712
    %v2729 = vpack.c.bf16 %v2725, %v2725
    %s2730 = scalar_lea.vmem %s14, 192
    %v2731 = vld [vmem:[%s2730] sm:$0xf]
    %v2732 = vld [vmem:[%s2730 + $0x4] sm:$0xf]
    %v2733 = vld [vmem:[%s2730 + $0x8] sm:$0xf]
    %v2734 = vld [vmem:[%s2730 + $0xc] sm:$0xf]
    %v2735 = vld [vmem:[%s2730 + $0x10] sm:$0xf]
    %v2736 = vld [vmem:[%s2730 + $0x14] sm:$0xf]
    %v2737 = vld [vmem:[%s2730 + $0x18] sm:$0xf]
    %v2738 = vld [vmem:[%s2730 + $0x1c] sm:$0xf]
    %v2739 = vld [vmem:[%s2730 + $0x20] sm:$0xf]
    %v2740 = vld [vmem:[%s2730 + $0x24] sm:$0xf]
    %v2741 = vld [vmem:[%s2730 + $0x28] sm:$0xf]
    %v2742 = vld [vmem:[%s2730 + $0x2c] sm:$0xf]
    %v2743 = vld [vmem:[%s2730 + $0x30] sm:$0xf]
    %v2744 = vld [vmem:[%s2730 + $0x34] sm:$0xf]
    %v2745 = vld [vmem:[%s2730 + $0x38] sm:$0xf]
    %v2746 = vld [vmem:[%s2730 + $0x3c] sm:$0xf]
    %v2747 = vld [vmem:[%s2730 + $0x40] sm:$0xf]
    %v2748 = vld [vmem:[%s2730 + $0x44] sm:$0xf]
    %v2749 = vld [vmem:[%s2730 + $0x48] sm:$0xf]
    %v2750 = vld [vmem:[%s2730 + $0x4c] sm:$0xf]
    %v2751 = vld [vmem:[%s2730 + $0x50] sm:$0xf]
    %v2752 = vld [vmem:[%s2730 + $0x54] sm:$0xf]
    %v2753 = vld [vmem:[%s2730 + $0x58] sm:$0xf]
    %v2754 = vld [vmem:[%s2730 + $0x5c] sm:$0xf]
    %v2779 = vunpack.c.l.b16 %v2731
    %v2780 = vunpack.c.l.b16 %v2732
    %v2781 = vunpack.c.l.b16 %v2733
    %v2782 = vunpack.c.l.b16 %v2734
    %v2783 = vunpack.c.l.b16 %v2735
    %v2784 = vunpack.c.l.b16 %v2736
    %v2785 = vunpack.c.l.b16 %v2737
    %v2786 = vunpack.c.l.b16 %v2738
    %v2787 = vunpack.c.l.b16 %v2739
    %v2788 = vunpack.c.l.b16 %v2740
    %v2789 = vunpack.c.l.b16 %v2741
    %v2790 = vunpack.c.l.b16 %v2742
    %v2791 = vunpack.c.l.b16 %v2743
    %v2792 = vunpack.c.l.b16 %v2744
    %v2793 = vunpack.c.l.b16 %v2745
    %v2794 = vunpack.c.l.b16 %v2746
    %v2795 = vunpack.c.l.b16 %v2747
    %v2796 = vunpack.c.l.b16 %v2748
    %v2797 = vunpack.c.l.b16 %v2749
    %v2798 = vunpack.c.l.b16 %v2750
    %v2799 = vunpack.c.l.b16 %v2751
    %v2800 = vunpack.c.l.b16 %v2752
    %v2801 = vunpack.c.l.b16 %v2753
    %v2802 = vunpack.c.l.b16 %v2754
    %v2803 = vpack.c.b16 %v2780, %v2779
    %v2804 = vpack.c.b16 %v2782, %v2781
    %v2805 = vpack.c.b16 %v2784, %v2783
    %v2806 = vpack.c.b16 %v2786, %v2785
    %v2807 = vpack.c.b16 %v2788, %v2787
    %v2808 = vpack.c.b16 %v2790, %v2789
    %v2809 = vpack.c.b16 %v2792, %v2791
    %v2810 = vpack.c.b16 %v2794, %v2793
    %v2811 = vpack.c.b16 %v2796, %v2795
    %v2812 = vpack.c.b16 %v2798, %v2797
    %v2813 = vpack.c.b16 %v2800, %v2799
    %v2814 = vpack.c.b16 %v2802, %v2801
    %v2828 = vsel %vm117, %v2729, 0
    %2830 = vmatpush.bf16.msra.mxu0 %v2810
    %2831 = vmatpush.bf16.msra.mxu0 %v2809
    %2832 = vmatpush.bf16.msra.mxu0 %v2808
    %2833 = vmatpush.bf16.msra.mxu0 %v2807
    %2834 = vmatpush.bf16.msra.mxu0 %v2806
    %2835 = vmatpush.bf16.msra.mxu0 %v2805
    %2836 = vmatpush.bf16.msra.mxu0 %v2804
    %2837 = vmatpush.bf16.msra.mxu0 %v2803
    %2838 = vmatmul.bf16.gmra.mxu0 %v2728
    %v2839 = vpop.f32.mrf.mxu0
    %v2840 = vadd.f32 0.0, %v2839
    %v2841 = vpop.f32.mrf.mxu0
    %2842 = vdwg.mxu0
    %2843 = vmatpush.bf16.msra.mxu0 0
    %2844 = vmatpush.bf16.msra.mxu0 0
    %2845 = vmatpush.bf16.msra.mxu0 0
    %2846 = vmatpush.bf16.msra.mxu0 0
    %2847 = vmatpush.bf16.msra.mxu0 %v2814
    %2848 = vmatpush.bf16.msra.mxu0 %v2813
    %2849 = vmatpush.bf16.msra.mxu0 %v2812
    %2850 = vmatpush.bf16.msra.mxu0 %v2811
    %2851 = vmatmul.bf16.gmra.mxu0 %v2828
    %v2852 = vpop.f32.mrf.mxu0
    %v2853 = vadd.f32 %v2840, %v2852
    %v2854 = vpop.f32.mrf.mxu0
    %2855 = vdwg.mxu0
    %v2856 = vadd.f32 %v2694, %v2853
    %s2857 = scalar_lea.vmem %s13, 6
    %v2858 = vld [vmem:[%s2857] sm:$0x3]
    %v2860 = vsel %vm2374, %v2858, 0
    %2862 = vmatpush.bf16.msra.mxu0 0
    %2863 = vmatpush.bf16.msra.mxu0 0
    %2864 = vmatpush.bf16.msra.mxu0 0
    %2865 = vmatpush.bf16.msra.mxu0 0
    %2866 = vmatpush.bf16.msra.mxu0 0
    %2867 = vmatpush.bf16.msra.mxu0 0
    %2868 = vmatpush.bf16.msra.mxu0 0
    %2869 = vmatpush.bf16.msra.mxu0 %v2380
    %2870 = vmatmul.bf16.gmra.mxu0 %v2860
    %v2871 = vpop.f32.mrf.mxu0
    %v2872 = vadd.f32 0.0, %v2871
    %v2873 = vpop.f32.mrf.mxu0
    %2874 = vdwg.mxu0
    %2875 = vmatpush.bf16.msra.mxu0 0
    %2876 = vmatpush.bf16.msra.mxu0 0
    %2877 = vmatpush.bf16.msra.mxu0 0
    %2878 = vmatpush.bf16.msra.mxu0 0
    %2879 = vmatpush.bf16.msra.mxu0 0
    %2880 = vmatpush.bf16.msra.mxu0 0
    %2881 = vmatpush.bf16.msra.mxu0 0
    %2882 = vmatpush.bf16.msra.mxu0 %v2383
    %2883 = vmatmul.bf16.gmra.mxu0 %v2860
    %v2884 = vpop.f32.mrf.mxu0
    %v2885 = vadd.f32 0.0, %v2884
    %v2886 = vpop.f32.mrf.mxu0
    %2887 = vdwg.mxu0
    %v2888 = vpack.c.bf16 %v2872, %v2872
    %v2889 = vpack.c.bf16 %v2885, %v2885
    %s2890 = scalar_lea.vmem %s14, 288
    %v2891 = vld [vmem:[%s2890] sm:$0xf]
    %v2892 = vld [vmem:[%s2890 + $0x4] sm:$0xf]
    %v2893 = vld [vmem:[%s2890 + $0x8] sm:$0xf]
    %v2894 = vld [vmem:[%s2890 + $0xc] sm:$0xf]
    %v2895 = vld [vmem:[%s2890 + $0x10] sm:$0xf]
    %v2896 = vld [vmem:[%s2890 + $0x14] sm:$0xf]
    %v2897 = vld [vmem:[%s2890 + $0x18] sm:$0xf]
    %v2898 = vld [vmem:[%s2890 + $0x1c] sm:$0xf]
    %v2899 = vld [vmem:[%s2890 + $0x20] sm:$0xf]
    %v2900 = vld [vmem:[%s2890 + $0x24] sm:$0xf]
    %v2901 = vld [vmem:[%s2890 + $0x28] sm:$0xf]
    %v2902 = vld [vmem:[%s2890 + $0x2c] sm:$0xf]
    %v2903 = vld [vmem:[%s2890 + $0x30] sm:$0xf]
    %v2904 = vld [vmem:[%s2890 + $0x34] sm:$0xf]
    %v2905 = vld [vmem:[%s2890 + $0x38] sm:$0xf]
    %v2906 = vld [vmem:[%s2890 + $0x3c] sm:$0xf]
    %v2907 = vld [vmem:[%s2890 + $0x40] sm:$0xf]
    %v2908 = vld [vmem:[%s2890 + $0x44] sm:$0xf]
    %v2909 = vld [vmem:[%s2890 + $0x48] sm:$0xf]
    %v2910 = vld [vmem:[%s2890 + $0x4c] sm:$0xf]
    %v2911 = vld [vmem:[%s2890 + $0x50] sm:$0xf]
    %v2912 = vld [vmem:[%s2890 + $0x54] sm:$0xf]
    %v2913 = vld [vmem:[%s2890 + $0x58] sm:$0xf]
    %v2914 = vld [vmem:[%s2890 + $0x5c] sm:$0xf]
    %v2939 = vunpack.c.l.b16 %v2891
    %v2940 = vunpack.c.l.b16 %v2892
    %v2941 = vunpack.c.l.b16 %v2893
    %v2942 = vunpack.c.l.b16 %v2894
    %v2943 = vunpack.c.l.b16 %v2895
    %v2944 = vunpack.c.l.b16 %v2896
    %v2945 = vunpack.c.l.b16 %v2897
    %v2946 = vunpack.c.l.b16 %v2898
    %v2947 = vunpack.c.l.b16 %v2899
    %v2948 = vunpack.c.l.b16 %v2900
    %v2949 = vunpack.c.l.b16 %v2901
    %v2950 = vunpack.c.l.b16 %v2902
    %v2951 = vunpack.c.l.b16 %v2903
    %v2952 = vunpack.c.l.b16 %v2904
    %v2953 = vunpack.c.l.b16 %v2905
    %v2954 = vunpack.c.l.b16 %v2906
    %v2955 = vunpack.c.l.b16 %v2907
    %v2956 = vunpack.c.l.b16 %v2908
    %v2957 = vunpack.c.l.b16 %v2909
    %v2958 = vunpack.c.l.b16 %v2910
    %v2959 = vunpack.c.l.b16 %v2911
    %v2960 = vunpack.c.l.b16 %v2912
    %v2961 = vunpack.c.l.b16 %v2913
    %v2962 = vunpack.c.l.b16 %v2914
    %v2963 = vpack.c.b16 %v2940, %v2939
    %v2964 = vpack.c.b16 %v2942, %v2941
    %v2965 = vpack.c.b16 %v2944, %v2943
    %v2966 = vpack.c.b16 %v2946, %v2945
    %v2967 = vpack.c.b16 %v2948, %v2947
    %v2968 = vpack.c.b16 %v2950, %v2949
    %v2969 = vpack.c.b16 %v2952, %v2951
    %v2970 = vpack.c.b16 %v2954, %v2953
    %v2971 = vpack.c.b16 %v2956, %v2955
    %v2972 = vpack.c.b16 %v2958, %v2957
    %v2973 = vpack.c.b16 %v2960, %v2959
    %v2974 = vpack.c.b16 %v2962, %v2961
    %v2988 = vsel %vm117, %v2889, 0
    %2990 = vmatpush.bf16.msra.mxu0 %v2970
    %2991 = vmatpush.bf16.msra.mxu0 %v2969
    %2992 = vmatpush.bf16.msra.mxu0 %v2968
    %2993 = vmatpush.bf16.msra.mxu0 %v2967
    %2994 = vmatpush.bf16.msra.mxu0 %v2966
    %2995 = vmatpush.bf16.msra.mxu0 %v2965
    %2996 = vmatpush.bf16.msra.mxu0 %v2964
    %2997 = vmatpush.bf16.msra.mxu0 %v2963
    %2998 = vmatmul.bf16.gmra.mxu0 %v2888
    %v2999 = vpop.f32.mrf.mxu0
    %v3000 = vadd.f32 0.0, %v2999
    %v3001 = vpop.f32.mrf.mxu0
    %3002 = vdwg.mxu0
    %3003 = vmatpush.bf16.msra.mxu0 0
    %3004 = vmatpush.bf16.msra.mxu0 0
    %3005 = vmatpush.bf16.msra.mxu0 0
    %3006 = vmatpush.bf16.msra.mxu0 0
    %3007 = vmatpush.bf16.msra.mxu0 %v2974
    %3008 = vmatpush.bf16.msra.mxu0 %v2973
    %3009 = vmatpush.bf16.msra.mxu0 %v2972
    %3010 = vmatpush.bf16.msra.mxu0 %v2971
    %3011 = vmatmul.bf16.gmra.mxu0 %v2988
    %v3012 = vpop.f32.mrf.mxu0
    %v3013 = vadd.f32 %v3000, %v3012
    %v3014 = vpop.f32.mrf.mxu0
    %3015 = vdwg.mxu0
    %v3016 = vadd.f32 %v2856, %v3013
    %v3017 = vld [vmem:[%s15] sm:$0x1]
    %v3019 = vperm.slane %v3017, 0
    %v3021 = vadd.f32 %v3016, %v3019
    %vm3022 = vcmask 11264
    %3023 = vst.msk [vmem:[#allocation2] sm:$0xf] %vm3022, %v3021
    // Predicated region
    $region66: #{disc_forward.1} parent=1 // pred_check
      _
    $region67: #{disc_forward.1} parent=1 // pred_check_branch
      %3025 = sbr.rel (0) target = $region69
    $region68: #{disc_forward.1} parent=1 // pred_region
      %3027 = vsyncadd [#allocation3], 0
      %s3029 = sshll.u32 [#allocation2], 4
      %s3030 = int_to_ptr.vmem [resolvable:$true] %s3029
      %s3031 = sshll.u32 %s16, 4
      %s3032 = int_to_ptr.hbm [resolvable:$true] %s3031
      %3034 = dma.vmem_to_hbm [thread:$0]  %s3030, 64, %s3032, [#allocation3]
    $region69: #{disc_forward.1} parent=1 // pred_fallthru
      _
    // Predicated region
    $region70: #{disc_forward.1} parent=1 // pred_check
      _
    $region71: #{disc_forward.1} parent=1 // pred_check_branch
      %3036 = sbr.rel (0) target = $region73
    $region72: #{disc_forward.1} parent=1 // pred_region
      %3038 = dma.done [#allocation3], 64
    $region73: #{disc_forward.1} parent=1 // pred_fallthru
      _
    %3039 = vsyncpa [#allocation3], 1

</llo_original>
